<compile_context>
chip_gen: v5e
topology: v5e:2x2
jax: 0.10.0
libtpu: 0.0.40
codegen_flags: <defaults>
</compile_context>

<pallas_src>
import jax
import jax.numpy as jnp
from jax.experimental import pallas as pl
from jax.experimental.pallas import tpu as pltpu


# ----------------------------- problem geometry ------------------------------
H = 16
W = 16
CIN = 3
COUT = 72

# internal padded sizes
CP = 128                    # channel dim padded to one full lane (dense vst, MXU-N = 128)
WG = W + 2                  # padded-grid width  (SAME halo of 1)
HG = H + 2                  # padded-grid height
LG = HG * WG                # 324 flattened padded-grid positions
LOUT = 328                  # rows computed per matmul (multiple of 8; extra rows masked)
K1 = 9 * CIN                # 27 im2col features for conv1
K1P = 32                    # padded contraction dim for conv1
S0 = 24                     # grid start row inside the shift buffer (multiple of 8)
MARGIN = WG + 1             # max |tap offset| = 19
RBUF = 376                  # >= S0 + MARGIN + LOUT, rounded up to a multiple of 8

# conv2 tap offsets on the flattened padded grid, tap index t = ky*3 + kx
TAP_OFFSETS = tuple((ky - 1) * WG + (kx - 1) for ky in range(3) for kx in range(3))


# --------------------------------- kernel ------------------------------------
def fused_basic_kernel(xcol_ref, w1_ref, b1_ref, w2_ref, b2_ref, mask_ref,
                       o_ref, midg_ref):
    # conv1: one im2col matmul over every padded-grid position.
    #   xcol_ref: (1, LOUT, K1P)   w1_ref: (K1P, CP)
    mid = jnp.dot(xcol_ref[0], w1_ref[...], preferred_element_type=jnp.float32)
    # bias, then zero the halo ring / tail rows -> this IS conv2's SAME padding
    mid = (mid + b1_ref[...]) * mask_ref[...]

    # stage the intermediate in VMEM (never touches HBM); zero margins so the
    # shifted tap slices below read well-defined data.
    midg_ref[0:S0, :] = jnp.zeros((S0, CP), jnp.float32)
    midg_ref[S0:S0 + LOUT, :] = mid
    midg_ref[S0 + LOUT:RBUF, :] = jnp.zeros((RBUF - S0 - LOUT, CP), jnp.float32)

    # conv2: 9 row-shifted flat-grid slices, each a dense K=128 MXU matmul.
    acc = jnp.zeros((LOUT, CP), jnp.float32)
    for t in range(9):
        d = TAP_OFFSETS[t]
        lhs = midg_ref[S0 + d:S0 + d + LOUT, :]
        acc = acc + jnp.dot(lhs, w2_ref[t], preferred_element_type=jnp.float32)

    o_ref[0] = (acc + b2_ref[...]).astype(o_ref.dtype)


# ------------------------------ host-side prep -------------------------------
def _build_xcol(x_nchw):
    """im2col of the (tiny) input onto the flattened padded grid: (N, LOUT, K1P)."""
    x = jnp.transpose(x_nchw, (0, 2, 3, 1))                        # NHWC (N,H,W,Cin)
    xp2 = jnp.pad(x, ((0, 0), (2, 2), (2, 2), (0, 0)))             # (N, H+4, W+4, Cin)
    cols = [xp2[:, ky:ky + HG, kx:kx + WG, :]
            for ky in range(3) for kx in range(3)]
    xcol = jnp.concatenate(cols, axis=-1).reshape(x.shape[0], LG, K1)
    return jnp.pad(xcol, ((0, 0), (0, LOUT - LG), (0, K1P - K1)))


def _build_mask():
    """(LOUT,1) f32 mask: 1 at valid interior grid positions, 0 on halo/tail."""
    p = jnp.arange(LOUT)
    gi = p // WG
    gj = p % WG
    interior = (p < LG) & (gi >= 1) & (gi <= H) & (gj >= 1) & (gj <= W)
    return interior.astype(jnp.float32).reshape(LOUT, 1)


def _prep_params(params):
    w_a, b_a, w_b, b_b = params
    # conv1: OIHW (72,3,3,3) -> (ky,kx,ci,co) -> (27,72) -> zero-pad to (32,128)
    w1_mat = jnp.transpose(w_a, (2, 3, 1, 0)).reshape(K1, COUT)
    w1_mat = jnp.pad(w1_mat, ((0, K1P - K1), (0, CP - COUT)))
    b1_row = jnp.pad(b_a, (0, CP - COUT)).reshape(1, CP)
    # conv2: OIHW (72,72,3,3) -> (ky,kx,ci,co) -> (9,72,72) -> zero-pad to (9,128,128)
    w2_taps = jnp.transpose(w_b, (2, 3, 1, 0)).reshape(9, COUT, COUT)
    w2_taps = jnp.pad(w2_taps, ((0, 0), (0, CP - COUT), (0, CP - COUT)))
    b2_row = jnp.pad(b_b, (0, CP - COUT)).reshape(1, CP)
    return w1_mat, b1_row, w2_taps, b2_row


def basic_forward(x_nchw, params):
    """Matches PyTorch `basic.forward`: conv3x3 -> conv3x3, NCHW in/out."""
    n = x_nchw.shape[0]
    xcol = _build_xcol(x_nchw)
    w1_mat, b1_row, w2_taps, b2_row = _prep_params(params)
    mask = _build_mask()

    out_flat = pl.pallas_call(
        fused_basic_kernel,
        out_shape=jax.ShapeDtypeStruct((n, LOUT, CP), jnp.float32),
        grid_spec=pltpu.PrefetchScalarGridSpec(
            num_scalar_prefetch=0,
            grid=(n,),
            in_specs=[
                pl.BlockSpec((1, LOUT, K1P), lambda i: (i, 0, 0)),   # xcol
                pl.BlockSpec((K1P, CP), lambda i: (0, 0)),           # w1
                pl.BlockSpec((1, CP), lambda i: (0, 0)),             # b1
                pl.BlockSpec((9, CP, CP), lambda i: (0, 0, 0)),      # w2 taps
                pl.BlockSpec((1, CP), lambda i: (0, 0)),             # b2
                pl.BlockSpec((LOUT, 1), lambda i: (0, 0)),           # interior mask
            ],
            out_specs=pl.BlockSpec((1, LOUT, CP), lambda i: (i, 0, 0)),
            scratch_shapes=[pltpu.VMEM((RBUF, CP), jnp.float32)],
        ),
        compiler_params=pltpu.CompilerParams(
            dimension_semantics=("parallel",)),
    )(xcol, w1_mat, b1_row, w2_taps, b2_row, mask)

    # extract the valid interior, drop channel padding, return NCHW
    y = out_flat[:, :LG, :].reshape(n, HG, WG, CP)[:, 1:H + 1, 1:W + 1, :COUT]
    return jnp.transpose(y, (0, 3, 1, 2))


# ------------------------------- params / ref ---------------------------------
def init_params(key, in_ch=CIN, out_ch=COUT):
    """Deterministic synthetic params (PyTorch Conv2d shapes: (Cout, Cin, 3, 3))."""
    k0, k1, k2, k3 = jax.random.split(key, 4)
    w0 = jax.random.normal(k0, (out_ch, in_ch, 3, 3), jnp.float32) * 0.1
    b0 = jax.random.normal(k1, (out_ch,), jnp.float32) * 0.1
    w1 = jax.random.normal(k2, (out_ch, out_ch, 3, 3), jnp.float32) * 0.05
    b1 = jax.random.normal(k3, (out_ch,), jnp.float32) * 0.1
    return (w0, b0, w1, b1)


def _reference_forward(x_nchw, params):
    """Pure-JAX reference (lax conv) for the correctness check."""
    w0, b0, w1, b1 = params
    dn = jax.lax.conv_dimension_numbers(x_nchw.shape, w0.shape,
                                        ("NCHW", "OIHW", "NCHW"))
    y = jax.lax.conv_general_dilated(x_nchw, w0, (1, 1), "SAME",
                                     dimension_numbers=dn)
    y = y + b0[None, :, None, None]
    dn2 = jax.lax.conv_dimension_numbers(y.shape, w1.shape,
                                         ("NCHW", "OIHW", "NCHW"))
    y = jax.lax.conv_general_dilated(y, w1, (1, 1), "SAME",
                                     dimension_numbers=dn2)
    y = y + b1[None, :, None, None]
    return y


if __name__ == "__main__":
    key = jax.random.PRNGKey(0)
    kx, kp = jax.random.split(key)

    N = 2
    x = jax.random.normal(kx, (N, CIN, H, W), jnp.float32)
    params = init_params(kp, in_ch=CIN, out_ch=COUT)

    out = jax.block_until_ready(basic_forward(x, params))
    ref = jax.block_until_ready(_reference_forward(x, params))

    assert out.shape == (N, COUT, H, W)
    assert jnp.allclose(out, ref, atol=1e-3, rtol=1e-3), \
        f"max abs err {float(jnp.max(jnp.abs(out - ref)))}"

    print("KERNEL_OK")
</pallas_src>

<mosaic_0001>
module attributes {stable_mosaic.version = 11 : i64} {
  func.func @fused_basic_kernel(%arg0: i32, %arg1: memref<1x328x32xf32, #tpu.memory_space<vmem>>, %arg2: memref<32x128xf32, #tpu.memory_space<vmem>>, %arg3: memref<1x128xf32, #tpu.memory_space<vmem>>, %arg4: memref<9x128x128xf32, #tpu.memory_space<vmem>>, %arg5: memref<1x128xf32, #tpu.memory_space<vmem>>, %arg6: memref<328x1xf32, #tpu.memory_space<vmem>>, %arg7: memref<1x328x128xf32, #tpu.memory_space<vmem>>, %arg8: memref<376x128xf32, #tpu.memory_space<vmem>>) attributes {dimension_semantics = [#tpu.dimension_semantics<parallel>], iteration_bounds = array<i64: 2>, scalar_prefetch = 0 : i64, scratch_operands = 1 : i64, tpu.core_type = #tpu.core_type<tc>, window_params = [{transform_indices = @transform_0, window_bounds = array<i64: 1, 328, 32>}, {pipeline_mode = #tpu.pipeline_mode<synchronous>, transform_indices = @transform_1, window_bounds = array<i64: 32, 128>}, {pipeline_mode = #tpu.pipeline_mode<synchronous>, transform_indices = @transform_2, window_bounds = array<i64: 1, 128>}, {pipeline_mode = #tpu.pipeline_mode<synchronous>, transform_indices = @transform_3, window_bounds = array<i64: 9, 128, 128>}, {pipeline_mode = #tpu.pipeline_mode<synchronous>, transform_indices = @transform_4, window_bounds = array<i64: 1, 128>}, {pipeline_mode = #tpu.pipeline_mode<synchronous>, transform_indices = @transform_5, window_bounds = array<i64: 328, 1>}, {transform_indices = @transform_6, window_bounds = array<i64: 1, 328, 128>}]} {
    %c0 = arith.constant 0 : index
    %c0_0 = arith.constant 0 : index
    %c0_1 = arith.constant 0 : index
    %0 = vector.load %arg1[%c0, %c0_0, %c0_1] : memref<1x328x32xf32, #tpu.memory_space<vmem>>, vector<1x328x32xf32>
    %1 = vector.shape_cast %0 : vector<1x328x32xf32> to vector<328x32xf32>
    %c0_2 = arith.constant 0 : index
    %c0_3 = arith.constant 0 : index
    %2 = vector.load %arg2[%c0_2, %c0_3] : memref<32x128xf32, #tpu.memory_space<vmem>>, vector<32x128xf32>
    %cst = arith.constant dense<0.000000e+00> : vector<328x128xf32>
    %3 = tpu.matmul %1, %2, %cst {dimension_numbers = #tpu.dot_dimension_numbers<[1], [0], [0], [1], [0, 0, 1, 1], [], []>} : vector<328x32xf32>, vector<32x128xf32>, vector<328x128xf32> -> vector<328x128xf32>
    %c0_4 = arith.constant 0 : index
    %c0_5 = arith.constant 0 : index
    %4 = vector.load %arg3[%c0_4, %c0_5] : memref<1x128xf32, #tpu.memory_space<vmem>>, vector<1x128xf32>
    %5 = vector.broadcast %4 : vector<1x128xf32> to vector<328x128xf32>
    %6 = arith.addf %3, %5 : vector<328x128xf32>
    %c0_6 = arith.constant 0 : index
    %c0_7 = arith.constant 0 : index
    %7 = vector.load %arg6[%c0_6, %c0_7] : memref<328x1xf32, #tpu.memory_space<vmem>>, vector<328x1xf32>
    %8 = vector.broadcast %7 : vector<328x1xf32> to vector<328x128xf32>
    %9 = arith.mulf %6, %8 : vector<328x128xf32>
    %cst_8 = arith.constant 0.000000e+00 : f32
    %10 = vector.broadcast %cst_8 : f32 to vector<24x128xf32>
    %c0_9 = arith.constant 0 : index
    %c0_10 = arith.constant 0 : index
    %11 = vector.load %arg8[%c0_9, %c0_10] : memref<376x128xf32, #tpu.memory_space<vmem>>, vector<24x128xf32>
    tpu.vector_store %arg8[%c0_9, %c0_10], %10 {strides = array<i32>} : memref<376x128xf32, #tpu.memory_space<vmem>>, vector<24x128xf32>,
    %c24 = arith.constant 24 : index
    %c0_11 = arith.constant 0 : index
    %12 = vector.load %arg8[%c24, %c0_11] : memref<376x128xf32, #tpu.memory_space<vmem>>, vector<328x128xf32>
    tpu.vector_store %arg8[%c24, %c0_11], %9 {strides = array<i32>} : memref<376x128xf32, #tpu.memory_space<vmem>>, vector<328x128xf32>,
    %cst_12 = arith.constant 0.000000e+00 : f32
    %13 = vector.broadcast %cst_12 : f32 to vector<24x128xf32>
    %c352 = arith.constant 352 : index
    %c0_13 = arith.constant 0 : index
    %14 = vector.load %arg8[%c352, %c0_13] : memref<376x128xf32, #tpu.memory_space<vmem>>, vector<24x128xf32>
    tpu.vector_store %arg8[%c352, %c0_13], %13 {strides = array<i32>} : memref<376x128xf32, #tpu.memory_space<vmem>>, vector<24x128xf32>,
    %cst_14 = arith.constant 0.000000e+00 : f32
    %15 = vector.broadcast %cst_14 : f32 to vector<328x128xf32>
    %c5 = arith.constant 5 : index
    %c0_15 = arith.constant 0 : index
    %16 = vector.load %arg8[%c5, %c0_15] : memref<376x128xf32, #tpu.memory_space<vmem>>, vector<328x128xf32>
    %c0_16 = arith.constant 0 : index
    %c0_17 = arith.constant 0 : index
    %c0_18 = arith.constant 0 : index
    %17 = vector.load %arg4[%c0_16, %c0_17, %c0_18] : memref<9x128x128xf32, #tpu.memory_space<vmem>>, vector<1x128x128xf32>
    %18 = vector.shape_cast %17 : vector<1x128x128xf32> to vector<128x128xf32>
    %cst_19 = arith.constant dense<0.000000e+00> : vector<328x128xf32>
    %19 = tpu.matmul %16, %18, %cst_19 {dimension_numbers = #tpu.dot_dimension_numbers<[1], [0], [0], [1], [0, 0, 1, 1], [], []>} : vector<328x128xf32>, vector<128x128xf32>, vector<328x128xf32> -> vector<328x128xf32>
    %20 = arith.addf %15, %19 : vector<328x128xf32>
    %c6 = arith.constant 6 : index
    %c0_20 = arith.constant 0 : index
    %21 = vector.load %arg8[%c6, %c0_20] : memref<376x128xf32, #tpu.memory_space<vmem>>, vector<328x128xf32>
    %c1 = arith.constant 1 : index
    %c0_21 = arith.constant 0 : index
    %c0_22 = arith.constant 0 : index
    %22 = vector.load %arg4[%c1, %c0_21, %c0_22] : memref<9x128x128xf32, #tpu.memory_space<vmem>>, vector<1x128x128xf32>
    %23 = vector.shape_cast %22 : vector<1x128x128xf32> to vector<128x128xf32>
    %cst_23 = arith.constant dense<0.000000e+00> : vector<328x128xf32>
    %24 = tpu.matmul %21, %23, %cst_23 {dimension_numbers = #tpu.dot_dimension_numbers<[1], [0], [0], [1], [0, 0, 1, 1], [], []>} : vector<328x128xf32>, vector<128x128xf32>, vector<328x128xf32> -> vector<328x128xf32>
    %25 = arith.addf %20, %24 : vector<328x128xf32>
    %c7 = arith.constant 7 : index
    %c0_24 = arith.constant 0 : index
    %26 = vector.load %arg8[%c7, %c0_24] : memref<376x128xf32, #tpu.memory_space<vmem>>, vector<328x128xf32>
    %c2 = arith.constant 2 : index
    %c0_25 = arith.constant 0 : index
    %c0_26 = arith.constant 0 : index
    %27 = vector.load %arg4[%c2, %c0_25, %c0_26] : memref<9x128x128xf32, #tpu.memory_space<vmem>>, vector<1x128x128xf32>
    %28 = vector.shape_cast %27 : vector<1x128x128xf32> to vector<128x128xf32>
    %cst_27 = arith.constant dense<0.000000e+00> : vector<328x128xf32>
    %29 = tpu.matmul %26, %28, %cst_27 {dimension_numbers = #tpu.dot_dimension_numbers<[1], [0], [0], [1], [0, 0, 1, 1], [], []>} : vector<328x128xf32>, vector<128x128xf32>, vector<328x128xf32> -> vector<328x128xf32>
    %30 = arith.addf %25, %29 : vector<328x128xf32>
    %c23 = arith.constant 23 : index
    %c0_28 = arith.constant 0 : index
    %31 = vector.load %arg8[%c23, %c0_28] : memref<376x128xf32, #tpu.memory_space<vmem>>, vector<328x128xf32>
    %c3 = arith.constant 3 : index
    %c0_29 = arith.constant 0 : index
    %c0_30 = arith.constant 0 : index
    %32 = vector.load %arg4[%c3, %c0_29, %c0_30] : memref<9x128x128xf32, #tpu.memory_space<vmem>>, vector<1x128x128xf32>
    %33 = vector.shape_cast %32 : vector<1x128x128xf32> to vector<128x128xf32>
    %cst_31 = arith.constant dense<0.000000e+00> : vector<328x128xf32>
    %34 = tpu.matmul %31, %33, %cst_31 {dimension_numbers = #tpu.dot_dimension_numbers<[1], [0], [0], [1], [0, 0, 1, 1], [], []>} : vector<328x128xf32>, vector<128x128xf32>, vector<328x128xf32> -> vector<328x128xf32>
    %35 = arith.addf %30, %34 : vector<328x128xf32>
    %c24_32 = arith.constant 24 : index
    %c0_33 = arith.constant 0 : index
    %36 = vector.load %arg8[%c24_32, %c0_33] : memref<376x128xf32, #tpu.memory_space<vmem>>, vector<328x128xf32>
    %c4 = arith.constant 4 : index
    %c0_34 = arith.constant 0 : index
    %c0_35 = arith.constant 0 : index
    %37 = vector.load %arg4[%c4, %c0_34, %c0_35] : memref<9x128x128xf32, #tpu.memory_space<vmem>>, vector<1x128x128xf32>
    %38 = vector.shape_cast %37 : vector<1x128x128xf32> to vector<128x128xf32>
    %cst_36 = arith.constant dense<0.000000e+00> : vector<328x128xf32>
    %39 = tpu.matmul %36, %38, %cst_36 {dimension_numbers = #tpu.dot_dimension_numbers<[1], [0], [0], [1], [0, 0, 1, 1], [], []>} : vector<328x128xf32>, vector<128x128xf32>, vector<328x128xf32> -> vector<328x128xf32>
    %40 = arith.addf %35, %39 : vector<328x128xf32>
    %c25 = arith.constant 25 : index
    %c0_37 = arith.constant 0 : index
    %41 = vector.load %arg8[%c25, %c0_37] : memref<376x128xf32, #tpu.memory_space<vmem>>, vector<328x128xf32>
    %c5_38 = arith.constant 5 : index
    %c0_39 = arith.constant 0 : index
    %c0_40 = arith.constant 0 : index
    %42 = vector.load %arg4[%c5_38, %c0_39, %c0_40] : memref<9x128x128xf32, #tpu.memory_space<vmem>>, vector<1x128x128xf32>
    %43 = vector.shape_cast %42 : vector<1x128x128xf32> to vector<128x128xf32>
    %cst_41 = arith.constant dense<0.000000e+00> : vector<328x128xf32>
    %44 = tpu.matmul %41, %43, %cst_41 {dimension_numbers = #tpu.dot_dimension_numbers<[1], [0], [0], [1], [0, 0, 1, 1], [], []>} : vector<328x128xf32>, vector<128x128xf32>, vector<328x128xf32> -> vector<328x128xf32>
    %45 = arith.addf %40, %44 : vector<328x128xf32>
    %c41 = arith.constant 41 : index
    %c0_42 = arith.constant 0 : index
    %46 = vector.load %arg8[%c41, %c0_42] : memref<376x128xf32, #tpu.memory_space<vmem>>, vector<328x128xf32>
    %c6_43 = arith.constant 6 : index
    %c0_44 = arith.constant 0 : index
    %c0_45 = arith.constant 0 : index
    %47 = vector.load %arg4[%c6_43, %c0_44, %c0_45] : memref<9x128x128xf32, #tpu.memory_space<vmem>>, vector<1x128x128xf32>
    %48 = vector.shape_cast %47 : vector<1x128x128xf32> to vector<128x128xf32>
    %cst_46 = arith.constant dense<0.000000e+00> : vector<328x128xf32>
    %49 = tpu.matmul %46, %48, %cst_46 {dimension_numbers = #tpu.dot_dimension_numbers<[1], [0], [0], [1], [0, 0, 1, 1], [], []>} : vector<328x128xf32>, vector<128x128xf32>, vector<328x128xf32> -> vector<328x128xf32>
    %50 = arith.addf %45, %49 : vector<328x128xf32>
    %c42 = arith.constant 42 : index
    %c0_47 = arith.constant 0 : index
    %51 = vector.load %arg8[%c42, %c0_47] : memref<376x128xf32, #tpu.memory_space<vmem>>, vector<328x128xf32>
    %c7_48 = arith.constant 7 : index
    %c0_49 = arith.constant 0 : index
    %c0_50 = arith.constant 0 : index
    %52 = vector.load %arg4[%c7_48, %c0_49, %c0_50] : memref<9x128x128xf32, #tpu.memory_space<vmem>>, vector<1x128x128xf32>
    %53 = vector.shape_cast %52 : vector<1x128x128xf32> to vector<128x128xf32>
    %cst_51 = arith.constant dense<0.000000e+00> : vector<328x128xf32>
    %54 = tpu.matmul %51, %53, %cst_51 {dimension_numbers = #tpu.dot_dimension_numbers<[1], [0], [0], [1], [0, 0, 1, 1], [], []>} : vector<328x128xf32>, vector<128x128xf32>, vector<328x128xf32> -> vector<328x128xf32>
    %55 = arith.addf %50, %54 : vector<328x128xf32>
    %c43 = arith.constant 43 : index
    %c0_52 = arith.constant 0 : index
    %56 = vector.load %arg8[%c43, %c0_52] : memref<376x128xf32, #tpu.memory_space<vmem>>, vector<328x128xf32>
    %c8 = arith.constant 8 : index
    %c0_53 = arith.constant 0 : index
    %c0_54 = arith.constant 0 : index
    %57 = vector.load %arg4[%c8, %c0_53, %c0_54] : memref<9x128x128xf32, #tpu.memory_space<vmem>>, vector<1x128x128xf32>
    %58 = vector.shape_cast %57 : vector<1x128x128xf32> to vector<128x128xf32>
    %cst_55 = arith.constant dense<0.000000e+00> : vector<328x128xf32>
    %59 = tpu.matmul %56, %58, %cst_55 {dimension_numbers = #tpu.dot_dimension_numbers<[1], [0], [0], [1], [0, 0, 1, 1], [], []>} : vector<328x128xf32>, vector<128x128xf32>, vector<328x128xf32> -> vector<328x128xf32>
    %60 = arith.addf %55, %59 : vector<328x128xf32>
    %c0_56 = arith.constant 0 : index
    %c0_57 = arith.constant 0 : index
    %61 = vector.load %arg5[%c0_56, %c0_57] : memref<1x128xf32, #tpu.memory_space<vmem>>, vector<1x128xf32>
    %62 = vector.broadcast %61 : vector<1x128xf32> to vector<328x128xf32>
    %63 = arith.addf %60, %62 : vector<328x128xf32>
    %c0_58 = arith.constant 0 : index
    %c0_59 = arith.constant 0 : index
    %c0_60 = arith.constant 0 : index
    %64 = vector.load %arg7[%c0_58, %c0_59, %c0_60] : memref<1x328x128xf32, #tpu.memory_space<vmem>>, vector<1x328x128xf32>
    %65 = vector.shape_cast %64 : vector<1x328x128xf32> to vector<328x128xf32>
    %66 = vector.shape_cast %63 : vector<328x128xf32> to vector<1x328x128xf32>
    tpu.vector_store %arg7[%c0_58, %c0_59, %c0_60], %66 {strides = array<i32>} : memref<1x328x128xf32, #tpu.memory_space<vmem>>, vector<1x328x128xf32>,
    return
  }
  func.func @transform_0(%arg0: i32) -> (i32, i32, i32) {
    %c0_i32 = arith.constant 0 : i32
    %c0_i32_0 = arith.constant 0 : i32
    %c0_i32_1 = arith.constant 0 : i32
    return %arg0, %c0_i32, %c0_i32_0 : i32, i32, i32
  }
  func.func @transform_1(%arg0: i32) -> (i32, i32) {
    %c0_i32 = arith.constant 0 : i32
    %c0_i32_0 = arith.constant 0 : i32
    %c0_i32_1 = arith.constant 0 : i32
    return %c0_i32, %c0_i32_0 : i32, i32
  }
  func.func @transform_2(%arg0: i32) -> (i32, i32) {
    %c0_i32 = arith.constant 0 : i32
    %c0_i32_0 = arith.constant 0 : i32
    %c0_i32_1 = arith.constant 0 : i32
    return %c0_i32, %c0_i32_0 : i32, i32
  }
  func.func @transform_3(%arg0: i32) -> (i32, i32, i32) {
    %c0_i32 = arith.constant 0 : i32
    %c0_i32_0 = arith.constant 0 : i32
    %c0_i32_1 = arith.constant 0 : i32
    %c0_i32_2 = arith.constant 0 : i32
    return %c0_i32, %c0_i32_0, %c0_i32_1 : i32, i32, i32
  }
  func.func @transform_4(%arg0: i32) -> (i32, i32) {
    %c0_i32 = arith.constant 0 : i32
    %c0_i32_0 = arith.constant 0 : i32
    %c0_i32_1 = arith.constant 0 : i32
    return %c0_i32, %c0_i32_0 : i32, i32
  }
  func.func @transform_5(%arg0: i32) -> (i32, i32) {
    %c0_i32 = arith.constant 0 : i32
    %c0_i32_0 = arith.constant 0 : i32
    %c0_i32_1 = arith.constant 0 : i32
    return %c0_i32, %c0_i32_0 : i32, i32
  }
  func.func @transform_6(%arg0: i32) -> (i32, i32, i32) {
    %c0_i32 = arith.constant 0 : i32
    %c0_i32_0 = arith.constant 0 : i32
    %c0_i32_1 = arith.constant 0 : i32
    return %arg0, %c0_i32, %c0_i32_0 : i32, i32, i32
  }
}

</mosaic_0001>

<llo_original>
// kernel: tpu_custom_call.1
$region0: #{tpu_custom_call.1}
  #allocation0 [shape = 'u32[]', space=smem, size = 0x4, offset = 0x4, fixed_abs, tag = 'smem constant byte address 0x4 - core index']
  #allocation1 [shape = 'u32[72,128]{1,0:T(1,128)}', space=vmem, size = 0x9000, scoped, tag = 'internal scratch']
  #allocation2 [shape = 'f32[376,128]{1,0:T(8,128)}', space=vmem, size = 0x2f000, scoped, tag = 'scratch operand']
  %s0 = inlined_call_operand.vmem [shape: f32[2,328,32], index: 0, kind: input, shape index: {}]
  %s1 = inlined_call_operand.vmem [shape: f32[32,128], index: 1, kind: input, shape index: {}]
  %s2 = inlined_call_operand.vmem [shape: f32[1,128], index: 2, kind: input, shape index: {}]
  %s3 = inlined_call_operand.hbm [shape: f32[9,128,128], index: 3, kind: input, shape index: {}]
  %s4 = inlined_call_operand.vmem [shape: f32[1,128], index: 4, kind: input, shape index: {}]
  %s5 = inlined_call_operand.vmem [shape: f32[328,1], index: 5, kind: input, shape index: {}]
  %s6 = inlined_call_operand.hbm [shape: f32[2,328,128], index: 6, kind: output, shape index: {}]
  %s7 = sld [smem:[#allocation0]]
  $region61: #{tpu_custom_call.1} parent=0
    _
  %s9 = ssub.s32 1, %s7
  %s10 = scalar_select 0, %s9, %s7
  $region1: #{tpu_custom_call.1} parent=0
    #allocation3 [shape = 'u8[589824]{0}', space=vmem, size = 0x90000, scoped, tag = 'input window, operand 3, single buffered']
    #allocation4 [shape = 's32[2]{0}', space=sflag, size = 0x8, scoped, tag = 'scoped memory for tpu_custom_call.1']
    #allocation5 [shape = 's32[2]{0}', space=sflag, size = 0x8, scoped, tag = 'scoped memory for tpu_custom_call.1']
    #allocation6 [shape = 'u8[335872]{0}', space=vmem, size = 0x52000, scoped, tag = 'output window, operand 0']
    %11 = vsyncpa [#allocation4], 0
    %12 = vsyncpa [#allocation5], 0
    %s13 = scalar_lea.sflag [#allocation5], 1
    %14 = vsyncpa %s13, 0
    loop: start=0, step=1, limit=4
    $region2: #{tpu_custom_call.1} parent=1 // loop_pre_header
      _
    $region3: #{tpu_custom_call.1} parent=1 // loop_header
      %s16 = sphi 0, %s20
      %p17 = scmp.ge.s32.totalorder %s16, 4
      %s26 = sphi 0, %s28
      %s29 = sphi 0, %s26
      %s30 = sphi 0, %s29
      %s46 = sphi 0, %s30
      %s50 = sphi 0, %s50
      %s52 = sphi 0, %s50
      %s53 = sphi 0, %s52
      %s67 = sphi 0, %s53
      %s71 = sphi 0, %s71
      %s73 = sphi 0, %s71
      %s74 = sphi 0, %s73
      %s88 = sphi 0, %s74
      %s92 = sphi 0, %s92
      %s94 = sphi 0, %s92
      %s95 = sphi 0, %s94
      %s109 = sphi 0, %s95
      %s113 = sphi 0, %s113
      %s115 = sphi 0, %s113
      %s116 = sphi 0, %s115
      %s130 = sphi 0, %s116
      %s134 = sphi 0, %s134
      %s136 = sphi 0, %s134
      %s137 = sphi 0, %s136
      %s151 = sphi 0, %s137
      %s157 = sphi 0, %s159
      %s160 = sphi 0, %s157
      %s161 = sphi 0, %s160
      %s177 = sphi 0, %s161
    $region4: #{tpu_custom_call.1} parent=1 // loop_header_branch
      %19 = sbr.rel (%p17) target = $region8
    $region5: #{tpu_custom_call.1} parent=1 // loop_body
      %s21 = ssub.s32 %s16, 1
      %s22 = ssub.s32 %s16, 2
      %s23 = sadd.s32 %s16, 1
      %s24 = ssub.s32 %s16, %s23
      %p25 = scmp.eq.s32.totalorder %s24, 0
      %s27 = sadd.s32 %s26, 1
      %s28 = scalar_select %p25, %s26, %s27
      %p31 = pneg %p25
      %p32 = scmp.eq.s32.totalorder %s16, 1
      %p33 = por %p31, %p32
      %p34 = scmp.ne.s32.totalorder %s26, %s29
      %p35 = scmp.eq.s32.totalorder %s16, 0
      %p36 = por %p34, %p35
      %p37 = scmp.ne.s32.totalorder %s26, %s29
      %p38 = scmp.eq.s32.totalorder %s21, 1
      %p39 = por %p37, %p38
      %p40 = scmp.ne.s32.totalorder %s29, %s30
      %p41 = scmp.eq.s32.totalorder %s21, 0
      %p42 = por %p40, %p41
      %p43 = scmp.ne.s32.totalorder %s29, %s30
      %p44 = scmp.eq.s32.totalorder %s22, 1
      %p45 = por %p43, %p44
      %p47 = scmp.ne.s32.totalorder %s30, %s46
      %p48 = scmp.eq.s32.totalorder %s22, 0
      %p49 = por %p47, %p48
      %s51 = sadd.s32 %s50, 1
      %p54 = scmp.eq.s32.totalorder %s16, 1
      %p55 = scmp.ne.s32.totalorder %s50, %s52
      %p56 = scmp.eq.s32.totalorder %s16, 0
      %p57 = por %p55, %p56
      %p58 = scmp.ne.s32.totalorder %s50, %s52
      %p59 = scmp.eq.s32.totalorder %s21, 1
      %p60 = por %p58, %p59
      %p61 = scmp.ne.s32.totalorder %s52, %s53
      %p62 = scmp.eq.s32.totalorder %s21, 0
      %p63 = por %p61, %p62
      %p64 = scmp.ne.s32.totalorder %s52, %s53
      %p65 = scmp.eq.s32.totalorder %s22, 1
      %p66 = por %p64, %p65
      %p68 = scmp.ne.s32.totalorder %s53, %s67
      %p69 = scmp.eq.s32.totalorder %s22, 0
      %p70 = por %p68, %p69
      %s72 = sadd.s32 %s71, 1
      %p75 = scmp.eq.s32.totalorder %s16, 1
      %p76 = scmp.ne.s32.totalorder %s71, %s73
      %p77 = scmp.eq.s32.totalorder %s16, 0
      %p78 = por %p76, %p77
      %p79 = scmp.ne.s32.totalorder %s71, %s73
      %p80 = scmp.eq.s32.totalorder %s21, 1
      %p81 = por %p79, %p80
      %p82 = scmp.ne.s32.totalorder %s73, %s74
      %p83 = scmp.eq.s32.totalorder %s21, 0
      %p84 = por %p82, %p83
      %p85 = scmp.ne.s32.totalorder %s73, %s74
      %p86 = scmp.eq.s32.totalorder %s22, 1
      %p87 = por %p85, %p86
      %p89 = scmp.ne.s32.totalorder %s74, %s88
      %p90 = scmp.eq.s32.totalorder %s22, 0
      %p91 = por %p89, %p90
      %s93 = sadd.s32 %s92, 1
      %p96 = scmp.eq.s32.totalorder %s16, 1
      %p97 = scmp.ne.s32.totalorder %s92, %s94
      %p98 = scmp.eq.s32.totalorder %s16, 0
      %p99 = por %p97, %p98
      %p100 = scmp.ne.s32.totalorder %s92, %s94
      %p101 = scmp.eq.s32.totalorder %s21, 1
      %p102 = por %p100, %p101
      %p103 = scmp.ne.s32.totalorder %s94, %s95
      %p104 = scmp.eq.s32.totalorder %s21, 0
      %p105 = por %p103, %p104
      %p106 = scmp.ne.s32.totalorder %s94, %s95
      %p107 = scmp.eq.s32.totalorder %s22, 1
      %p108 = por %p106, %p107
      %p110 = scmp.ne.s32.totalorder %s95, %s109
      %p111 = scmp.eq.s32.totalorder %s22, 0
      %p112 = por %p110, %p111
      %s114 = sadd.s32 %s113, 1
      %p117 = scmp.eq.s32.totalorder %s16, 1
      %p118 = scmp.ne.s32.totalorder %s113, %s115
      %p119 = scmp.eq.s32.totalorder %s16, 0
      %p120 = por %p118, %p119
      %p121 = scmp.ne.s32.totalorder %s113, %s115
      %p122 = scmp.eq.s32.totalorder %s21, 1
      %p123 = por %p121, %p122
      %p124 = scmp.ne.s32.totalorder %s115, %s116
      %p125 = scmp.eq.s32.totalorder %s21, 0
      %p126 = por %p124, %p125
      %p127 = scmp.ne.s32.totalorder %s115, %s116
      %p128 = scmp.eq.s32.totalorder %s22, 1
      %p129 = por %p127, %p128
      %p131 = scmp.ne.s32.totalorder %s116, %s130
      %p132 = scmp.eq.s32.totalorder %s22, 0
      %p133 = por %p131, %p132
      %s135 = sadd.s32 %s134, 1
      %p138 = scmp.eq.s32.totalorder %s16, 1
      %p139 = scmp.ne.s32.totalorder %s134, %s136
      %p140 = scmp.eq.s32.totalorder %s16, 0
      %p141 = por %p139, %p140
      %p142 = scmp.ne.s32.totalorder %s134, %s136
      %p143 = scmp.eq.s32.totalorder %s21, 1
      %p144 = por %p142, %p143
      %p145 = scmp.ne.s32.totalorder %s136, %s137
      %p146 = scmp.eq.s32.totalorder %s21, 0
      %p147 = por %p145, %p146
      %p148 = scmp.ne.s32.totalorder %s136, %s137
      %p149 = scmp.eq.s32.totalorder %s22, 1
      %p150 = por %p148, %p149
      %p152 = scmp.ne.s32.totalorder %s137, %s151
      %p153 = scmp.eq.s32.totalorder %s22, 0
      %p154 = por %p152, %p153
      %s155 = ssub.s32 %s16, %s23
      %p156 = scmp.eq.s32.totalorder %s155, 0
      %s158 = sadd.s32 %s157, 1
      %s159 = scalar_select %p156, %s157, %s158
      %p162 = pneg %p156
      %p163 = scmp.eq.s32.totalorder %s16, 1
      %p164 = por %p162, %p163
      %p165 = scmp.ne.s32.totalorder %s157, %s160
      %p166 = scmp.eq.s32.totalorder %s16, 0
      %p167 = por %p165, %p166
      %p168 = scmp.ne.s32.totalorder %s157, %s160
      %p169 = scmp.eq.s32.totalorder %s21, 1
      %p170 = por %p168, %p169
      %p171 = scmp.ne.s32.totalorder %s160, %s161
      %p172 = scmp.eq.s32.totalorder %s21, 0
      %p173 = por %p171, %p172
      %p174 = scmp.ne.s32.totalorder %s160, %s161
      %p175 = scmp.eq.s32.totalorder %s22, 1
      %p176 = por %p174, %p175
      %p178 = scmp.ne.s32.totalorder %s161, %s177
      %p179 = scmp.eq.s32.totalorder %s22, 0
      %p180 = por %p178, %p179
      %p181 = scmp.le.s32.totalorder 1, %s16
      %p182 = scmp.lt.s32.totalorder %s16, 3
      %p183 = pnand %p181, %p182
      %p184 = pneg %p183
      // Predicated region
      $region9: #{tpu_custom_call.1} parent=5 // pred_check
        _
      $region10: #{tpu_custom_call.1} parent=5 // pred_check_branch
        %186 = sbr.rel (%p183) target = $region12
      $region11: #{tpu_custom_call.1} parent=5 // pred_region
        %s187 = ssub.s32 %s16, 1
        // Predicated region
        $region13: #{tpu_custom_call.1} parent=11 // pred_check
          %p188 = pneg %p63
        $region14: #{tpu_custom_call.1} parent=11 // pred_check_branch
          %190 = sbr.rel (%p188) target = $region16
        $region15: #{tpu_custom_call.1} parent=11 // pred_region
          _
        $region16: #{tpu_custom_call.1} parent=11 // pred_fallthru
          _
        // Predicated region
        $region17: #{tpu_custom_call.1} parent=11 // pred_check
          %p191 = pneg %p84
        $region18: #{tpu_custom_call.1} parent=11 // pred_check_branch
          %193 = sbr.rel (%p191) target = $region20
        $region19: #{tpu_custom_call.1} parent=11 // pred_region
          _
        $region20: #{tpu_custom_call.1} parent=11 // pred_fallthru
          _
        // Predicated region
        $region21: #{tpu_custom_call.1} parent=11 // pred_check
          %p194 = pneg %p105
        $region22: #{tpu_custom_call.1} parent=11 // pred_check_branch
          %196 = sbr.rel (%p194) target = $region24
        $region23: #{tpu_custom_call.1} parent=11 // pred_region
          %198 = vsyncadd [#allocation4], 0
          %s199 = sshll.u32 %s3, 4
          %s200 = int_to_ptr.hbm [resolvable:$true] %s199
          %s201 = sshll.u32 [#allocation3], 4
          %s202 = int_to_ptr.vmem [resolvable:$true] %s201
          %207 = dma.hbm_to_vmem [thread:$0]  %s200, 18432, %s202, [#allocation4], 128, 128, 8
        $region24: #{tpu_custom_call.1} parent=11 // pred_fallthru
          _
        // Predicated region
        $region25: #{tpu_custom_call.1} parent=11 // pred_check
          %p208 = pneg %p126
        $region26: #{tpu_custom_call.1} parent=11 // pred_check_branch
          %210 = sbr.rel (%p208) target = $region28
        $region27: #{tpu_custom_call.1} parent=11 // pred_region
          _
        $region28: #{tpu_custom_call.1} parent=11 // pred_fallthru
          _
        // Predicated region
        $region29: #{tpu_custom_call.1} parent=11 // pred_check
          %p211 = pneg %p147
        $region30: #{tpu_custom_call.1} parent=11 // pred_check_branch
          %213 = sbr.rel (%p211) target = $region32
        $region31: #{tpu_custom_call.1} parent=11 // pred_region
          _
        $region32: #{tpu_custom_call.1} parent=11 // pred_fallthru
          _
      $region12: #{tpu_custom_call.1} parent=5 // pred_fallthru
        _
      %p214 = scmp.lt.s32.totalorder %s16, 2
      // Predicated region
      $region33: #{tpu_custom_call.1} parent=5 // pred_check
        %p215 = pneg %p214
      $region34: #{tpu_custom_call.1} parent=5 // pred_check_branch
        %217 = sbr.rel (%p215) target = $region36
      $region35: #{tpu_custom_call.1} parent=5 // pred_region
        // Predicated region
        $region37: #{tpu_custom_call.1} parent=35 // pred_check
          %p218 = pneg %p36
        $region38: #{tpu_custom_call.1} parent=35 // pred_check_branch
          %220 = sbr.rel (%p218) target = $region40
        $region39: #{tpu_custom_call.1} parent=35 // pred_region
          %p221 = scmp.lt.s32.totalorder %s16, 1
          %s222 = scalar_select %p221, %s16, 1
          %s223 = smul.addr %s222, 41
          %s224 = smul.addr %s223, 8
          %s225 = scalar_lea.vmem %s0, %s224
        $region40: #{tpu_custom_call.1} parent=35 // pred_fallthru
          _
      $region36: #{tpu_custom_call.1} parent=5 // pred_fallthru
        _
      %p226 = scmp.le.s32.totalorder 1, %s16
      %p227 = scmp.lt.s32.totalorder %s16, 3
      %p228 = pnand %p226, %p227
      %p229 = pneg %p228
      // Predicated region
      $region41: #{tpu_custom_call.1} parent=5 // pred_check
        _
      $region42: #{tpu_custom_call.1} parent=5 // pred_check_branch
        %231 = sbr.rel (%p228) target = $region44
      $region43: #{tpu_custom_call.1} parent=5 // pred_region
        %s232 = ssub.s32 %s16, 1
        // Predicated region
        $region45: #{tpu_custom_call.1} parent=43 // pred_check
          %p233 = pneg %p105
        $region46: #{tpu_custom_call.1} parent=43 // pred_check_branch
          %235 = sbr.rel (%p233) target = $region48
        $region47: #{tpu_custom_call.1} parent=43 // pred_region
          %237 = dma.done [#allocation4], 18432
        $region48: #{tpu_custom_call.1} parent=43 // pred_fallthru
          _
        %p238 = scmp.lt.s32.totalorder %s21, 1
        %s239 = scalar_select %p238, %s21, 1
        %s240 = smul.addr %s239, 41
        %s241 = smul.addr %s240, 8
        %s242 = scalar_lea.vmem %s0, %s241
        %p243 = pneg %p42
        %p244 = pneg %p39
        %p245 = pneg %p63
        %p246 = pneg %p60
        %p247 = pneg %p84
        %p248 = pneg %p81
        %p249 = pneg %p105
        %p250 = pneg %p102
        %p251 = pneg %p126
        %p252 = pneg %p123
        %p253 = pneg %p147
        %p254 = pneg %p144
        %p255 = pneg %p173
        %p256 = pneg %p170
        %s257 = sand.u32 %s160, 1
        %s258 = scalar_lea.sflag [#allocation5], %s257
        %s259 = sand.u32 %s160, 1
        %s260 = smul.addr %s259, 328
        %s261 = scalar_lea.vmem [#allocation6], %s260
        %p262 = scmp.lt.s32.totalorder %s21, 1
        %s263 = scalar_select %p262, %s21, 1
        %s264 = smul.addr %s263, 41
        %s265 = smul.addr %s264, 8
        %s266 = scalar_lea.vmem %s0, %s265
        %v267 = vld [vmem:[%s266] sm:$0xff]
        %v268 = vld [vmem:[%s266 + $0x8] sm:$0xff]
        %v269 = vld [vmem:[%s266 + $0x10] sm:$0xff]
        %v270 = vld [vmem:[%s266 + $0x18] sm:$0xff]
        %v271 = vld [vmem:[%s266 + $0x20] sm:$0xff]
        %v272 = vld [vmem:[%s266 + $0x28] sm:$0xff]
        %v273 = vld [vmem:[%s266 + $0x30] sm:$0xff]
        %v274 = vld [vmem:[%s266 + $0x38] sm:$0xff]
        %v275 = vld [vmem:[%s266 + $0x40] sm:$0xff]
        %v276 = vld [vmem:[%s266 + $0x48] sm:$0xff]
        %v277 = vld [vmem:[%s266 + $0x50] sm:$0xff]
        %v278 = vld [vmem:[%s266 + $0x58] sm:$0xff]
        %v279 = vld [vmem:[%s266 + $0x60] sm:$0xff]
        %v280 = vld [vmem:[%s266 + $0x68] sm:$0xff]
        %v281 = vld [vmem:[%s266 + $0x70] sm:$0xff]
        %v282 = vld [vmem:[%s266 + $0x78] sm:$0xff]
        %v283 = vld [vmem:[%s266 + $0x80] sm:$0xff]
        %v284 = vld [vmem:[%s266 + $0x88] sm:$0xff]
        %v285 = vld [vmem:[%s266 + $0x90] sm:$0xff]
        %v286 = vld [vmem:[%s266 + $0x98] sm:$0xff]
        %v287 = vld [vmem:[%s266 + $0xa0] sm:$0xff]
        %v288 = vld [vmem:[%s266 + $0xa8] sm:$0xff]
        %v289 = vld [vmem:[%s266 + $0xb0] sm:$0xff]
        %v290 = vld [vmem:[%s266 + $0xb8] sm:$0xff]
        %v291 = vld [vmem:[%s266 + $0xc0] sm:$0xff]
        %v292 = vld [vmem:[%s266 + $0xc8] sm:$0xff]
        %v293 = vld [vmem:[%s266 + $0xd0] sm:$0xff]
        %v294 = vld [vmem:[%s266 + $0xd8] sm:$0xff]
        %v295 = vld [vmem:[%s266 + $0xe0] sm:$0xff]
        %v296 = vld [vmem:[%s266 + $0xe8] sm:$0xff]
        %v297 = vld [vmem:[%s266 + $0xf0] sm:$0xff]
        %v298 = vld [vmem:[%s266 + $0xf8] sm:$0xff]
        %v299 = vld [vmem:[%s266 + $0x100] sm:$0xff]
        %v300 = vld [vmem:[%s266 + $0x108] sm:$0xff]
        %v301 = vld [vmem:[%s266 + $0x110] sm:$0xff]
        %v302 = vld [vmem:[%s266 + $0x118] sm:$0xff]
        %v303 = vld [vmem:[%s266 + $0x120] sm:$0xff]
        %v304 = vld [vmem:[%s266 + $0x128] sm:$0xff]
        %v305 = vld [vmem:[%s266 + $0x130] sm:$0xff]
        %v306 = vld [vmem:[%s266 + $0x138] sm:$0xff]
        %v307 = vld [vmem:[%s266 + $0x140] sm:$0xff]
        %v308 = vld [vmem:[%s1] sm:$0xff]
        %v309 = vld [vmem:[%s1 + $0x8] sm:$0xff]
        %v310 = vld [vmem:[%s1 + $0x10] sm:$0xff]
        %v311 = vld [vmem:[%s1 + $0x18] sm:$0xff]
        %v312 = vld [vmem:[%s2] sm:$0x1]
        %v314 = vperm.slane %v312, 0
        %vm316 = vcmask 261120
        %v318 = vsel %vm316, %v267, 0
        %v321 = vsel %vm316, %v268, 0
        %v324 = vsel %vm316, %v269, 0
        %v327 = vsel %vm316, %v270, 0
        %v330 = vsel %vm316, %v271, 0
        %v333 = vsel %vm316, %v272, 0
        %v336 = vsel %vm316, %v273, 0
        %v339 = vsel %vm316, %v274, 0
        %v342 = vsel %vm316, %v275, 0
        %v345 = vsel %vm316, %v276, 0
        %v348 = vsel %vm316, %v277, 0
        %v351 = vsel %vm316, %v278, 0
        %v354 = vsel %vm316, %v279, 0
        %v357 = vsel %vm316, %v280, 0
        %v360 = vsel %vm316, %v281, 0
        %v363 = vsel %vm316, %v282, 0
        %v366 = vsel %vm316, %v283, 0
        %v369 = vsel %vm316, %v284, 0
        %v372 = vsel %vm316, %v285, 0
        %v375 = vsel %vm316, %v286, 0
        %v378 = vsel %vm316, %v287, 0
        %v381 = vsel %vm316, %v288, 0
        %v384 = vsel %vm316, %v289, 0
        %v387 = vsel %vm316, %v290, 0
        %v390 = vsel %vm316, %v291, 0
        %v393 = vsel %vm316, %v292, 0
        %v396 = vsel %vm316, %v293, 0
        %v399 = vsel %vm316, %v294, 0
        %v402 = vsel %vm316, %v295, 0
        %v405 = vsel %vm316, %v296, 0
        %v408 = vsel %vm316, %v297, 0
        %v411 = vsel %vm316, %v298, 0
        %v414 = vsel %vm316, %v299, 0
        %v417 = vsel %vm316, %v300, 0
        %v420 = vsel %vm316, %v301, 0
        %v423 = vsel %vm316, %v302, 0
        %v426 = vsel %vm316, %v303, 0
        %v429 = vsel %vm316, %v304, 0
        %v432 = vsel %vm316, %v305, 0
        %v435 = vsel %vm316, %v306, 0
        %v438 = vsel %vm316, %v307, 0
        %440 = vmatpush.msra.mxu0 0.0
        %441 = vmatpush.msra.mxu0 0.0
        %442 = vmatpush.msra.mxu0 0.0
        %443 = vmatpush.msra.mxu0 0.0
        %444 = vmatpush.msra.mxu0 0.0
        %445 = vmatpush.msra.mxu0 0.0
        %446 = vmatpush.msra.mxu0 0.0
        %447 = vmatpush.msra.mxu0 0.0
        %448 = vmatpush.msra.mxu0 0.0
        %449 = vmatpush.msra.mxu0 0.0
        %450 = vmatpush.msra.mxu0 0.0
        %451 = vmatpush.msra.mxu0 0.0
        %452 = vmatpush.msra.mxu0 %v311
        %453 = vmatpush.msra.mxu0 %v310
        %454 = vmatpush.msra.mxu0 %v309
        %455 = vmatpush.msra.mxu0 %v308
        %456 = vmatmul.f32.gmra.mxu0 %v318
        %v457 = vpop.f32.mrf.mxu0
        %v458 = vadd.f32 %v314, %v457
        %459 = vmatmul.f32.gmra.mxu0 %v321
        %v460 = vpop.f32.mrf.mxu0
        %v461 = vadd.f32 %v314, %v460
        %462 = vmatmul.f32.gmra.mxu0 %v324
        %v463 = vpop.f32.mrf.mxu0
        %v464 = vadd.f32 %v314, %v463
        %465 = vmatmul.f32.gmra.mxu0 %v327
        %v466 = vpop.f32.mrf.mxu0
        %v467 = vadd.f32 %v314, %v466
        %468 = vmatmul.f32.gmra.mxu0 %v330
        %v469 = vpop.f32.mrf.mxu0
        %v470 = vadd.f32 %v314, %v469
        %471 = vmatmul.f32.gmra.mxu0 %v333
        %v472 = vpop.f32.mrf.mxu0
        %v473 = vadd.f32 %v314, %v472
        %474 = vmatmul.f32.gmra.mxu0 %v336
        %v475 = vpop.f32.mrf.mxu0
        %v476 = vadd.f32 %v314, %v475
        %477 = vmatmul.f32.gmra.mxu0 %v339
        %v478 = vpop.f32.mrf.mxu0
        %v479 = vadd.f32 %v314, %v478
        %480 = vmatmul.f32.gmra.mxu0 %v342
        %v481 = vpop.f32.mrf.mxu0
        %v482 = vadd.f32 %v314, %v481
        %483 = vmatmul.f32.gmra.mxu0 %v345
        %v484 = vpop.f32.mrf.mxu0
        %v485 = vadd.f32 %v314, %v484
        %486 = vmatmul.f32.gmra.mxu0 %v348
        %v487 = vpop.f32.mrf.mxu0
        %v488 = vadd.f32 %v314, %v487
        %489 = vmatmul.f32.gmra.mxu0 %v351
        %v490 = vpop.f32.mrf.mxu0
        %v491 = vadd.f32 %v314, %v490
        %492 = vmatmul.f32.gmra.mxu0 %v354
        %v493 = vpop.f32.mrf.mxu0
        %v494 = vadd.f32 %v314, %v493
        %495 = vmatmul.f32.gmra.mxu0 %v357
        %v496 = vpop.f32.mrf.mxu0
        %v497 = vadd.f32 %v314, %v496
        %498 = vmatmul.f32.gmra.mxu0 %v360
        %v499 = vpop.f32.mrf.mxu0
        %v500 = vadd.f32 %v314, %v499
        %501 = vmatmul.f32.gmra.mxu0 %v363
        %v502 = vpop.f32.mrf.mxu0
        %v503 = vadd.f32 %v314, %v502
        %504 = vmatmul.f32.gmra.mxu0 %v366
        %v505 = vpop.f32.mrf.mxu0
        %v506 = vadd.f32 %v314, %v505
        %507 = vmatmul.f32.gmra.mxu0 %v369
        %v508 = vpop.f32.mrf.mxu0
        %v509 = vadd.f32 %v314, %v508
        %510 = vmatmul.f32.gmra.mxu0 %v372
        %v511 = vpop.f32.mrf.mxu0
        %v512 = vadd.f32 %v314, %v511
        %513 = vmatmul.f32.gmra.mxu0 %v375
        %v514 = vpop.f32.mrf.mxu0
        %v515 = vadd.f32 %v314, %v514
        %516 = vmatmul.f32.gmra.mxu0 %v378
        %v517 = vpop.f32.mrf.mxu0
        %v518 = vadd.f32 %v314, %v517
        %519 = vmatmul.f32.gmra.mxu0 %v381
        %v520 = vpop.f32.mrf.mxu0
        %v521 = vadd.f32 %v314, %v520
        %522 = vmatmul.f32.gmra.mxu0 %v384
        %v523 = vpop.f32.mrf.mxu0
        %v524 = vadd.f32 %v314, %v523
        %525 = vmatmul.f32.gmra.mxu0 %v387
        %v526 = vpop.f32.mrf.mxu0
        %v527 = vadd.f32 %v314, %v526
        %528 = vmatmul.f32.gmra.mxu0 %v390
        %v529 = vpop.f32.mrf.mxu0
        %v530 = vadd.f32 %v314, %v529
        %531 = vmatmul.f32.gmra.mxu0 %v393
        %v532 = vpop.f32.mrf.mxu0
        %v533 = vadd.f32 %v314, %v532
        %534 = vmatmul.f32.gmra.mxu0 %v396
        %v535 = vpop.f32.mrf.mxu0
        %v536 = vadd.f32 %v314, %v535
        %537 = vmatmul.f32.gmra.mxu0 %v399
        %v538 = vpop.f32.mrf.mxu0
        %v539 = vadd.f32 %v314, %v538
        %540 = vmatmul.f32.gmra.mxu0 %v402
        %v541 = vpop.f32.mrf.mxu0
        %v542 = vadd.f32 %v314, %v541
        %543 = vmatmul.f32.gmra.mxu0 %v405
        %v544 = vpop.f32.mrf.mxu0
        %v545 = vadd.f32 %v314, %v544
        %546 = vmatmul.f32.gmra.mxu0 %v408
        %v547 = vpop.f32.mrf.mxu0
        %v548 = vadd.f32 %v314, %v547
        %549 = vmatmul.f32.gmra.mxu0 %v411
        %v550 = vpop.f32.mrf.mxu0
        %v551 = vadd.f32 %v314, %v550
        %552 = vmatmul.f32.gmra.mxu0 %v414
        %v553 = vpop.f32.mrf.mxu0
        %v554 = vadd.f32 %v314, %v553
        %555 = vmatmul.f32.gmra.mxu0 %v417
        %v556 = vpop.f32.mrf.mxu0
        %v557 = vadd.f32 %v314, %v556
        %558 = vmatmul.f32.gmra.mxu0 %v420
        %v559 = vpop.f32.mrf.mxu0
        %v560 = vadd.f32 %v314, %v559
        %561 = vmatmul.f32.gmra.mxu0 %v423
        %v562 = vpop.f32.mrf.mxu0
        %v563 = vadd.f32 %v314, %v562
        %564 = vmatmul.f32.gmra.mxu0 %v426
        %v565 = vpop.f32.mrf.mxu0
        %v566 = vadd.f32 %v314, %v565
        %567 = vmatmul.f32.gmra.mxu0 %v429
        %v568 = vpop.f32.mrf.mxu0
        %v569 = vadd.f32 %v314, %v568
        %570 = vmatmul.f32.gmra.mxu0 %v432
        %v571 = vpop.f32.mrf.mxu0
        %v572 = vadd.f32 %v314, %v571
        %573 = vmatmul.f32.gmra.mxu0 %v435
        %v574 = vpop.f32.mrf.mxu0
        %v575 = vadd.f32 %v314, %v574
        %576 = vmatmul.f32.gmra.mxu0 %v438
        %v577 = vpop.f32.mrf.mxu0
        %v578 = vadd.f32 %v314, %v577
        %579 = vdwg.mxu0
        %v580 = vld [vmem:[%s5] sm:$0xff]
        %v581 = vld [vmem:[%s5 + $0x8] sm:$0xff]
        %v582 = vld [vmem:[%s5 + $0x10] sm:$0xff]
        %v583 = vld [vmem:[%s5 + $0x18] sm:$0xff]
        %v584 = vld [vmem:[%s5 + $0x20] sm:$0xff]
        %v585 = vld [vmem:[%s5 + $0x28] sm:$0xff]
        %v586 = vld [vmem:[%s5 + $0x30] sm:$0xff]
        %v587 = vld [vmem:[%s5 + $0x38] sm:$0xff]
        %v588 = vld [vmem:[%s5 + $0x40] sm:$0xff]
        %v589 = vld [vmem:[%s5 + $0x48] sm:$0xff]
        %v590 = vld [vmem:[%s5 + $0x50] sm:$0xff]
        %v591 = vld [vmem:[%s5 + $0x58] sm:$0xff]
        %v592 = vld [vmem:[%s5 + $0x60] sm:$0xff]
        %v593 = vld [vmem:[%s5 + $0x68] sm:$0xff]
        %v594 = vld [vmem:[%s5 + $0x70] sm:$0xff]
        %v595 = vld [vmem:[%s5 + $0x78] sm:$0xff]
        %v596 = vld [vmem:[%s5 + $0x80] sm:$0xff]
        %v597 = vld [vmem:[%s5 + $0x88] sm:$0xff]
        %v598 = vld [vmem:[%s5 + $0x90] sm:$0xff]
        %v599 = vld [vmem:[%s5 + $0x98] sm:$0xff]
        %v600 = vld [vmem:[%s5 + $0xa0] sm:$0xff]
        %v601 = vld [vmem:[%s5 + $0xa8] sm:$0xff]
        %v602 = vld [vmem:[%s5 + $0xb0] sm:$0xff]
        %v603 = vld [vmem:[%s5 + $0xb8] sm:$0xff]
        %v604 = vld [vmem:[%s5 + $0xc0] sm:$0xff]
        %v605 = vld [vmem:[%s5 + $0xc8] sm:$0xff]
        %v606 = vld [vmem:[%s5 + $0xd0] sm:$0xff]
        %v607 = vld [vmem:[%s5 + $0xd8] sm:$0xff]
        %v608 = vld [vmem:[%s5 + $0xe0] sm:$0xff]
        %v609 = vld [vmem:[%s5 + $0xe8] sm:$0xff]
        %v610 = vld [vmem:[%s5 + $0xf0] sm:$0xff]
        %v611 = vld [vmem:[%s5 + $0xf8] sm:$0xff]
        %v612 = vld [vmem:[%s5 + $0x100] sm:$0xff]
        %v613 = vld [vmem:[%s5 + $0x108] sm:$0xff]
        %v614 = vld [vmem:[%s5 + $0x110] sm:$0xff]
        %v615 = vld [vmem:[%s5 + $0x118] sm:$0xff]
        %v616 = vld [vmem:[%s5 + $0x120] sm:$0xff]
        %v617 = vld [vmem:[%s5 + $0x128] sm:$0xff]
        %v618 = vld [vmem:[%s5 + $0x130] sm:$0xff]
        %v619 = vld [vmem:[%s5 + $0x138] sm:$0xff]
        %v620 = vld [vmem:[%s5 + $0x140] sm:$0xff]
        %622 = vset.pattern.permute.xlu0 0
        %623 = vperm.xlu0 %622, %v580
        %v624 = vpop.permute.xlu0 %623
        %627 = vset.pattern.permute.xlu0 0
        %628 = vperm.xlu0 %627, %v581
        %v629 = vpop.permute.xlu0 %628
        %632 = vset.pattern.permute.xlu0 0
        %633 = vperm.xlu0 %632, %v582
        %v634 = vpop.permute.xlu0 %633
        %637 = vset.pattern.permute.xlu0 0
        %638 = vperm.xlu0 %637, %v583
        %v639 = vpop.permute.xlu0 %638
        %642 = vset.pattern.permute.xlu0 0
        %643 = vperm.xlu0 %642, %v584
        %v644 = vpop.permute.xlu0 %643
        %647 = vset.pattern.permute.xlu0 0
        %648 = vperm.xlu0 %647, %v585
        %v649 = vpop.permute.xlu0 %648
        %652 = vset.pattern.permute.xlu0 0
        %653 = vperm.xlu0 %652, %v586
        %v654 = vpop.permute.xlu0 %653
        %657 = vset.pattern.permute.xlu0 0
        %658 = vperm.xlu0 %657, %v587
        %v659 = vpop.permute.xlu0 %658
        %662 = vset.pattern.permute.xlu0 0
        %663 = vperm.xlu0 %662, %v588
        %v664 = vpop.permute.xlu0 %663
        %667 = vset.pattern.permute.xlu0 0
        %668 = vperm.xlu0 %667, %v589
        %v669 = vpop.permute.xlu0 %668
        %672 = vset.pattern.permute.xlu0 0
        %673 = vperm.xlu0 %672, %v590
        %v674 = vpop.permute.xlu0 %673
        %677 = vset.pattern.permute.xlu0 0
        %678 = vperm.xlu0 %677, %v591
        %v679 = vpop.permute.xlu0 %678
        %682 = vset.pattern.permute.xlu0 0
        %683 = vperm.xlu0 %682, %v592
        %v684 = vpop.permute.xlu0 %683
        %687 = vset.pattern.permute.xlu0 0
        %688 = vperm.xlu0 %687, %v593
        %v689 = vpop.permute.xlu0 %688
        %692 = vset.pattern.permute.xlu0 0
        %693 = vperm.xlu0 %692, %v594
        %v694 = vpop.permute.xlu0 %693
        %697 = vset.pattern.permute.xlu0 0
        %698 = vperm.xlu0 %697, %v595
        %v699 = vpop.permute.xlu0 %698
        %702 = vset.pattern.permute.xlu0 0
        %703 = vperm.xlu0 %702, %v596
        %v704 = vpop.permute.xlu0 %703
        %707 = vset.pattern.permute.xlu0 0
        %708 = vperm.xlu0 %707, %v597
        %v709 = vpop.permute.xlu0 %708
        %712 = vset.pattern.permute.xlu0 0
        %713 = vperm.xlu0 %712, %v598
        %v714 = vpop.permute.xlu0 %713
        %717 = vset.pattern.permute.xlu0 0
        %718 = vperm.xlu0 %717, %v599
        %v719 = vpop.permute.xlu0 %718
        %722 = vset.pattern.permute.xlu0 0
        %723 = vperm.xlu0 %722, %v600
        %v724 = vpop.permute.xlu0 %723
        %727 = vset.pattern.permute.xlu0 0
        %728 = vperm.xlu0 %727, %v601
        %v729 = vpop.permute.xlu0 %728
        %732 = vset.pattern.permute.xlu0 0
        %733 = vperm.xlu0 %732, %v602
        %v734 = vpop.permute.xlu0 %733
        %737 = vset.pattern.permute.xlu0 0
        %738 = vperm.xlu0 %737, %v603
        %v739 = vpop.permute.xlu0 %738
        %742 = vset.pattern.permute.xlu0 0
        %743 = vperm.xlu0 %742, %v604
        %v744 = vpop.permute.xlu0 %743
        %747 = vset.pattern.permute.xlu0 0
        %748 = vperm.xlu0 %747, %v605
        %v749 = vpop.permute.xlu0 %748
        %752 = vset.pattern.permute.xlu0 0
        %753 = vperm.xlu0 %752, %v606
        %v754 = vpop.permute.xlu0 %753
        %757 = vset.pattern.permute.xlu0 0
        %758 = vperm.xlu0 %757, %v607
        %v759 = vpop.permute.xlu0 %758
        %762 = vset.pattern.permute.xlu0 0
        %763 = vperm.xlu0 %762, %v608
        %v764 = vpop.permute.xlu0 %763
        %767 = vset.pattern.permute.xlu0 0
        %768 = vperm.xlu0 %767, %v609
        %v769 = vpop.permute.xlu0 %768
        %772 = vset.pattern.permute.xlu0 0
        %773 = vperm.xlu0 %772, %v610
        %v774 = vpop.permute.xlu0 %773
        %777 = vset.pattern.permute.xlu0 0
        %778 = vperm.xlu0 %777, %v611
        %v779 = vpop.permute.xlu0 %778
        %782 = vset.pattern.permute.xlu0 0
        %783 = vperm.xlu0 %782, %v612
        %v784 = vpop.permute.xlu0 %783
        %787 = vset.pattern.permute.xlu0 0
        %788 = vperm.xlu0 %787, %v613
        %v789 = vpop.permute.xlu0 %788
        %792 = vset.pattern.permute.xlu0 0
        %793 = vperm.xlu0 %792, %v614
        %v794 = vpop.permute.xlu0 %793
        %797 = vset.pattern.permute.xlu0 0
        %798 = vperm.xlu0 %797, %v615
        %v799 = vpop.permute.xlu0 %798
        %802 = vset.pattern.permute.xlu0 0
        %803 = vperm.xlu0 %802, %v616
        %v804 = vpop.permute.xlu0 %803
        %807 = vset.pattern.permute.xlu0 0
        %808 = vperm.xlu0 %807, %v617
        %v809 = vpop.permute.xlu0 %808
        %812 = vset.pattern.permute.xlu0 0
        %813 = vperm.xlu0 %812, %v618
        %v814 = vpop.permute.xlu0 %813
        %817 = vset.pattern.permute.xlu0 0
        %818 = vperm.xlu0 %817, %v619
        %v819 = vpop.permute.xlu0 %818
        %822 = vset.pattern.permute.xlu0 0
        %823 = vperm.xlu0 %822, %v620
        %v824 = vpop.permute.xlu0 %823
        %v826 = vmul.f32 %v458, %v624
        %v827 = vmul.f32 %v461, %v629
        %v828 = vmul.f32 %v464, %v634
        %v829 = vmul.f32 %v467, %v639
        %v830 = vmul.f32 %v470, %v644
        %v831 = vmul.f32 %v473, %v649
        %v832 = vmul.f32 %v476, %v654
        %v833 = vmul.f32 %v479, %v659
        %v834 = vmul.f32 %v482, %v664
        %v835 = vmul.f32 %v485, %v669
        %v836 = vmul.f32 %v488, %v674
        %v837 = vmul.f32 %v491, %v679
        %v838 = vmul.f32 %v494, %v684
        %v839 = vmul.f32 %v497, %v689
        %v840 = vmul.f32 %v500, %v694
        %v841 = vmul.f32 %v503, %v699
        %v842 = vmul.f32 %v506, %v704
        %v843 = vmul.f32 %v509, %v709
        %v844 = vmul.f32 %v512, %v714
        %v845 = vmul.f32 %v515, %v719
        %v846 = vmul.f32 %v518, %v724
        %v847 = vmul.f32 %v521, %v729
        %v848 = vmul.f32 %v524, %v734
        %v849 = vmul.f32 %v527, %v739
        %v850 = vmul.f32 %v530, %v744
        %v851 = vmul.f32 %v533, %v749
        %v852 = vmul.f32 %v536, %v754
        %v853 = vmul.f32 %v539, %v759
        %v854 = vmul.f32 %v542, %v764
        %v855 = vmul.f32 %v545, %v769
        %v856 = vmul.f32 %v548, %v774
        %v857 = vmul.f32 %v551, %v779
        %v858 = vmul.f32 %v554, %v784
        %v859 = vmul.f32 %v557, %v789
        %v860 = vmul.f32 %v560, %v794
        %v861 = vmul.f32 %v563, %v799
        %v862 = vmul.f32 %v566, %v804
        %v863 = vmul.f32 %v569, %v809
        %v864 = vmul.f32 %v572, %v814
        %v865 = vmul.f32 %v575, %v819
        %v866 = vmul.f32 %v578, %v824
        %867 = vst [vmem:[#allocation2] sm:$0xff] 0.0
        %868 = vst [vmem:[#allocation2 + $0x8] sm:$0xff] 0.0
        %869 = vst [vmem:[#allocation2 + $0x10] sm:$0xff] 0.0
        %870 = vst [vmem:[#allocation2 + $0x18] sm:$0xff] %v826
        %871 = vst [vmem:[#allocation2 + $0x20] sm:$0xff] %v827
        %872 = vst [vmem:[#allocation2 + $0x28] sm:$0xff] %v828
        %873 = vst [vmem:[#allocation2 + $0x30] sm:$0xff] %v829
        %874 = vst [vmem:[#allocation2 + $0x38] sm:$0xff] %v830
        %875 = vst [vmem:[#allocation2 + $0x40] sm:$0xff] %v831
        %876 = vst [vmem:[#allocation2 + $0x48] sm:$0xff] %v832
        %877 = vst [vmem:[#allocation2 + $0x50] sm:$0xff] %v833
        %878 = vst [vmem:[#allocation2 + $0x58] sm:$0xff] %v834
        %879 = vst [vmem:[#allocation2 + $0x60] sm:$0xff] %v835
        %880 = vst [vmem:[#allocation2 + $0x68] sm:$0xff] %v836
        %881 = vst [vmem:[#allocation2 + $0x70] sm:$0xff] %v837
        %882 = vst [vmem:[#allocation2 + $0x78] sm:$0xff] %v838
        %883 = vst [vmem:[#allocation2 + $0x80] sm:$0xff] %v839
        %884 = vst [vmem:[#allocation2 + $0x88] sm:$0xff] %v840
        %885 = vst [vmem:[#allocation2 + $0x90] sm:$0xff] %v841
        %886 = vst [vmem:[#allocation2 + $0x98] sm:$0xff] %v842
        %887 = vst [vmem:[#allocation2 + $0xa0] sm:$0xff] %v843
        %888 = vst [vmem:[#allocation2 + $0xa8] sm:$0xff] %v844
        %889 = vst [vmem:[#allocation2 + $0xb0] sm:$0xff] %v845
        %890 = vst [vmem:[#allocation2 + $0xb8] sm:$0xff] %v846
        %891 = vst [vmem:[#allocation2 + $0xc0] sm:$0xff] %v847
        %892 = vst [vmem:[#allocation2 + $0xc8] sm:$0xff] %v848
        %893 = vst [vmem:[#allocation2 + $0xd0] sm:$0xff] %v849
        %894 = vst [vmem:[#allocation2 + $0xd8] sm:$0xff] %v850
        %895 = vst [vmem:[#allocation2 + $0xe0] sm:$0xff] %v851
        %896 = vst [vmem:[#allocation2 + $0xe8] sm:$0xff] %v852
        %897 = vst [vmem:[#allocation2 + $0xf0] sm:$0xff] %v853
        %898 = vst [vmem:[#allocation2 + $0xf8] sm:$0xff] %v854
        %899 = vst [vmem:[#allocation2 + $0x100] sm:$0xff] %v855
        %900 = vst [vmem:[#allocation2 + $0x108] sm:$0xff] %v856
        %901 = vst [vmem:[#allocation2 + $0x110] sm:$0xff] %v857
        %902 = vst [vmem:[#allocation2 + $0x118] sm:$0xff] %v858
        %903 = vst [vmem:[#allocation2 + $0x120] sm:$0xff] %v859
        %904 = vst [vmem:[#allocation2 + $0x128] sm:$0xff] %v860
        %905 = vst [vmem:[#allocation2 + $0x130] sm:$0xff] %v861
        %906 = vst [vmem:[#allocation2 + $0x138] sm:$0xff] %v862
        %907 = vst [vmem:[#allocation2 + $0x140] sm:$0xff] %v863
        %908 = vst [vmem:[#allocation2 + $0x148] sm:$0xff] %v864
        %909 = vst [vmem:[#allocation2 + $0x150] sm:$0xff] %v865
        %910 = vst [vmem:[#allocation2 + $0x158] sm:$0xff] %v866
        %911 = vst [vmem:[#allocation2 + $0x160] sm:$0xff] 0.0
        %912 = vst [vmem:[#allocation2 + $0x168] sm:$0xff] 0.0
        %913 = vst [vmem:[#allocation2 + $0x170] sm:$0xff] 0.0
        %v914 = vld [vmem:[#allocation2 + $0x5] sm:$0xff]
        %v915 = vld [vmem:[#allocation2 + $0xd] sm:$0xff]
        %v916 = vld [vmem:[#allocation2 + $0x15] sm:$0xff]
        %v917 = vld [vmem:[#allocation2 + $0x1d] sm:$0xff]
        %v918 = vld [vmem:[#allocation2 + $0x25] sm:$0xff]
        %v919 = vld [vmem:[#allocation2 + $0x2d] sm:$0xff]
        %v920 = vld [vmem:[#allocation2 + $0x35] sm:$0xff]
        %v921 = vld [vmem:[#allocation2 + $0x3d] sm:$0xff]
        %v922 = vld [vmem:[#allocation2 + $0x45] sm:$0xff]
        %v923 = vld [vmem:[#allocation2 + $0x4d] sm:$0xff]
        %v924 = vld [vmem:[#allocation2 + $0x55] sm:$0xff]
        %v925 = vld [vmem:[#allocation2 + $0x5d] sm:$0xff]
        %v926 = vld [vmem:[#allocation2 + $0x65] sm:$0xff]
        %v927 = vld [vmem:[#allocation2 + $0x6d] sm:$0xff]
        %v928 = vld [vmem:[#allocation2 + $0x75] sm:$0xff]
        %v929 = vld [vmem:[#allocation2 + $0x7d] sm:$0xff]
        %v930 = vld [vmem:[#allocation2 + $0x85] sm:$0xff]
        %v931 = vld [vmem:[#allocation2 + $0x8d] sm:$0xff]
        %v932 = vld [vmem:[#allocation2 + $0x95] sm:$0xff]
        %v933 = vld [vmem:[#allocation2 + $0x9d] sm:$0xff]
        %v934 = vld [vmem:[#allocation2 + $0xa5] sm:$0xff]
        %v935 = vld [vmem:[#allocation2 + $0xad] sm:$0xff]
        %v936 = vld [vmem:[#allocation2 + $0xb5] sm:$0xff]
        %v937 = vld [vmem:[#allocation2 + $0xbd] sm:$0xff]
        %v938 = vld [vmem:[#allocation2 + $0xc5] sm:$0xff]
        %v939 = vld [vmem:[#allocation2 + $0xcd] sm:$0xff]
        %v940 = vld [vmem:[#allocation2 + $0xd5] sm:$0xff]
        %v941 = vld [vmem:[#allocation2 + $0xdd] sm:$0xff]
        %v942 = vld [vmem:[#allocation2 + $0xe5] sm:$0xff]
        %v943 = vld [vmem:[#allocation2 + $0xed] sm:$0xff]
        %v944 = vld [vmem:[#allocation2 + $0xf5] sm:$0xff]
        %v945 = vld [vmem:[#allocation2 + $0xfd] sm:$0xff]
        %v946 = vld [vmem:[#allocation2 + $0x105] sm:$0xff]
        %v947 = vld [vmem:[#allocation2 + $0x10d] sm:$0xff]
        %v948 = vld [vmem:[#allocation2 + $0x115] sm:$0xff]
        %v949 = vld [vmem:[#allocation2 + $0x11d] sm:$0xff]
        %v950 = vld [vmem:[#allocation2 + $0x125] sm:$0xff]
        %v951 = vld [vmem:[#allocation2 + $0x12d] sm:$0xff]
        %v952 = vld [vmem:[#allocation2 + $0x135] sm:$0xff]
        %v953 = vld [vmem:[#allocation2 + $0x13d] sm:$0xff]
        %v954 = vld [vmem:[#allocation2 + $0x145] sm:$0xff]
        %v955 = vld [vmem:[#allocation3] sm:$0xff]
        %v956 = vld [vmem:[#allocation3 + $0x8] sm:$0xff]
        %v957 = vld [vmem:[#allocation3 + $0x10] sm:$0xff]
        %v958 = vld [vmem:[#allocation3 + $0x18] sm:$0xff]
        %v959 = vld [vmem:[#allocation3 + $0x20] sm:$0xff]
        %v960 = vld [vmem:[#allocation3 + $0x28] sm:$0xff]
        %v961 = vld [vmem:[#allocation3 + $0x30] sm:$0xff]
        %v962 = vld [vmem:[#allocation3 + $0x38] sm:$0xff]
        %v963 = vld [vmem:[#allocation3 + $0x40] sm:$0xff]
        %v964 = vld [vmem:[#allocation3 + $0x48] sm:$0xff]
        %v965 = vld [vmem:[#allocation3 + $0x50] sm:$0xff]
        %v966 = vld [vmem:[#allocation3 + $0x58] sm:$0xff]
        %v967 = vld [vmem:[#allocation3 + $0x60] sm:$0xff]
        %v968 = vld [vmem:[#allocation3 + $0x68] sm:$0xff]
        %v969 = vld [vmem:[#allocation3 + $0x70] sm:$0xff]
        %v970 = vld [vmem:[#allocation3 + $0x78] sm:$0xff]
        %v971 = vld [vmem:[#allocation2 + $0x6] sm:$0xff]
        %v972 = vld [vmem:[#allocation2 + $0xe] sm:$0xff]
        %v973 = vld [vmem:[#allocation2 + $0x16] sm:$0xff]
        %v974 = vld [vmem:[#allocation2 + $0x1e] sm:$0xff]
        %v975 = vld [vmem:[#allocation2 + $0x26] sm:$0xff]
        %v976 = vld [vmem:[#allocation2 + $0x2e] sm:$0xff]
        %v977 = vld [vmem:[#allocation2 + $0x36] sm:$0xff]
        %v978 = vld [vmem:[#allocation2 + $0x3e] sm:$0xff]
        %v979 = vld [vmem:[#allocation2 + $0x46] sm:$0xff]
        %v980 = vld [vmem:[#allocation2 + $0x4e] sm:$0xff]
        %v981 = vld [vmem:[#allocation2 + $0x56] sm:$0xff]
        %v982 = vld [vmem:[#allocation2 + $0x5e] sm:$0xff]
        %v983 = vld [vmem:[#allocation2 + $0x66] sm:$0xff]
        %v984 = vld [vmem:[#allocation2 + $0x6e] sm:$0xff]
        %v985 = vld [vmem:[#allocation2 + $0x76] sm:$0xff]
        %v986 = vld [vmem:[#allocation2 + $0x7e] sm:$0xff]
        %v987 = vld [vmem:[#allocation2 + $0x86] sm:$0xff]
        %v988 = vld [vmem:[#allocation2 + $0x8e] sm:$0xff]
        %v989 = vld [vmem:[#allocation2 + $0x96] sm:$0xff]
        %v990 = vld [vmem:[#allocation2 + $0x9e] sm:$0xff]
        %v991 = vld [vmem:[#allocation2 + $0xa6] sm:$0xff]
        %v992 = vld [vmem:[#allocation2 + $0xae] sm:$0xff]
        %v993 = vld [vmem:[#allocation2 + $0xb6] sm:$0xff]
        %v994 = vld [vmem:[#allocation2 + $0xbe] sm:$0xff]
        %v995 = vld [vmem:[#allocation2 + $0xc6] sm:$0xff]
        %v996 = vld [vmem:[#allocation2 + $0xce] sm:$0xff]
        %v997 = vld [vmem:[#allocation2 + $0xd6] sm:$0xff]
        %v998 = vld [vmem:[#allocation2 + $0xde] sm:$0xff]
        %v999 = vld [vmem:[#allocation2 + $0xe6] sm:$0xff]
        %v1000 = vld [vmem:[#allocation2 + $0xee] sm:$0xff]
        %v1001 = vld [vmem:[#allocation2 + $0xf6] sm:$0xff]
        %v1002 = vld [vmem:[#allocation2 + $0xfe] sm:$0xff]
        %v1003 = vld [vmem:[#allocation2 + $0x106] sm:$0xff]
        %v1004 = vld [vmem:[#allocation2 + $0x10e] sm:$0xff]
        %v1005 = vld [vmem:[#allocation2 + $0x116] sm:$0xff]
        %v1006 = vld [vmem:[#allocation2 + $0x11e] sm:$0xff]
        %v1007 = vld [vmem:[#allocation2 + $0x126] sm:$0xff]
        %v1008 = vld [vmem:[#allocation2 + $0x12e] sm:$0xff]
        %v1009 = vld [vmem:[#allocation2 + $0x136] sm:$0xff]
        %v1010 = vld [vmem:[#allocation2 + $0x13e] sm:$0xff]
        %v1011 = vld [vmem:[#allocation2 + $0x146] sm:$0xff]
        %s1012 = scalar_lea.vmem [#allocation3], 128
        %v1013 = vld [vmem:[%s1012] sm:$0xff]
        %v1014 = vld [vmem:[%s1012 + $0x8] sm:$0xff]
        %v1015 = vld [vmem:[%s1012 + $0x10] sm:$0xff]
        %v1016 = vld [vmem:[%s1012 + $0x18] sm:$0xff]
        %v1017 = vld [vmem:[%s1012 + $0x20] sm:$0xff]
        %v1018 = vld [vmem:[%s1012 + $0x28] sm:$0xff]
        %v1019 = vld [vmem:[%s1012 + $0x30] sm:$0xff]
        %v1020 = vld [vmem:[%s1012 + $0x38] sm:$0xff]
        %v1021 = vld [vmem:[%s1012 + $0x40] sm:$0xff]
        %v1022 = vld [vmem:[%s1012 + $0x48] sm:$0xff]
        %v1023 = vld [vmem:[%s1012 + $0x50] sm:$0xff]
        %v1024 = vld [vmem:[%s1012 + $0x58] sm:$0xff]
        %v1025 = vld [vmem:[%s1012 + $0x60] sm:$0xff]
        %v1026 = vld [vmem:[%s1012 + $0x68] sm:$0xff]
        %v1027 = vld [vmem:[%s1012 + $0x70] sm:$0xff]
        %v1028 = vld [vmem:[%s1012 + $0x78] sm:$0xff]
        %1029 = vmatpush.msra.mxu0 %v1028
        %1030 = vmatpush.msra.mxu0 %v1027
        %1031 = vmatpush.msra.mxu0 %v1026
        %1032 = vmatpush.msra.mxu0 %v1025
        %1033 = vmatpush.msra.mxu0 %v1024
        %1034 = vmatpush.msra.mxu0 %v1023
        %1035 = vmatpush.msra.mxu0 %v1022
        %1036 = vmatpush.msra.mxu0 %v1021
        %1037 = vmatpush.msra.mxu0 %v1020
        %1038 = vmatpush.msra.mxu0 %v1019
        %1039 = vmatpush.msra.mxu0 %v1018
        %1040 = vmatpush.msra.mxu0 %v1017
        %1041 = vmatpush.msra.mxu0 %v1016
        %1042 = vmatpush.msra.mxu0 %v1015
        %1043 = vmatpush.msra.mxu0 %v1014
        %1044 = vmatpush.msra.mxu0 %v1013
        %1045 = vmatmul.f32.gmra.mxu0 %v971
        %v1046 = vpop.f32.mrf.mxu0
        %v1047 = vadd.f32 0.0, %v1046
        %1048 = vmatmul.f32.gmra.mxu0 %v972
        %v1049 = vpop.f32.mrf.mxu0
        %v1050 = vadd.f32 0.0, %v1049
        %1051 = vmatmul.f32.gmra.mxu0 %v973
        %v1052 = vpop.f32.mrf.mxu0
        %v1053 = vadd.f32 0.0, %v1052
        %1054 = vmatmul.f32.gmra.mxu0 %v974
        %v1055 = vpop.f32.mrf.mxu0
        %v1056 = vadd.f32 0.0, %v1055
        %1057 = vmatmul.f32.gmra.mxu0 %v975
        %v1058 = vpop.f32.mrf.mxu0
        %v1059 = vadd.f32 0.0, %v1058
        %1060 = vmatmul.f32.gmra.mxu0 %v976
        %v1061 = vpop.f32.mrf.mxu0
        %v1062 = vadd.f32 0.0, %v1061
        %1063 = vmatmul.f32.gmra.mxu0 %v977
        %v1064 = vpop.f32.mrf.mxu0
        %v1065 = vadd.f32 0.0, %v1064
        %1066 = vmatmul.f32.gmra.mxu0 %v978
        %v1067 = vpop.f32.mrf.mxu0
        %v1068 = vadd.f32 0.0, %v1067
        %1069 = vmatmul.f32.gmra.mxu0 %v979
        %v1070 = vpop.f32.mrf.mxu0
        %v1071 = vadd.f32 0.0, %v1070
        %1072 = vmatmul.f32.gmra.mxu0 %v980
        %v1073 = vpop.f32.mrf.mxu0
        %v1074 = vadd.f32 0.0, %v1073
        %1075 = vmatmul.f32.gmra.mxu0 %v981
        %v1076 = vpop.f32.mrf.mxu0
        %v1077 = vadd.f32 0.0, %v1076
        %1078 = vmatmul.f32.gmra.mxu0 %v982
        %v1079 = vpop.f32.mrf.mxu0
        %v1080 = vadd.f32 0.0, %v1079
        %1081 = vmatmul.f32.gmra.mxu0 %v983
        %v1082 = vpop.f32.mrf.mxu0
        %v1083 = vadd.f32 0.0, %v1082
        %1084 = vmatmul.f32.gmra.mxu0 %v984
        %v1085 = vpop.f32.mrf.mxu0
        %v1086 = vadd.f32 0.0, %v1085
        %1087 = vmatmul.f32.gmra.mxu0 %v985
        %v1088 = vpop.f32.mrf.mxu0
        %v1089 = vadd.f32 0.0, %v1088
        %1090 = vmatmul.f32.gmra.mxu0 %v986
        %v1091 = vpop.f32.mrf.mxu0
        %v1092 = vadd.f32 0.0, %v1091
        %1093 = vmatmul.f32.gmra.mxu0 %v987
        %v1094 = vpop.f32.mrf.mxu0
        %v1095 = vadd.f32 0.0, %v1094
        %1096 = vmatmul.f32.gmra.mxu0 %v988
        %v1097 = vpop.f32.mrf.mxu0
        %v1098 = vadd.f32 0.0, %v1097
        %1099 = vmatmul.f32.gmra.mxu0 %v989
        %v1100 = vpop.f32.mrf.mxu0
        %v1101 = vadd.f32 0.0, %v1100
        %1102 = vmatmul.f32.gmra.mxu0 %v990
        %v1103 = vpop.f32.mrf.mxu0
        %v1104 = vadd.f32 0.0, %v1103
        %1105 = vmatmul.f32.gmra.mxu0 %v991
        %v1106 = vpop.f32.mrf.mxu0
        %v1107 = vadd.f32 0.0, %v1106
        %1108 = vmatmul.f32.gmra.mxu0 %v992
        %v1109 = vpop.f32.mrf.mxu0
        %v1110 = vadd.f32 0.0, %v1109
        %1111 = vmatmul.f32.gmra.mxu0 %v993
        %v1112 = vpop.f32.mrf.mxu0
        %v1113 = vadd.f32 0.0, %v1112
        %1114 = vmatmul.f32.gmra.mxu0 %v994
        %v1115 = vpop.f32.mrf.mxu0
        %v1116 = vadd.f32 0.0, %v1115
        %1117 = vmatmul.f32.gmra.mxu0 %v995
        %v1118 = vpop.f32.mrf.mxu0
        %v1119 = vadd.f32 0.0, %v1118
        %1120 = vmatmul.f32.gmra.mxu0 %v996
        %v1121 = vpop.f32.mrf.mxu0
        %v1122 = vadd.f32 0.0, %v1121
        %1123 = vmatmul.f32.gmra.mxu0 %v997
        %v1124 = vpop.f32.mrf.mxu0
        %v1125 = vadd.f32 0.0, %v1124
        %1126 = vmatmul.f32.gmra.mxu0 %v998
        %v1127 = vpop.f32.mrf.mxu0
        %v1128 = vadd.f32 0.0, %v1127
        %1129 = vmatmul.f32.gmra.mxu0 %v999
        %v1130 = vpop.f32.mrf.mxu0
        %v1131 = vadd.f32 0.0, %v1130
        %1132 = vmatmul.f32.gmra.mxu0 %v1000
        %v1133 = vpop.f32.mrf.mxu0
        %v1134 = vadd.f32 0.0, %v1133
        %1135 = vmatmul.f32.gmra.mxu0 %v1001
        %v1136 = vpop.f32.mrf.mxu0
        %v1137 = vadd.f32 0.0, %v1136
        %1138 = vmatmul.f32.gmra.mxu0 %v1002
        %v1139 = vpop.f32.mrf.mxu0
        %v1140 = vadd.f32 0.0, %v1139
        %1141 = vmatmul.f32.gmra.mxu0 %v1003
        %v1142 = vpop.f32.mrf.mxu0
        %v1143 = vadd.f32 0.0, %v1142
        %1144 = vmatmul.f32.gmra.mxu0 %v1004
        %v1145 = vpop.f32.mrf.mxu0
        %v1146 = vadd.f32 0.0, %v1145
        %1147 = vmatmul.f32.gmra.mxu0 %v1005
        %v1148 = vpop.f32.mrf.mxu0
        %v1149 = vadd.f32 0.0, %v1148
        %1150 = vmatmul.f32.gmra.mxu0 %v1006
        %v1151 = vpop.f32.mrf.mxu0
        %v1152 = vadd.f32 0.0, %v1151
        %1153 = vmatmul.f32.gmra.mxu0 %v1007
        %v1154 = vpop.f32.mrf.mxu0
        %v1155 = vadd.f32 0.0, %v1154
        %1156 = vmatmul.f32.gmra.mxu0 %v1008
        %v1157 = vpop.f32.mrf.mxu0
        %v1158 = vadd.f32 0.0, %v1157
        %1159 = vmatmul.f32.gmra.mxu0 %v1009
        %v1160 = vpop.f32.mrf.mxu0
        %v1161 = vadd.f32 0.0, %v1160
        %1162 = vmatmul.f32.gmra.mxu0 %v1010
        %v1163 = vpop.f32.mrf.mxu0
        %v1164 = vadd.f32 0.0, %v1163
        %1165 = vmatmul.f32.gmra.mxu0 %v1011
        %v1166 = vpop.f32.mrf.mxu0
        %v1167 = vadd.f32 0.0, %v1166
        %1168 = vdwg.mxu0
        %1169 = vmatpush.msra.mxu0 %v970
        %1170 = vmatpush.msra.mxu0 %v969
        %1171 = vmatpush.msra.mxu0 %v968
        %1172 = vmatpush.msra.mxu0 %v967
        %1173 = vmatpush.msra.mxu0 %v966
        %1174 = vmatpush.msra.mxu0 %v965
        %1175 = vmatpush.msra.mxu0 %v964
        %1176 = vmatpush.msra.mxu0 %v963
        %1177 = vmatpush.msra.mxu0 %v962
        %1178 = vmatpush.msra.mxu0 %v961
        %1179 = vmatpush.msra.mxu0 %v960
        %1180 = vmatpush.msra.mxu0 %v959
        %1181 = vmatpush.msra.mxu0 %v958
        %1182 = vmatpush.msra.mxu0 %v957
        %1183 = vmatpush.msra.mxu0 %v956
        %1184 = vmatpush.msra.mxu0 %v955
        %1185 = vmatmul.f32.gmra.mxu0 %v914
        %v1186 = vpop.f32.mrf.mxu0
        %v1187 = vadd.f32 %v1047, %v1186
        %1188 = vmatmul.f32.gmra.mxu0 %v915
        %v1189 = vpop.f32.mrf.mxu0
        %v1190 = vadd.f32 %v1050, %v1189
        %1191 = vmatmul.f32.gmra.mxu0 %v916
        %v1192 = vpop.f32.mrf.mxu0
        %v1193 = vadd.f32 %v1053, %v1192
        %1194 = vmatmul.f32.gmra.mxu0 %v917
        %v1195 = vpop.f32.mrf.mxu0
        %v1196 = vadd.f32 %v1056, %v1195
        %1197 = vmatmul.f32.gmra.mxu0 %v918
        %v1198 = vpop.f32.mrf.mxu0
        %v1199 = vadd.f32 %v1059, %v1198
        %1200 = vmatmul.f32.gmra.mxu0 %v919
        %v1201 = vpop.f32.mrf.mxu0
        %v1202 = vadd.f32 %v1062, %v1201
        %1203 = vmatmul.f32.gmra.mxu0 %v920
        %v1204 = vpop.f32.mrf.mxu0
        %v1205 = vadd.f32 %v1065, %v1204
        %1206 = vmatmul.f32.gmra.mxu0 %v921
        %v1207 = vpop.f32.mrf.mxu0
        %v1208 = vadd.f32 %v1068, %v1207
        %1209 = vmatmul.f32.gmra.mxu0 %v922
        %v1210 = vpop.f32.mrf.mxu0
        %v1211 = vadd.f32 %v1071, %v1210
        %1212 = vmatmul.f32.gmra.mxu0 %v923
        %v1213 = vpop.f32.mrf.mxu0
        %v1214 = vadd.f32 %v1074, %v1213
        %1215 = vmatmul.f32.gmra.mxu0 %v924
        %v1216 = vpop.f32.mrf.mxu0
        %v1217 = vadd.f32 %v1077, %v1216
        %1218 = vmatmul.f32.gmra.mxu0 %v925
        %v1219 = vpop.f32.mrf.mxu0
        %v1220 = vadd.f32 %v1080, %v1219
        %1221 = vmatmul.f32.gmra.mxu0 %v926
        %v1222 = vpop.f32.mrf.mxu0
        %v1223 = vadd.f32 %v1083, %v1222
        %1224 = vmatmul.f32.gmra.mxu0 %v927
        %v1225 = vpop.f32.mrf.mxu0
        %v1226 = vadd.f32 %v1086, %v1225
        %1227 = vmatmul.f32.gmra.mxu0 %v928
        %v1228 = vpop.f32.mrf.mxu0
        %v1229 = vadd.f32 %v1089, %v1228
        %1230 = vmatmul.f32.gmra.mxu0 %v929
        %v1231 = vpop.f32.mrf.mxu0
        %v1232 = vadd.f32 %v1092, %v1231
        %1233 = vmatmul.f32.gmra.mxu0 %v930
        %v1234 = vpop.f32.mrf.mxu0
        %v1235 = vadd.f32 %v1095, %v1234
        %1236 = vmatmul.f32.gmra.mxu0 %v931
        %v1237 = vpop.f32.mrf.mxu0
        %v1238 = vadd.f32 %v1098, %v1237
        %1239 = vmatmul.f32.gmra.mxu0 %v932
        %v1240 = vpop.f32.mrf.mxu0
        %v1241 = vadd.f32 %v1101, %v1240
        %1242 = vmatmul.f32.gmra.mxu0 %v933
        %v1243 = vpop.f32.mrf.mxu0
        %v1244 = vadd.f32 %v1104, %v1243
        %1245 = vmatmul.f32.gmra.mxu0 %v934
        %v1246 = vpop.f32.mrf.mxu0
        %v1247 = vadd.f32 %v1107, %v1246
        %1248 = vmatmul.f32.gmra.mxu0 %v935
        %v1249 = vpop.f32.mrf.mxu0
        %v1250 = vadd.f32 %v1110, %v1249
        %1251 = vmatmul.f32.gmra.mxu0 %v936
        %v1252 = vpop.f32.mrf.mxu0
        %v1253 = vadd.f32 %v1113, %v1252
        %1254 = vmatmul.f32.gmra.mxu0 %v937
        %v1255 = vpop.f32.mrf.mxu0
        %v1256 = vadd.f32 %v1116, %v1255
        %1257 = vmatmul.f32.gmra.mxu0 %v938
        %v1258 = vpop.f32.mrf.mxu0
        %v1259 = vadd.f32 %v1119, %v1258
        %1260 = vmatmul.f32.gmra.mxu0 %v939
        %v1261 = vpop.f32.mrf.mxu0
        %v1262 = vadd.f32 %v1122, %v1261
        %1263 = vmatmul.f32.gmra.mxu0 %v940
        %v1264 = vpop.f32.mrf.mxu0
        %v1265 = vadd.f32 %v1125, %v1264
        %1266 = vmatmul.f32.gmra.mxu0 %v941
        %v1267 = vpop.f32.mrf.mxu0
        %v1268 = vadd.f32 %v1128, %v1267
        %1269 = vmatmul.f32.gmra.mxu0 %v942
        %v1270 = vpop.f32.mrf.mxu0
        %v1271 = vadd.f32 %v1131, %v1270
        %1272 = vmatmul.f32.gmra.mxu0 %v943
        %v1273 = vpop.f32.mrf.mxu0
        %v1274 = vadd.f32 %v1134, %v1273
        %1275 = vmatmul.f32.gmra.mxu0 %v944
        %v1276 = vpop.f32.mrf.mxu0
        %v1277 = vadd.f32 %v1137, %v1276
        %1278 = vmatmul.f32.gmra.mxu0 %v945
        %v1279 = vpop.f32.mrf.mxu0
        %v1280 = vadd.f32 %v1140, %v1279
        %1281 = vmatmul.f32.gmra.mxu0 %v946
        %v1282 = vpop.f32.mrf.mxu0
        %v1283 = vadd.f32 %v1143, %v1282
        %1284 = vmatmul.f32.gmra.mxu0 %v947
        %v1285 = vpop.f32.mrf.mxu0
        %v1286 = vadd.f32 %v1146, %v1285
        %1287 = vmatmul.f32.gmra.mxu0 %v948
        %v1288 = vpop.f32.mrf.mxu0
        %v1289 = vadd.f32 %v1149, %v1288
        %1290 = vmatmul.f32.gmra.mxu0 %v949
        %v1291 = vpop.f32.mrf.mxu0
        %v1292 = vadd.f32 %v1152, %v1291
        %1293 = vmatmul.f32.gmra.mxu0 %v950
        %v1294 = vpop.f32.mrf.mxu0
        %v1295 = vadd.f32 %v1155, %v1294
        %1296 = vmatmul.f32.gmra.mxu0 %v951
        %v1297 = vpop.f32.mrf.mxu0
        %v1298 = vadd.f32 %v1158, %v1297
        %1299 = vmatmul.f32.gmra.mxu0 %v952
        %v1300 = vpop.f32.mrf.mxu0
        %v1301 = vadd.f32 %v1161, %v1300
        %1302 = vmatmul.f32.gmra.mxu0 %v953
        %v1303 = vpop.f32.mrf.mxu0
        %v1304 = vadd.f32 %v1164, %v1303
        %1305 = vmatmul.f32.gmra.mxu0 %v954
        %v1306 = vpop.f32.mrf.mxu0
        %v1307 = vadd.f32 %v1167, %v1306
        %1308 = vdwg.mxu0
        %v1309 = vld [vmem:[#allocation2 + $0x7] sm:$0xff]
        %v1310 = vld [vmem:[#allocation2 + $0xf] sm:$0xff]
        %v1311 = vld [vmem:[#allocation2 + $0x17] sm:$0xff]
        %v1312 = vld [vmem:[#allocation2 + $0x1f] sm:$0xff]
        %v1313 = vld [vmem:[#allocation2 + $0x27] sm:$0xff]
        %v1314 = vld [vmem:[#allocation2 + $0x2f] sm:$0xff]
        %v1315 = vld [vmem:[#allocation2 + $0x37] sm:$0xff]
        %v1316 = vld [vmem:[#allocation2 + $0x3f] sm:$0xff]
        %v1317 = vld [vmem:[#allocation2 + $0x47] sm:$0xff]
        %v1318 = vld [vmem:[#allocation2 + $0x4f] sm:$0xff]
        %v1319 = vld [vmem:[#allocation2 + $0x57] sm:$0xff]
        %v1320 = vld [vmem:[#allocation2 + $0x5f] sm:$0xff]
        %v1321 = vld [vmem:[#allocation2 + $0x67] sm:$0xff]
        %v1322 = vld [vmem:[#allocation2 + $0x6f] sm:$0xff]
        %v1323 = vld [vmem:[#allocation2 + $0x77] sm:$0xff]
        %v1324 = vld [vmem:[#allocation2 + $0x7f] sm:$0xff]
        %v1325 = vld [vmem:[#allocation2 + $0x87] sm:$0xff]
        %v1326 = vld [vmem:[#allocation2 + $0x8f] sm:$0xff]
        %v1327 = vld [vmem:[#allocation2 + $0x97] sm:$0xff]
        %v1328 = vld [vmem:[#allocation2 + $0x9f] sm:$0xff]
        %v1329 = vld [vmem:[#allocation2 + $0xa7] sm:$0xff]
        %v1330 = vld [vmem:[#allocation2 + $0xaf] sm:$0xff]
        %v1331 = vld [vmem:[#allocation2 + $0xb7] sm:$0xff]
        %v1332 = vld [vmem:[#allocation2 + $0xbf] sm:$0xff]
        %v1333 = vld [vmem:[#allocation2 + $0xc7] sm:$0xff]
        %v1334 = vld [vmem:[#allocation2 + $0xcf] sm:$0xff]
        %v1335 = vld [vmem:[#allocation2 + $0xd7] sm:$0xff]
        %v1336 = vld [vmem:[#allocation2 + $0xdf] sm:$0xff]
        %v1337 = vld [vmem:[#allocation2 + $0xe7] sm:$0xff]
        %v1338 = vld [vmem:[#allocation2 + $0xef] sm:$0xff]
        %v1339 = vld [vmem:[#allocation2 + $0xf7] sm:$0xff]
        %v1340 = vld [vmem:[#allocation2 + $0xff] sm:$0xff]
        %v1341 = vld [vmem:[#allocation2 + $0x107] sm:$0xff]
        %v1342 = vld [vmem:[#allocation2 + $0x10f] sm:$0xff]
        %v1343 = vld [vmem:[#allocation2 + $0x117] sm:$0xff]
        %v1344 = vld [vmem:[#allocation2 + $0x11f] sm:$0xff]
        %v1345 = vld [vmem:[#allocation2 + $0x127] sm:$0xff]
        %v1346 = vld [vmem:[#allocation2 + $0x12f] sm:$0xff]
        %v1347 = vld [vmem:[#allocation2 + $0x137] sm:$0xff]
        %v1348 = vld [vmem:[#allocation2 + $0x13f] sm:$0xff]
        %v1349 = vld [vmem:[#allocation2 + $0x147] sm:$0xff]
        %s1350 = scalar_lea.vmem [#allocation3], 256
        %v1351 = vld [vmem:[%s1350] sm:$0xff]
        %v1352 = vld [vmem:[%s1350 + $0x8] sm:$0xff]
        %v1353 = vld [vmem:[%s1350 + $0x10] sm:$0xff]
        %v1354 = vld [vmem:[%s1350 + $0x18] sm:$0xff]
        %v1355 = vld [vmem:[%s1350 + $0x20] sm:$0xff]
        %v1356 = vld [vmem:[%s1350 + $0x28] sm:$0xff]
        %v1357 = vld [vmem:[%s1350 + $0x30] sm:$0xff]
        %v1358 = vld [vmem:[%s1350 + $0x38] sm:$0xff]
        %v1359 = vld [vmem:[%s1350 + $0x40] sm:$0xff]
        %v1360 = vld [vmem:[%s1350 + $0x48] sm:$0xff]
        %v1361 = vld [vmem:[%s1350 + $0x50] sm:$0xff]
        %v1362 = vld [vmem:[%s1350 + $0x58] sm:$0xff]
        %v1363 = vld [vmem:[%s1350 + $0x60] sm:$0xff]
        %v1364 = vld [vmem:[%s1350 + $0x68] sm:$0xff]
        %v1365 = vld [vmem:[%s1350 + $0x70] sm:$0xff]
        %v1366 = vld [vmem:[%s1350 + $0x78] sm:$0xff]
        %1367 = vmatpush.msra.mxu0 %v1366
        %1368 = vmatpush.msra.mxu0 %v1365
        %1369 = vmatpush.msra.mxu0 %v1364
        %1370 = vmatpush.msra.mxu0 %v1363
        %1371 = vmatpush.msra.mxu0 %v1362
        %1372 = vmatpush.msra.mxu0 %v1361
        %1373 = vmatpush.msra.mxu0 %v1360
        %1374 = vmatpush.msra.mxu0 %v1359
        %1375 = vmatpush.msra.mxu0 %v1358
        %1376 = vmatpush.msra.mxu0 %v1357
        %1377 = vmatpush.msra.mxu0 %v1356
        %1378 = vmatpush.msra.mxu0 %v1355
        %1379 = vmatpush.msra.mxu0 %v1354
        %1380 = vmatpush.msra.mxu0 %v1353
        %1381 = vmatpush.msra.mxu0 %v1352
        %1382 = vmatpush.msra.mxu0 %v1351
        %1383 = vmatmul.f32.gmra.mxu0 %v1309
        %v1384 = vpop.f32.mrf.mxu0
        %v1385 = vadd.f32 0.0, %v1384
        %1386 = vmatmul.f32.gmra.mxu0 %v1310
        %v1387 = vpop.f32.mrf.mxu0
        %v1388 = vadd.f32 0.0, %v1387
        %1389 = vmatmul.f32.gmra.mxu0 %v1311
        %v1390 = vpop.f32.mrf.mxu0
        %v1391 = vadd.f32 0.0, %v1390
        %1392 = vmatmul.f32.gmra.mxu0 %v1312
        %v1393 = vpop.f32.mrf.mxu0
        %v1394 = vadd.f32 0.0, %v1393
        %1395 = vmatmul.f32.gmra.mxu0 %v1313
        %v1396 = vpop.f32.mrf.mxu0
        %v1397 = vadd.f32 0.0, %v1396
        %1398 = vmatmul.f32.gmra.mxu0 %v1314
        %v1399 = vpop.f32.mrf.mxu0
        %v1400 = vadd.f32 0.0, %v1399
        %1401 = vmatmul.f32.gmra.mxu0 %v1315
        %v1402 = vpop.f32.mrf.mxu0
        %v1403 = vadd.f32 0.0, %v1402
        %1404 = vmatmul.f32.gmra.mxu0 %v1316
        %v1405 = vpop.f32.mrf.mxu0
        %v1406 = vadd.f32 0.0, %v1405
        %1407 = vmatmul.f32.gmra.mxu0 %v1317
        %v1408 = vpop.f32.mrf.mxu0
        %v1409 = vadd.f32 0.0, %v1408
        %1410 = vmatmul.f32.gmra.mxu0 %v1318
        %v1411 = vpop.f32.mrf.mxu0
        %v1412 = vadd.f32 0.0, %v1411
        %1413 = vmatmul.f32.gmra.mxu0 %v1319
        %v1414 = vpop.f32.mrf.mxu0
        %v1415 = vadd.f32 0.0, %v1414
        %1416 = vmatmul.f32.gmra.mxu0 %v1320
        %v1417 = vpop.f32.mrf.mxu0
        %v1418 = vadd.f32 0.0, %v1417
        %1419 = vmatmul.f32.gmra.mxu0 %v1321
        %v1420 = vpop.f32.mrf.mxu0
        %v1421 = vadd.f32 0.0, %v1420
        %1422 = vmatmul.f32.gmra.mxu0 %v1322
        %v1423 = vpop.f32.mrf.mxu0
        %v1424 = vadd.f32 0.0, %v1423
        %1425 = vmatmul.f32.gmra.mxu0 %v1323
        %v1426 = vpop.f32.mrf.mxu0
        %v1427 = vadd.f32 0.0, %v1426
        %1428 = vmatmul.f32.gmra.mxu0 %v1324
        %v1429 = vpop.f32.mrf.mxu0
        %v1430 = vadd.f32 0.0, %v1429
        %1431 = vmatmul.f32.gmra.mxu0 %v1325
        %v1432 = vpop.f32.mrf.mxu0
        %v1433 = vadd.f32 0.0, %v1432
        %1434 = vmatmul.f32.gmra.mxu0 %v1326
        %v1435 = vpop.f32.mrf.mxu0
        %v1436 = vadd.f32 0.0, %v1435
        %1437 = vmatmul.f32.gmra.mxu0 %v1327
        %v1438 = vpop.f32.mrf.mxu0
        %v1439 = vadd.f32 0.0, %v1438
        %1440 = vmatmul.f32.gmra.mxu0 %v1328
        %v1441 = vpop.f32.mrf.mxu0
        %v1442 = vadd.f32 0.0, %v1441
        %1443 = vmatmul.f32.gmra.mxu0 %v1329
        %v1444 = vpop.f32.mrf.mxu0
        %v1445 = vadd.f32 0.0, %v1444
        %1446 = vmatmul.f32.gmra.mxu0 %v1330
        %v1447 = vpop.f32.mrf.mxu0
        %v1448 = vadd.f32 0.0, %v1447
        %1449 = vmatmul.f32.gmra.mxu0 %v1331
        %v1450 = vpop.f32.mrf.mxu0
        %v1451 = vadd.f32 0.0, %v1450
        %1452 = vmatmul.f32.gmra.mxu0 %v1332
        %v1453 = vpop.f32.mrf.mxu0
        %v1454 = vadd.f32 0.0, %v1453
        %1455 = vmatmul.f32.gmra.mxu0 %v1333
        %v1456 = vpop.f32.mrf.mxu0
        %v1457 = vadd.f32 0.0, %v1456
        %1458 = vmatmul.f32.gmra.mxu0 %v1334
        %v1459 = vpop.f32.mrf.mxu0
        %v1460 = vadd.f32 0.0, %v1459
        %1461 = vmatmul.f32.gmra.mxu0 %v1335
        %v1462 = vpop.f32.mrf.mxu0
        %v1463 = vadd.f32 0.0, %v1462
        %1464 = vmatmul.f32.gmra.mxu0 %v1336
        %v1465 = vpop.f32.mrf.mxu0
        %v1466 = vadd.f32 0.0, %v1465
        %1467 = vmatmul.f32.gmra.mxu0 %v1337
        %v1468 = vpop.f32.mrf.mxu0
        %v1469 = vadd.f32 0.0, %v1468
        %1470 = vmatmul.f32.gmra.mxu0 %v1338
        %v1471 = vpop.f32.mrf.mxu0
        %v1472 = vadd.f32 0.0, %v1471
        %1473 = vmatmul.f32.gmra.mxu0 %v1339
        %v1474 = vpop.f32.mrf.mxu0
        %v1475 = vadd.f32 0.0, %v1474
        %1476 = vmatmul.f32.gmra.mxu0 %v1340
        %v1477 = vpop.f32.mrf.mxu0
        %v1478 = vadd.f32 0.0, %v1477
        %1479 = vmatmul.f32.gmra.mxu0 %v1341
        %v1480 = vpop.f32.mrf.mxu0
        %v1481 = vadd.f32 0.0, %v1480
        %1482 = vmatmul.f32.gmra.mxu0 %v1342
        %v1483 = vpop.f32.mrf.mxu0
        %v1484 = vadd.f32 0.0, %v1483
        %1485 = vmatmul.f32.gmra.mxu0 %v1343
        %v1486 = vpop.f32.mrf.mxu0
        %v1487 = vadd.f32 0.0, %v1486
        %1488 = vmatmul.f32.gmra.mxu0 %v1344
        %v1489 = vpop.f32.mrf.mxu0
        %v1490 = vadd.f32 0.0, %v1489
        %1491 = vmatmul.f32.gmra.mxu0 %v1345
        %v1492 = vpop.f32.mrf.mxu0
        %v1493 = vadd.f32 0.0, %v1492
        %1494 = vmatmul.f32.gmra.mxu0 %v1346
        %v1495 = vpop.f32.mrf.mxu0
        %v1496 = vadd.f32 0.0, %v1495
        %1497 = vmatmul.f32.gmra.mxu0 %v1347
        %v1498 = vpop.f32.mrf.mxu0
        %v1499 = vadd.f32 0.0, %v1498
        %1500 = vmatmul.f32.gmra.mxu0 %v1348
        %v1501 = vpop.f32.mrf.mxu0
        %v1502 = vadd.f32 0.0, %v1501
        %1503 = vmatmul.f32.gmra.mxu0 %v1349
        %v1504 = vpop.f32.mrf.mxu0
        %v1505 = vadd.f32 0.0, %v1504
        %1506 = vdwg.mxu0
        %v1507 = vadd.f32 %v1187, %v1385
        %v1508 = vadd.f32 %v1190, %v1388
        %v1509 = vadd.f32 %v1193, %v1391
        %v1510 = vadd.f32 %v1196, %v1394
        %v1511 = vadd.f32 %v1199, %v1397
        %v1512 = vadd.f32 %v1202, %v1400
        %v1513 = vadd.f32 %v1205, %v1403
        %v1514 = vadd.f32 %v1208, %v1406
        %v1515 = vadd.f32 %v1211, %v1409
        %v1516 = vadd.f32 %v1214, %v1412
        %v1517 = vadd.f32 %v1217, %v1415
        %v1518 = vadd.f32 %v1220, %v1418
        %v1519 = vadd.f32 %v1223, %v1421
        %v1520 = vadd.f32 %v1226, %v1424
        %v1521 = vadd.f32 %v1229, %v1427
        %v1522 = vadd.f32 %v1232, %v1430
        %v1523 = vadd.f32 %v1235, %v1433
        %v1524 = vadd.f32 %v1238, %v1436
        %v1525 = vadd.f32 %v1241, %v1439
        %v1526 = vadd.f32 %v1244, %v1442
        %v1527 = vadd.f32 %v1247, %v1445
        %v1528 = vadd.f32 %v1250, %v1448
        %v1529 = vadd.f32 %v1253, %v1451
        %v1530 = vadd.f32 %v1256, %v1454
        %v1531 = vadd.f32 %v1259, %v1457
        %v1532 = vadd.f32 %v1262, %v1460
        %v1533 = vadd.f32 %v1265, %v1463
        %v1534 = vadd.f32 %v1268, %v1466
        %v1535 = vadd.f32 %v1271, %v1469
        %v1536 = vadd.f32 %v1274, %v1472
        %v1537 = vadd.f32 %v1277, %v1475
        %v1538 = vadd.f32 %v1280, %v1478
        %v1539 = vadd.f32 %v1283, %v1481
        %v1540 = vadd.f32 %v1286, %v1484
        %v1541 = vadd.f32 %v1289, %v1487
        %v1542 = vadd.f32 %v1292, %v1490
        %v1543 = vadd.f32 %v1295, %v1493
        %v1544 = vadd.f32 %v1298, %v1496
        %v1545 = vadd.f32 %v1301, %v1499
        %v1546 = vadd.f32 %v1304, %v1502
        %v1547 = vadd.f32 %v1307, %v1505
        %v1548 = vld [vmem:[#allocation2 + $0x17] sm:$0xff]
        %v1549 = vld [vmem:[#allocation2 + $0x1f] sm:$0xff]
        %v1550 = vld [vmem:[#allocation2 + $0x27] sm:$0xff]
        %v1551 = vld [vmem:[#allocation2 + $0x2f] sm:$0xff]
        %v1552 = vld [vmem:[#allocation2 + $0x37] sm:$0xff]
        %v1553 = vld [vmem:[#allocation2 + $0x3f] sm:$0xff]
        %v1554 = vld [vmem:[#allocation2 + $0x47] sm:$0xff]
        %v1555 = vld [vmem:[#allocation2 + $0x4f] sm:$0xff]
        %v1556 = vld [vmem:[#allocation2 + $0x57] sm:$0xff]
        %v1557 = vld [vmem:[#allocation2 + $0x5f] sm:$0xff]
        %v1558 = vld [vmem:[#allocation2 + $0x67] sm:$0xff]
        %v1559 = vld [vmem:[#allocation2 + $0x6f] sm:$0xff]
        %v1560 = vld [vmem:[#allocation2 + $0x77] sm:$0xff]
        %v1561 = vld [vmem:[#allocation2 + $0x7f] sm:$0xff]
        %v1562 = vld [vmem:[#allocation2 + $0x87] sm:$0xff]
        %v1563 = vld [vmem:[#allocation2 + $0x8f] sm:$0xff]
        %v1564 = vld [vmem:[#allocation2 + $0x97] sm:$0xff]
        %v1565 = vld [vmem:[#allocation2 + $0x9f] sm:$0xff]
        %v1566 = vld [vmem:[#allocation2 + $0xa7] sm:$0xff]
        %v1567 = vld [vmem:[#allocation2 + $0xaf] sm:$0xff]
        %v1568 = vld [vmem:[#allocation2 + $0xb7] sm:$0xff]
        %v1569 = vld [vmem:[#allocation2 + $0xbf] sm:$0xff]
        %v1570 = vld [vmem:[#allocation2 + $0xc7] sm:$0xff]
        %v1571 = vld [vmem:[#allocation2 + $0xcf] sm:$0xff]
        %v1572 = vld [vmem:[#allocation2 + $0xd7] sm:$0xff]
        %v1573 = vld [vmem:[#allocation2 + $0xdf] sm:$0xff]
        %v1574 = vld [vmem:[#allocation2 + $0xe7] sm:$0xff]
        %v1575 = vld [vmem:[#allocation2 + $0xef] sm:$0xff]
        %v1576 = vld [vmem:[#allocation2 + $0xf7] sm:$0xff]
        %v1577 = vld [vmem:[#allocation2 + $0xff] sm:$0xff]
        %v1578 = vld [vmem:[#allocation2 + $0x107] sm:$0xff]
        %v1579 = vld [vmem:[#allocation2 + $0x10f] sm:$0xff]
        %v1580 = vld [vmem:[#allocation2 + $0x117] sm:$0xff]
        %v1581 = vld [vmem:[#allocation2 + $0x11f] sm:$0xff]
        %v1582 = vld [vmem:[#allocation2 + $0x127] sm:$0xff]
        %v1583 = vld [vmem:[#allocation2 + $0x12f] sm:$0xff]
        %v1584 = vld [vmem:[#allocation2 + $0x137] sm:$0xff]
        %v1585 = vld [vmem:[#allocation2 + $0x13f] sm:$0xff]
        %v1586 = vld [vmem:[#allocation2 + $0x147] sm:$0xff]
        %v1587 = vld [vmem:[#allocation2 + $0x14f] sm:$0xff]
        %v1588 = vld [vmem:[#allocation2 + $0x157] sm:$0xff]
        %s1589 = scalar_lea.vmem [#allocation3], 384
        %v1590 = vld [vmem:[%s1589] sm:$0xff]
        %v1591 = vld [vmem:[%s1589 + $0x8] sm:$0xff]
        %v1592 = vld [vmem:[%s1589 + $0x10] sm:$0xff]
        %v1593 = vld [vmem:[%s1589 + $0x18] sm:$0xff]
        %v1594 = vld [vmem:[%s1589 + $0x20] sm:$0xff]
        %v1595 = vld [vmem:[%s1589 + $0x28] sm:$0xff]
        %v1596 = vld [vmem:[%s1589 + $0x30] sm:$0xff]
        %v1597 = vld [vmem:[%s1589 + $0x38] sm:$0xff]
        %v1598 = vld [vmem:[%s1589 + $0x40] sm:$0xff]
        %v1599 = vld [vmem:[%s1589 + $0x48] sm:$0xff]
        %v1600 = vld [vmem:[%s1589 + $0x50] sm:$0xff]
        %v1601 = vld [vmem:[%s1589 + $0x58] sm:$0xff]
        %v1602 = vld [vmem:[%s1589 + $0x60] sm:$0xff]
        %v1603 = vld [vmem:[%s1589 + $0x68] sm:$0xff]
        %v1604 = vld [vmem:[%s1589 + $0x70] sm:$0xff]
        %v1605 = vld [vmem:[%s1589 + $0x78] sm:$0xff]
        %1606 = vmatpush.msra.mxu0 %v1605
        %1607 = vmatpush.msra.mxu0 %v1604
        %1608 = vmatpush.msra.mxu0 %v1603
        %1609 = vmatpush.msra.mxu0 %v1602
        %1610 = vmatpush.msra.mxu0 %v1601
        %1611 = vmatpush.msra.mxu0 %v1600
        %1612 = vmatpush.msra.mxu0 %v1599
        %1613 = vmatpush.msra.mxu0 %v1598
        %1614 = vmatpush.msra.mxu0 %v1597
        %1615 = vmatpush.msra.mxu0 %v1596
        %1616 = vmatpush.msra.mxu0 %v1595
        %1617 = vmatpush.msra.mxu0 %v1594
        %1618 = vmatpush.msra.mxu0 %v1593
        %1619 = vmatpush.msra.mxu0 %v1592
        %1620 = vmatpush.msra.mxu0 %v1591
        %1621 = vmatpush.msra.mxu0 %v1590
        %1622 = vmatmul.f32.gmra.mxu0 %v1548
        %v1623 = vpop.f32.mrf.mxu0
        %v1624 = vadd.f32 0.0, %v1623
        %1625 = vmatmul.f32.gmra.mxu0 %v1549
        %v1626 = vpop.f32.mrf.mxu0
        %v1627 = vadd.f32 0.0, %v1626
        %1628 = vmatmul.f32.gmra.mxu0 %v1550
        %v1629 = vpop.f32.mrf.mxu0
        %v1630 = vadd.f32 0.0, %v1629
        %1631 = vmatmul.f32.gmra.mxu0 %v1551
        %v1632 = vpop.f32.mrf.mxu0
        %v1633 = vadd.f32 0.0, %v1632
        %1634 = vmatmul.f32.gmra.mxu0 %v1552
        %v1635 = vpop.f32.mrf.mxu0
        %v1636 = vadd.f32 0.0, %v1635
        %1637 = vmatmul.f32.gmra.mxu0 %v1553
        %v1638 = vpop.f32.mrf.mxu0
        %v1639 = vadd.f32 0.0, %v1638
        %1640 = vmatmul.f32.gmra.mxu0 %v1554
        %v1641 = vpop.f32.mrf.mxu0
        %v1642 = vadd.f32 0.0, %v1641
        %1643 = vmatmul.f32.gmra.mxu0 %v1555
        %v1644 = vpop.f32.mrf.mxu0
        %v1645 = vadd.f32 0.0, %v1644
        %1646 = vmatmul.f32.gmra.mxu0 %v1556
        %v1647 = vpop.f32.mrf.mxu0
        %v1648 = vadd.f32 0.0, %v1647
        %1649 = vmatmul.f32.gmra.mxu0 %v1557
        %v1650 = vpop.f32.mrf.mxu0
        %v1651 = vadd.f32 0.0, %v1650
        %1652 = vmatmul.f32.gmra.mxu0 %v1558
        %v1653 = vpop.f32.mrf.mxu0
        %v1654 = vadd.f32 0.0, %v1653
        %1655 = vmatmul.f32.gmra.mxu0 %v1559
        %v1656 = vpop.f32.mrf.mxu0
        %v1657 = vadd.f32 0.0, %v1656
        %1658 = vmatmul.f32.gmra.mxu0 %v1560
        %v1659 = vpop.f32.mrf.mxu0
        %v1660 = vadd.f32 0.0, %v1659
        %1661 = vmatmul.f32.gmra.mxu0 %v1561
        %v1662 = vpop.f32.mrf.mxu0
        %v1663 = vadd.f32 0.0, %v1662
        %1664 = vmatmul.f32.gmra.mxu0 %v1562
        %v1665 = vpop.f32.mrf.mxu0
        %v1666 = vadd.f32 0.0, %v1665
        %1667 = vmatmul.f32.gmra.mxu0 %v1563
        %v1668 = vpop.f32.mrf.mxu0
        %v1669 = vadd.f32 0.0, %v1668
        %1670 = vmatmul.f32.gmra.mxu0 %v1564
        %v1671 = vpop.f32.mrf.mxu0
        %v1672 = vadd.f32 0.0, %v1671
        %1673 = vmatmul.f32.gmra.mxu0 %v1565
        %v1674 = vpop.f32.mrf.mxu0
        %v1675 = vadd.f32 0.0, %v1674
        %1676 = vmatmul.f32.gmra.mxu0 %v1566
        %v1677 = vpop.f32.mrf.mxu0
        %v1678 = vadd.f32 0.0, %v1677
        %1679 = vmatmul.f32.gmra.mxu0 %v1567
        %v1680 = vpop.f32.mrf.mxu0
        %v1681 = vadd.f32 0.0, %v1680
        %1682 = vmatmul.f32.gmra.mxu0 %v1568
        %v1683 = vpop.f32.mrf.mxu0
        %v1684 = vadd.f32 0.0, %v1683
        %1685 = vmatmul.f32.gmra.mxu0 %v1569
        %v1686 = vpop.f32.mrf.mxu0
        %v1687 = vadd.f32 0.0, %v1686
        %1688 = vmatmul.f32.gmra.mxu0 %v1570
        %v1689 = vpop.f32.mrf.mxu0
        %v1690 = vadd.f32 0.0, %v1689
        %1691 = vmatmul.f32.gmra.mxu0 %v1571
        %v1692 = vpop.f32.mrf.mxu0
        %v1693 = vadd.f32 0.0, %v1692
        %1694 = vmatmul.f32.gmra.mxu0 %v1572
        %v1695 = vpop.f32.mrf.mxu0
        %v1696 = vadd.f32 0.0, %v1695
        %1697 = vmatmul.f32.gmra.mxu0 %v1573
        %v1698 = vpop.f32.mrf.mxu0
        %v1699 = vadd.f32 0.0, %v1698
        %1700 = vmatmul.f32.gmra.mxu0 %v1574
        %v1701 = vpop.f32.mrf.mxu0
        %v1702 = vadd.f32 0.0, %v1701
        %1703 = vmatmul.f32.gmra.mxu0 %v1575
        %v1704 = vpop.f32.mrf.mxu0
        %v1705 = vadd.f32 0.0, %v1704
        %1706 = vmatmul.f32.gmra.mxu0 %v1576
        %v1707 = vpop.f32.mrf.mxu0
        %v1708 = vadd.f32 0.0, %v1707
        %1709 = vmatmul.f32.gmra.mxu0 %v1577
        %v1710 = vpop.f32.mrf.mxu0
        %v1711 = vadd.f32 0.0, %v1710
        %1712 = vmatmul.f32.gmra.mxu0 %v1578
        %v1713 = vpop.f32.mrf.mxu0
        %v1714 = vadd.f32 0.0, %v1713
        %1715 = vmatmul.f32.gmra.mxu0 %v1579
        %v1716 = vpop.f32.mrf.mxu0
        %v1717 = vadd.f32 0.0, %v1716
        %1718 = vmatmul.f32.gmra.mxu0 %v1580
        %v1719 = vpop.f32.mrf.mxu0
        %v1720 = vadd.f32 0.0, %v1719
        %1721 = vmatmul.f32.gmra.mxu0 %v1581
        %v1722 = vpop.f32.mrf.mxu0
        %v1723 = vadd.f32 0.0, %v1722
        %1724 = vmatmul.f32.gmra.mxu0 %v1582
        %v1725 = vpop.f32.mrf.mxu0
        %v1726 = vadd.f32 0.0, %v1725
        %1727 = vmatmul.f32.gmra.mxu0 %v1583
        %v1728 = vpop.f32.mrf.mxu0
        %v1729 = vadd.f32 0.0, %v1728
        %1730 = vmatmul.f32.gmra.mxu0 %v1584
        %v1731 = vpop.f32.mrf.mxu0
        %v1732 = vadd.f32 0.0, %v1731
        %1733 = vmatmul.f32.gmra.mxu0 %v1585
        %v1734 = vpop.f32.mrf.mxu0
        %v1735 = vadd.f32 0.0, %v1734
        %1736 = vmatmul.f32.gmra.mxu0 %v1586
        %v1737 = vpop.f32.mrf.mxu0
        %v1738 = vadd.f32 0.0, %v1737
        %1739 = vmatmul.f32.gmra.mxu0 %v1587
        %v1740 = vpop.f32.mrf.mxu0
        %v1741 = vadd.f32 0.0, %v1740
        %1742 = vmatmul.f32.gmra.mxu0 %v1588
        %v1743 = vpop.f32.mrf.mxu0
        %v1744 = vadd.f32 0.0, %v1743
        %1745 = vdwg.mxu0
        %v1746 = vadd.f32 %v1507, %v1624
        %v1747 = vadd.f32 %v1508, %v1627
        %v1748 = vadd.f32 %v1509, %v1630
        %v1749 = vadd.f32 %v1510, %v1633
        %v1750 = vadd.f32 %v1511, %v1636
        %v1751 = vadd.f32 %v1512, %v1639
        %v1752 = vadd.f32 %v1513, %v1642
        %v1753 = vadd.f32 %v1514, %v1645
        %v1754 = vadd.f32 %v1515, %v1648
        %v1755 = vadd.f32 %v1516, %v1651
        %v1756 = vadd.f32 %v1517, %v1654
        %v1757 = vadd.f32 %v1518, %v1657
        %v1758 = vadd.f32 %v1519, %v1660
        %v1759 = vadd.f32 %v1520, %v1663
        %v1760 = vadd.f32 %v1521, %v1666
        %v1761 = vadd.f32 %v1522, %v1669
        %v1762 = vadd.f32 %v1523, %v1672
        %v1763 = vadd.f32 %v1524, %v1675
        %v1764 = vadd.f32 %v1525, %v1678
        %v1765 = vadd.f32 %v1526, %v1681
        %v1766 = vadd.f32 %v1527, %v1684
        %v1767 = vadd.f32 %v1528, %v1687
        %v1768 = vadd.f32 %v1529, %v1690
        %v1769 = vadd.f32 %v1530, %v1693
        %v1770 = vadd.f32 %v1531, %v1696
        %v1771 = vadd.f32 %v1532, %v1699
        %v1772 = vadd.f32 %v1533, %v1702
        %v1773 = vadd.f32 %v1534, %v1705
        %v1774 = vadd.f32 %v1535, %v1708
        %v1775 = vadd.f32 %v1536, %v1711
        %v1776 = vadd.f32 %v1537, %v1714
        %v1777 = vadd.f32 %v1538, %v1717
        %v1778 = vadd.f32 %v1539, %v1720
        %v1779 = vadd.f32 %v1540, %v1723
        %v1780 = vadd.f32 %v1541, %v1726
        %v1781 = vadd.f32 %v1542, %v1729
        %v1782 = vadd.f32 %v1543, %v1732
        %v1783 = vadd.f32 %v1544, %v1735
        %v1784 = vadd.f32 %v1545, %v1738
        %v1785 = vadd.f32 %v1546, %v1741
        %v1786 = vadd.f32 %v1547, %v1744
        %v1787 = vld [vmem:[#allocation2 + $0x18] sm:$0xff]
        %v1788 = vld [vmem:[#allocation2 + $0x20] sm:$0xff]
        %v1789 = vld [vmem:[#allocation2 + $0x28] sm:$0xff]
        %v1790 = vld [vmem:[#allocation2 + $0x30] sm:$0xff]
        %v1791 = vld [vmem:[#allocation2 + $0x38] sm:$0xff]
        %v1792 = vld [vmem:[#allocation2 + $0x40] sm:$0xff]
        %v1793 = vld [vmem:[#allocation2 + $0x48] sm:$0xff]
        %v1794 = vld [vmem:[#allocation2 + $0x50] sm:$0xff]
        %v1795 = vld [vmem:[#allocation2 + $0x58] sm:$0xff]
        %v1796 = vld [vmem:[#allocation2 + $0x60] sm:$0xff]
        %v1797 = vld [vmem:[#allocation2 + $0x68] sm:$0xff]
        %v1798 = vld [vmem:[#allocation2 + $0x70] sm:$0xff]
        %v1799 = vld [vmem:[#allocation2 + $0x78] sm:$0xff]
        %v1800 = vld [vmem:[#allocation2 + $0x80] sm:$0xff]
        %v1801 = vld [vmem:[#allocation2 + $0x88] sm:$0xff]
        %v1802 = vld [vmem:[#allocation2 + $0x90] sm:$0xff]
        %v1803 = vld [vmem:[#allocation2 + $0x98] sm:$0xff]
        %v1804 = vld [vmem:[#allocation2 + $0xa0] sm:$0xff]
        %v1805 = vld [vmem:[#allocation2 + $0xa8] sm:$0xff]
        %v1806 = vld [vmem:[#allocation2 + $0xb0] sm:$0xff]
        %v1807 = vld [vmem:[#allocation2 + $0xb8] sm:$0xff]
        %v1808 = vld [vmem:[#allocation2 + $0xc0] sm:$0xff]
        %v1809 = vld [vmem:[#allocation2 + $0xc8] sm:$0xff]
        %v1810 = vld [vmem:[#allocation2 + $0xd0] sm:$0xff]
        %v1811 = vld [vmem:[#allocation2 + $0xd8] sm:$0xff]
        %v1812 = vld [vmem:[#allocation2 + $0xe0] sm:$0xff]
        %v1813 = vld [vmem:[#allocation2 + $0xe8] sm:$0xff]
        %v1814 = vld [vmem:[#allocation2 + $0xf0] sm:$0xff]
        %v1815 = vld [vmem:[#allocation2 + $0xf8] sm:$0xff]
        %v1816 = vld [vmem:[#allocation2 + $0x100] sm:$0xff]
        %v1817 = vld [vmem:[#allocation2 + $0x108] sm:$0xff]
        %v1818 = vld [vmem:[#allocation2 + $0x110] sm:$0xff]
        %v1819 = vld [vmem:[#allocation2 + $0x118] sm:$0xff]
        %v1820 = vld [vmem:[#allocation2 + $0x120] sm:$0xff]
        %v1821 = vld [vmem:[#allocation2 + $0x128] sm:$0xff]
        %v1822 = vld [vmem:[#allocation2 + $0x130] sm:$0xff]
        %v1823 = vld [vmem:[#allocation2 + $0x138] sm:$0xff]
        %v1824 = vld [vmem:[#allocation2 + $0x140] sm:$0xff]
        %v1825 = vld [vmem:[#allocation2 + $0x148] sm:$0xff]
        %v1826 = vld [vmem:[#allocation2 + $0x150] sm:$0xff]
        %v1827 = vld [vmem:[#allocation2 + $0x158] sm:$0xff]
        %s1828 = scalar_lea.vmem [#allocation3], 512
        %v1829 = vld [vmem:[%s1828] sm:$0xff]
        %v1830 = vld [vmem:[%s1828 + $0x8] sm:$0xff]
        %v1831 = vld [vmem:[%s1828 + $0x10] sm:$0xff]
        %v1832 = vld [vmem:[%s1828 + $0x18] sm:$0xff]
        %v1833 = vld [vmem:[%s1828 + $0x20] sm:$0xff]
        %v1834 = vld [vmem:[%s1828 + $0x28] sm:$0xff]
        %v1835 = vld [vmem:[%s1828 + $0x30] sm:$0xff]
        %v1836 = vld [vmem:[%s1828 + $0x38] sm:$0xff]
        %v1837 = vld [vmem:[%s1828 + $0x40] sm:$0xff]
        %v1838 = vld [vmem:[%s1828 + $0x48] sm:$0xff]
        %v1839 = vld [vmem:[%s1828 + $0x50] sm:$0xff]
        %v1840 = vld [vmem:[%s1828 + $0x58] sm:$0xff]
        %v1841 = vld [vmem:[%s1828 + $0x60] sm:$0xff]
        %v1842 = vld [vmem:[%s1828 + $0x68] sm:$0xff]
        %v1843 = vld [vmem:[%s1828 + $0x70] sm:$0xff]
        %v1844 = vld [vmem:[%s1828 + $0x78] sm:$0xff]
        %1845 = vmatpush.msra.mxu0 %v1844
        %1846 = vmatpush.msra.mxu0 %v1843
        %1847 = vmatpush.msra.mxu0 %v1842
        %1848 = vmatpush.msra.mxu0 %v1841
        %1849 = vmatpush.msra.mxu0 %v1840
        %1850 = vmatpush.msra.mxu0 %v1839
        %1851 = vmatpush.msra.mxu0 %v1838
        %1852 = vmatpush.msra.mxu0 %v1837
        %1853 = vmatpush.msra.mxu0 %v1836
        %1854 = vmatpush.msra.mxu0 %v1835
        %1855 = vmatpush.msra.mxu0 %v1834
        %1856 = vmatpush.msra.mxu0 %v1833
        %1857 = vmatpush.msra.mxu0 %v1832
        %1858 = vmatpush.msra.mxu0 %v1831
        %1859 = vmatpush.msra.mxu0 %v1830
        %1860 = vmatpush.msra.mxu0 %v1829
        %1861 = vmatmul.f32.gmra.mxu0 %v1787
        %v1862 = vpop.f32.mrf.mxu0
        %v1863 = vadd.f32 0.0, %v1862
        %1864 = vmatmul.f32.gmra.mxu0 %v1788
        %v1865 = vpop.f32.mrf.mxu0
        %v1866 = vadd.f32 0.0, %v1865
        %1867 = vmatmul.f32.gmra.mxu0 %v1789
        %v1868 = vpop.f32.mrf.mxu0
        %v1869 = vadd.f32 0.0, %v1868
        %1870 = vmatmul.f32.gmra.mxu0 %v1790
        %v1871 = vpop.f32.mrf.mxu0
        %v1872 = vadd.f32 0.0, %v1871
        %1873 = vmatmul.f32.gmra.mxu0 %v1791
        %v1874 = vpop.f32.mrf.mxu0
        %v1875 = vadd.f32 0.0, %v1874
        %1876 = vmatmul.f32.gmra.mxu0 %v1792
        %v1877 = vpop.f32.mrf.mxu0
        %v1878 = vadd.f32 0.0, %v1877
        %1879 = vmatmul.f32.gmra.mxu0 %v1793
        %v1880 = vpop.f32.mrf.mxu0
        %v1881 = vadd.f32 0.0, %v1880
        %1882 = vmatmul.f32.gmra.mxu0 %v1794
        %v1883 = vpop.f32.mrf.mxu0
        %v1884 = vadd.f32 0.0, %v1883
        %1885 = vmatmul.f32.gmra.mxu0 %v1795
        %v1886 = vpop.f32.mrf.mxu0
        %v1887 = vadd.f32 0.0, %v1886
        %1888 = vmatmul.f32.gmra.mxu0 %v1796
        %v1889 = vpop.f32.mrf.mxu0
        %v1890 = vadd.f32 0.0, %v1889
        %1891 = vmatmul.f32.gmra.mxu0 %v1797
        %v1892 = vpop.f32.mrf.mxu0
        %v1893 = vadd.f32 0.0, %v1892
        %1894 = vmatmul.f32.gmra.mxu0 %v1798
        %v1895 = vpop.f32.mrf.mxu0
        %v1896 = vadd.f32 0.0, %v1895
        %1897 = vmatmul.f32.gmra.mxu0 %v1799
        %v1898 = vpop.f32.mrf.mxu0
        %v1899 = vadd.f32 0.0, %v1898
        %1900 = vmatmul.f32.gmra.mxu0 %v1800
        %v1901 = vpop.f32.mrf.mxu0
        %v1902 = vadd.f32 0.0, %v1901
        %1903 = vmatmul.f32.gmra.mxu0 %v1801
        %v1904 = vpop.f32.mrf.mxu0
        %v1905 = vadd.f32 0.0, %v1904
        %1906 = vmatmul.f32.gmra.mxu0 %v1802
        %v1907 = vpop.f32.mrf.mxu0
        %v1908 = vadd.f32 0.0, %v1907
        %1909 = vmatmul.f32.gmra.mxu0 %v1803
        %v1910 = vpop.f32.mrf.mxu0
        %v1911 = vadd.f32 0.0, %v1910
        %1912 = vmatmul.f32.gmra.mxu0 %v1804
        %v1913 = vpop.f32.mrf.mxu0
        %v1914 = vadd.f32 0.0, %v1913
        %1915 = vmatmul.f32.gmra.mxu0 %v1805
        %v1916 = vpop.f32.mrf.mxu0
        %v1917 = vadd.f32 0.0, %v1916
        %1918 = vmatmul.f32.gmra.mxu0 %v1806
        %v1919 = vpop.f32.mrf.mxu0
        %v1920 = vadd.f32 0.0, %v1919
        %1921 = vmatmul.f32.gmra.mxu0 %v1807
        %v1922 = vpop.f32.mrf.mxu0
        %v1923 = vadd.f32 0.0, %v1922
        %1924 = vmatmul.f32.gmra.mxu0 %v1808
        %v1925 = vpop.f32.mrf.mxu0
        %v1926 = vadd.f32 0.0, %v1925
        %1927 = vmatmul.f32.gmra.mxu0 %v1809
        %v1928 = vpop.f32.mrf.mxu0
        %v1929 = vadd.f32 0.0, %v1928
        %1930 = vmatmul.f32.gmra.mxu0 %v1810
        %v1931 = vpop.f32.mrf.mxu0
        %v1932 = vadd.f32 0.0, %v1931
        %1933 = vmatmul.f32.gmra.mxu0 %v1811
        %v1934 = vpop.f32.mrf.mxu0
        %v1935 = vadd.f32 0.0, %v1934
        %1936 = vmatmul.f32.gmra.mxu0 %v1812
        %v1937 = vpop.f32.mrf.mxu0
        %v1938 = vadd.f32 0.0, %v1937
        %1939 = vmatmul.f32.gmra.mxu0 %v1813
        %v1940 = vpop.f32.mrf.mxu0
        %v1941 = vadd.f32 0.0, %v1940
        %1942 = vmatmul.f32.gmra.mxu0 %v1814
        %v1943 = vpop.f32.mrf.mxu0
        %v1944 = vadd.f32 0.0, %v1943
        %1945 = vmatmul.f32.gmra.mxu0 %v1815
        %v1946 = vpop.f32.mrf.mxu0
        %v1947 = vadd.f32 0.0, %v1946
        %1948 = vmatmul.f32.gmra.mxu0 %v1816
        %v1949 = vpop.f32.mrf.mxu0
        %v1950 = vadd.f32 0.0, %v1949
        %1951 = vmatmul.f32.gmra.mxu0 %v1817
        %v1952 = vpop.f32.mrf.mxu0
        %v1953 = vadd.f32 0.0, %v1952
        %1954 = vmatmul.f32.gmra.mxu0 %v1818
        %v1955 = vpop.f32.mrf.mxu0
        %v1956 = vadd.f32 0.0, %v1955
        %1957 = vmatmul.f32.gmra.mxu0 %v1819
        %v1958 = vpop.f32.mrf.mxu0
        %v1959 = vadd.f32 0.0, %v1958
        %1960 = vmatmul.f32.gmra.mxu0 %v1820
        %v1961 = vpop.f32.mrf.mxu0
        %v1962 = vadd.f32 0.0, %v1961
        %1963 = vmatmul.f32.gmra.mxu0 %v1821
        %v1964 = vpop.f32.mrf.mxu0
        %v1965 = vadd.f32 0.0, %v1964
        %1966 = vmatmul.f32.gmra.mxu0 %v1822
        %v1967 = vpop.f32.mrf.mxu0
        %v1968 = vadd.f32 0.0, %v1967
        %1969 = vmatmul.f32.gmra.mxu0 %v1823
        %v1970 = vpop.f32.mrf.mxu0
        %v1971 = vadd.f32 0.0, %v1970
        %1972 = vmatmul.f32.gmra.mxu0 %v1824
        %v1973 = vpop.f32.mrf.mxu0
        %v1974 = vadd.f32 0.0, %v1973
        %1975 = vmatmul.f32.gmra.mxu0 %v1825
        %v1976 = vpop.f32.mrf.mxu0
        %v1977 = vadd.f32 0.0, %v1976
        %1978 = vmatmul.f32.gmra.mxu0 %v1826
        %v1979 = vpop.f32.mrf.mxu0
        %v1980 = vadd.f32 0.0, %v1979
        %1981 = vmatmul.f32.gmra.mxu0 %v1827
        %v1982 = vpop.f32.mrf.mxu0
        %v1983 = vadd.f32 0.0, %v1982
        %1984 = vdwg.mxu0
        %v1985 = vadd.f32 %v1746, %v1863
        %v1986 = vadd.f32 %v1747, %v1866
        %v1987 = vadd.f32 %v1748, %v1869
        %v1988 = vadd.f32 %v1749, %v1872
        %v1989 = vadd.f32 %v1750, %v1875
        %v1990 = vadd.f32 %v1751, %v1878
        %v1991 = vadd.f32 %v1752, %v1881
        %v1992 = vadd.f32 %v1753, %v1884
        %v1993 = vadd.f32 %v1754, %v1887
        %v1994 = vadd.f32 %v1755, %v1890
        %v1995 = vadd.f32 %v1756, %v1893
        %v1996 = vadd.f32 %v1757, %v1896
        %v1997 = vadd.f32 %v1758, %v1899
        %v1998 = vadd.f32 %v1759, %v1902
        %v1999 = vadd.f32 %v1760, %v1905
        %v2000 = vadd.f32 %v1761, %v1908
        %v2001 = vadd.f32 %v1762, %v1911
        %v2002 = vadd.f32 %v1763, %v1914
        %v2003 = vadd.f32 %v1764, %v1917
        %v2004 = vadd.f32 %v1765, %v1920
        %v2005 = vadd.f32 %v1766, %v1923
        %v2006 = vadd.f32 %v1767, %v1926
        %v2007 = vadd.f32 %v1768, %v1929
        %v2008 = vadd.f32 %v1769, %v1932
        %v2009 = vadd.f32 %v1770, %v1935
        %v2010 = vadd.f32 %v1771, %v1938
        %v2011 = vadd.f32 %v1772, %v1941
        %v2012 = vadd.f32 %v1773, %v1944
        %v2013 = vadd.f32 %v1774, %v1947
        %v2014 = vadd.f32 %v1775, %v1950
        %v2015 = vadd.f32 %v1776, %v1953
        %v2016 = vadd.f32 %v1777, %v1956
        %v2017 = vadd.f32 %v1778, %v1959
        %v2018 = vadd.f32 %v1779, %v1962
        %v2019 = vadd.f32 %v1780, %v1965
        %v2020 = vadd.f32 %v1781, %v1968
        %v2021 = vadd.f32 %v1782, %v1971
        %v2022 = vadd.f32 %v1783, %v1974
        %v2023 = vadd.f32 %v1784, %v1977
        %v2024 = vadd.f32 %v1785, %v1980
        %v2025 = vadd.f32 %v1786, %v1983
        %v2026 = vld [vmem:[#allocation2 + $0x19] sm:$0xff]
        %v2027 = vld [vmem:[#allocation2 + $0x21] sm:$0xff]
        %v2028 = vld [vmem:[#allocation2 + $0x29] sm:$0xff]
        %v2029 = vld [vmem:[#allocation2 + $0x31] sm:$0xff]
        %v2030 = vld [vmem:[#allocation2 + $0x39] sm:$0xff]
        %v2031 = vld [vmem:[#allocation2 + $0x41] sm:$0xff]
        %v2032 = vld [vmem:[#allocation2 + $0x49] sm:$0xff]
        %v2033 = vld [vmem:[#allocation2 + $0x51] sm:$0xff]
        %v2034 = vld [vmem:[#allocation2 + $0x59] sm:$0xff]
        %v2035 = vld [vmem:[#allocation2 + $0x61] sm:$0xff]
        %v2036 = vld [vmem:[#allocation2 + $0x69] sm:$0xff]
        %v2037 = vld [vmem:[#allocation2 + $0x71] sm:$0xff]
        %v2038 = vld [vmem:[#allocation2 + $0x79] sm:$0xff]
        %v2039 = vld [vmem:[#allocation2 + $0x81] sm:$0xff]
        %v2040 = vld [vmem:[#allocation2 + $0x89] sm:$0xff]
        %v2041 = vld [vmem:[#allocation2 + $0x91] sm:$0xff]
        %v2042 = vld [vmem:[#allocation2 + $0x99] sm:$0xff]
        %v2043 = vld [vmem:[#allocation2 + $0xa1] sm:$0xff]
        %v2044 = vld [vmem:[#allocation2 + $0xa9] sm:$0xff]
        %v2045 = vld [vmem:[#allocation2 + $0xb1] sm:$0xff]
        %v2046 = vld [vmem:[#allocation2 + $0xb9] sm:$0xff]
        %v2047 = vld [vmem:[#allocation2 + $0xc1] sm:$0xff]
        %v2048 = vld [vmem:[#allocation2 + $0xc9] sm:$0xff]
        %v2049 = vld [vmem:[#allocation2 + $0xd1] sm:$0xff]
        %v2050 = vld [vmem:[#allocation2 + $0xd9] sm:$0xff]
        %v2051 = vld [vmem:[#allocation2 + $0xe1] sm:$0xff]
        %v2052 = vld [vmem:[#allocation2 + $0xe9] sm:$0xff]
        %v2053 = vld [vmem:[#allocation2 + $0xf1] sm:$0xff]
        %v2054 = vld [vmem:[#allocation2 + $0xf9] sm:$0xff]
        %v2055 = vld [vmem:[#allocation2 + $0x101] sm:$0xff]
        %v2056 = vld [vmem:[#allocation2 + $0x109] sm:$0xff]
        %v2057 = vld [vmem:[#allocation2 + $0x111] sm:$0xff]
        %v2058 = vld [vmem:[#allocation2 + $0x119] sm:$0xff]
        %v2059 = vld [vmem:[#allocation2 + $0x121] sm:$0xff]
        %v2060 = vld [vmem:[#allocation2 + $0x129] sm:$0xff]
        %v2061 = vld [vmem:[#allocation2 + $0x131] sm:$0xff]
        %v2062 = vld [vmem:[#allocation2 + $0x139] sm:$0xff]
        %v2063 = vld [vmem:[#allocation2 + $0x141] sm:$0xff]
        %v2064 = vld [vmem:[#allocation2 + $0x149] sm:$0xff]
        %v2065 = vld [vmem:[#allocation2 + $0x151] sm:$0xff]
        %v2066 = vld [vmem:[#allocation2 + $0x159] sm:$0xff]
        %s2067 = scalar_lea.vmem [#allocation3], 640
        %v2068 = vld [vmem:[%s2067] sm:$0xff]
        %v2069 = vld [vmem:[%s2067 + $0x8] sm:$0xff]
        %v2070 = vld [vmem:[%s2067 + $0x10] sm:$0xff]
        %v2071 = vld [vmem:[%s2067 + $0x18] sm:$0xff]
        %v2072 = vld [vmem:[%s2067 + $0x20] sm:$0xff]
        %v2073 = vld [vmem:[%s2067 + $0x28] sm:$0xff]
        %v2074 = vld [vmem:[%s2067 + $0x30] sm:$0xff]
        %v2075 = vld [vmem:[%s2067 + $0x38] sm:$0xff]
        %v2076 = vld [vmem:[%s2067 + $0x40] sm:$0xff]
        %v2077 = vld [vmem:[%s2067 + $0x48] sm:$0xff]
        %v2078 = vld [vmem:[%s2067 + $0x50] sm:$0xff]
        %v2079 = vld [vmem:[%s2067 + $0x58] sm:$0xff]
        %v2080 = vld [vmem:[%s2067 + $0x60] sm:$0xff]
        %v2081 = vld [vmem:[%s2067 + $0x68] sm:$0xff]
        %v2082 = vld [vmem:[%s2067 + $0x70] sm:$0xff]
        %v2083 = vld [vmem:[%s2067 + $0x78] sm:$0xff]
        %2084 = vmatpush.msra.mxu0 %v2083
        %2085 = vmatpush.msra.mxu0 %v2082
        %2086 = vmatpush.msra.mxu0 %v2081
        %2087 = vmatpush.msra.mxu0 %v2080
        %2088 = vmatpush.msra.mxu0 %v2079
        %2089 = vmatpush.msra.mxu0 %v2078
        %2090 = vmatpush.msra.mxu0 %v2077
        %2091 = vmatpush.msra.mxu0 %v2076
        %2092 = vmatpush.msra.mxu0 %v2075
        %2093 = vmatpush.msra.mxu0 %v2074
        %2094 = vmatpush.msra.mxu0 %v2073
        %2095 = vmatpush.msra.mxu0 %v2072
        %2096 = vmatpush.msra.mxu0 %v2071
        %2097 = vmatpush.msra.mxu0 %v2070
        %2098 = vmatpush.msra.mxu0 %v2069
        %2099 = vmatpush.msra.mxu0 %v2068
        %2100 = vmatmul.f32.gmra.mxu0 %v2026
        %v2101 = vpop.f32.mrf.mxu0
        %v2102 = vadd.f32 0.0, %v2101
        %2103 = vmatmul.f32.gmra.mxu0 %v2027
        %v2104 = vpop.f32.mrf.mxu0
        %v2105 = vadd.f32 0.0, %v2104
        %2106 = vmatmul.f32.gmra.mxu0 %v2028
        %v2107 = vpop.f32.mrf.mxu0
        %v2108 = vadd.f32 0.0, %v2107
        %2109 = vmatmul.f32.gmra.mxu0 %v2029
        %v2110 = vpop.f32.mrf.mxu0
        %v2111 = vadd.f32 0.0, %v2110
        %2112 = vmatmul.f32.gmra.mxu0 %v2030
        %v2113 = vpop.f32.mrf.mxu0
        %v2114 = vadd.f32 0.0, %v2113
        %2115 = vmatmul.f32.gmra.mxu0 %v2031
        %v2116 = vpop.f32.mrf.mxu0
        %v2117 = vadd.f32 0.0, %v2116
        %2118 = vmatmul.f32.gmra.mxu0 %v2032
        %v2119 = vpop.f32.mrf.mxu0
        %v2120 = vadd.f32 0.0, %v2119
        %2121 = vmatmul.f32.gmra.mxu0 %v2033
        %v2122 = vpop.f32.mrf.mxu0
        %v2123 = vadd.f32 0.0, %v2122
        %2124 = vmatmul.f32.gmra.mxu0 %v2034
        %v2125 = vpop.f32.mrf.mxu0
        %v2126 = vadd.f32 0.0, %v2125
        %2127 = vmatmul.f32.gmra.mxu0 %v2035
        %v2128 = vpop.f32.mrf.mxu0
        %v2129 = vadd.f32 0.0, %v2128
        %2130 = vmatmul.f32.gmra.mxu0 %v2036
        %v2131 = vpop.f32.mrf.mxu0
        %v2132 = vadd.f32 0.0, %v2131
        %2133 = vmatmul.f32.gmra.mxu0 %v2037
        %v2134 = vpop.f32.mrf.mxu0
        %v2135 = vadd.f32 0.0, %v2134
        %2136 = vmatmul.f32.gmra.mxu0 %v2038
        %v2137 = vpop.f32.mrf.mxu0
        %v2138 = vadd.f32 0.0, %v2137
        %2139 = vmatmul.f32.gmra.mxu0 %v2039
        %v2140 = vpop.f32.mrf.mxu0
        %v2141 = vadd.f32 0.0, %v2140
        %2142 = vmatmul.f32.gmra.mxu0 %v2040
        %v2143 = vpop.f32.mrf.mxu0
        %v2144 = vadd.f32 0.0, %v2143
        %2145 = vmatmul.f32.gmra.mxu0 %v2041
        %v2146 = vpop.f32.mrf.mxu0
        %v2147 = vadd.f32 0.0, %v2146
        %2148 = vmatmul.f32.gmra.mxu0 %v2042
        %v2149 = vpop.f32.mrf.mxu0
        %v2150 = vadd.f32 0.0, %v2149
        %2151 = vmatmul.f32.gmra.mxu0 %v2043
        %v2152 = vpop.f32.mrf.mxu0
        %v2153 = vadd.f32 0.0, %v2152
        %2154 = vmatmul.f32.gmra.mxu0 %v2044
        %v2155 = vpop.f32.mrf.mxu0
        %v2156 = vadd.f32 0.0, %v2155
        %2157 = vmatmul.f32.gmra.mxu0 %v2045
        %v2158 = vpop.f32.mrf.mxu0
        %v2159 = vadd.f32 0.0, %v2158
        %2160 = vmatmul.f32.gmra.mxu0 %v2046
        %v2161 = vpop.f32.mrf.mxu0
        %v2162 = vadd.f32 0.0, %v2161
        %2163 = vmatmul.f32.gmra.mxu0 %v2047
        %v2164 = vpop.f32.mrf.mxu0
        %v2165 = vadd.f32 0.0, %v2164
        %2166 = vmatmul.f32.gmra.mxu0 %v2048
        %v2167 = vpop.f32.mrf.mxu0
        %v2168 = vadd.f32 0.0, %v2167
        %2169 = vmatmul.f32.gmra.mxu0 %v2049
        %v2170 = vpop.f32.mrf.mxu0
        %v2171 = vadd.f32 0.0, %v2170
        %2172 = vmatmul.f32.gmra.mxu0 %v2050
        %v2173 = vpop.f32.mrf.mxu0
        %v2174 = vadd.f32 0.0, %v2173
        %2175 = vmatmul.f32.gmra.mxu0 %v2051
        %v2176 = vpop.f32.mrf.mxu0
        %v2177 = vadd.f32 0.0, %v2176
        %2178 = vmatmul.f32.gmra.mxu0 %v2052
        %v2179 = vpop.f32.mrf.mxu0
        %v2180 = vadd.f32 0.0, %v2179
        %2181 = vmatmul.f32.gmra.mxu0 %v2053
        %v2182 = vpop.f32.mrf.mxu0
        %v2183 = vadd.f32 0.0, %v2182
        %2184 = vmatmul.f32.gmra.mxu0 %v2054
        %v2185 = vpop.f32.mrf.mxu0
        %v2186 = vadd.f32 0.0, %v2185
        %2187 = vmatmul.f32.gmra.mxu0 %v2055
        %v2188 = vpop.f32.mrf.mxu0
        %v2189 = vadd.f32 0.0, %v2188
        %2190 = vmatmul.f32.gmra.mxu0 %v2056
        %v2191 = vpop.f32.mrf.mxu0
        %v2192 = vadd.f32 0.0, %v2191
        %2193 = vmatmul.f32.gmra.mxu0 %v2057
        %v2194 = vpop.f32.mrf.mxu0
        %v2195 = vadd.f32 0.0, %v2194
        %2196 = vmatmul.f32.gmra.mxu0 %v2058
        %v2197 = vpop.f32.mrf.mxu0
        %v2198 = vadd.f32 0.0, %v2197
        %2199 = vmatmul.f32.gmra.mxu0 %v2059
        %v2200 = vpop.f32.mrf.mxu0
        %v2201 = vadd.f32 0.0, %v2200
        %2202 = vmatmul.f32.gmra.mxu0 %v2060
        %v2203 = vpop.f32.mrf.mxu0
        %v2204 = vadd.f32 0.0, %v2203
        %2205 = vmatmul.f32.gmra.mxu0 %v2061
        %v2206 = vpop.f32.mrf.mxu0
        %v2207 = vadd.f32 0.0, %v2206
        %2208 = vmatmul.f32.gmra.mxu0 %v2062
        %v2209 = vpop.f32.mrf.mxu0
        %v2210 = vadd.f32 0.0, %v2209
        %2211 = vmatmul.f32.gmra.mxu0 %v2063
        %v2212 = vpop.f32.mrf.mxu0
        %v2213 = vadd.f32 0.0, %v2212
        %2214 = vmatmul.f32.gmra.mxu0 %v2064
        %v2215 = vpop.f32.mrf.mxu0
        %v2216 = vadd.f32 0.0, %v2215
        %2217 = vmatmul.f32.gmra.mxu0 %v2065
        %v2218 = vpop.f32.mrf.mxu0
        %v2219 = vadd.f32 0.0, %v2218
        %2220 = vmatmul.f32.gmra.mxu0 %v2066
        %v2221 = vpop.f32.mrf.mxu0
        %v2222 = vadd.f32 0.0, %v2221
        %2223 = vdwg.mxu0
        %v2224 = vadd.f32 %v1985, %v2102
        %v2225 = vadd.f32 %v1986, %v2105
        %v2226 = vadd.f32 %v1987, %v2108
        %v2227 = vadd.f32 %v1988, %v2111
        %v2228 = vadd.f32 %v1989, %v2114
        %v2229 = vadd.f32 %v1990, %v2117
        %v2230 = vadd.f32 %v1991, %v2120
        %v2231 = vadd.f32 %v1992, %v2123
        %v2232 = vadd.f32 %v1993, %v2126
        %v2233 = vadd.f32 %v1994, %v2129
        %v2234 = vadd.f32 %v1995, %v2132
        %v2235 = vadd.f32 %v1996, %v2135
        %v2236 = vadd.f32 %v1997, %v2138
        %v2237 = vadd.f32 %v1998, %v2141
        %v2238 = vadd.f32 %v1999, %v2144
        %v2239 = vadd.f32 %v2000, %v2147
        %v2240 = vadd.f32 %v2001, %v2150
        %v2241 = vadd.f32 %v2002, %v2153
        %v2242 = vadd.f32 %v2003, %v2156
        %v2243 = vadd.f32 %v2004, %v2159
        %v2244 = vadd.f32 %v2005, %v2162
        %v2245 = vadd.f32 %v2006, %v2165
        %v2246 = vadd.f32 %v2007, %v2168
        %v2247 = vadd.f32 %v2008, %v2171
        %v2248 = vadd.f32 %v2009, %v2174
        %v2249 = vadd.f32 %v2010, %v2177
        %v2250 = vadd.f32 %v2011, %v2180
        %v2251 = vadd.f32 %v2012, %v2183
        %v2252 = vadd.f32 %v2013, %v2186
        %v2253 = vadd.f32 %v2014, %v2189
        %v2254 = vadd.f32 %v2015, %v2192
        %v2255 = vadd.f32 %v2016, %v2195
        %v2256 = vadd.f32 %v2017, %v2198
        %v2257 = vadd.f32 %v2018, %v2201
        %v2258 = vadd.f32 %v2019, %v2204
        %v2259 = vadd.f32 %v2020, %v2207
        %v2260 = vadd.f32 %v2021, %v2210
        %v2261 = vadd.f32 %v2022, %v2213
        %v2262 = vadd.f32 %v2023, %v2216
        %v2263 = vadd.f32 %v2024, %v2219
        %v2264 = vadd.f32 %v2025, %v2222
        %v2265 = vld [vmem:[#allocation2 + $0x29] sm:$0xff]
        %v2266 = vld [vmem:[#allocation2 + $0x31] sm:$0xff]
        %v2267 = vld [vmem:[#allocation2 + $0x39] sm:$0xff]
        %v2268 = vld [vmem:[#allocation2 + $0x41] sm:$0xff]
        %v2269 = vld [vmem:[#allocation2 + $0x49] sm:$0xff]
        %v2270 = vld [vmem:[#allocation2 + $0x51] sm:$0xff]
        %v2271 = vld [vmem:[#allocation2 + $0x59] sm:$0xff]
        %v2272 = vld [vmem:[#allocation2 + $0x61] sm:$0xff]
        %v2273 = vld [vmem:[#allocation2 + $0x69] sm:$0xff]
        %v2274 = vld [vmem:[#allocation2 + $0x71] sm:$0xff]
        %v2275 = vld [vmem:[#allocation2 + $0x79] sm:$0xff]
        %v2276 = vld [vmem:[#allocation2 + $0x81] sm:$0xff]
        %v2277 = vld [vmem:[#allocation2 + $0x89] sm:$0xff]
        %v2278 = vld [vmem:[#allocation2 + $0x91] sm:$0xff]
        %v2279 = vld [vmem:[#allocation2 + $0x99] sm:$0xff]
        %v2280 = vld [vmem:[#allocation2 + $0xa1] sm:$0xff]
        %v2281 = vld [vmem:[#allocation2 + $0xa9] sm:$0xff]
        %v2282 = vld [vmem:[#allocation2 + $0xb1] sm:$0xff]
        %v2283 = vld [vmem:[#allocation2 + $0xb9] sm:$0xff]
        %v2284 = vld [vmem:[#allocation2 + $0xc1] sm:$0xff]
        %v2285 = vld [vmem:[#allocation2 + $0xc9] sm:$0xff]
        %v2286 = vld [vmem:[#allocation2 + $0xd1] sm:$0xff]
        %v2287 = vld [vmem:[#allocation2 + $0xd9] sm:$0xff]
        %v2288 = vld [vmem:[#allocation2 + $0xe1] sm:$0xff]
        %v2289 = vld [vmem:[#allocation2 + $0xe9] sm:$0xff]
        %v2290 = vld [vmem:[#allocation2 + $0xf1] sm:$0xff]
        %v2291 = vld [vmem:[#allocation2 + $0xf9] sm:$0xff]
        %v2292 = vld [vmem:[#allocation2 + $0x101] sm:$0xff]
        %v2293 = vld [vmem:[#allocation2 + $0x109] sm:$0xff]
        %v2294 = vld [vmem:[#allocation2 + $0x111] sm:$0xff]
        %v2295 = vld [vmem:[#allocation2 + $0x119] sm:$0xff]
        %v2296 = vld [vmem:[#allocation2 + $0x121] sm:$0xff]
        %v2297 = vld [vmem:[#allocation2 + $0x129] sm:$0xff]
        %v2298 = vld [vmem:[#allocation2 + $0x131] sm:$0xff]
        %v2299 = vld [vmem:[#allocation2 + $0x139] sm:$0xff]
        %v2300 = vld [vmem:[#allocation2 + $0x141] sm:$0xff]
        %v2301 = vld [vmem:[#allocation2 + $0x149] sm:$0xff]
        %v2302 = vld [vmem:[#allocation2 + $0x151] sm:$0xff]
        %v2303 = vld [vmem:[#allocation2 + $0x159] sm:$0xff]
        %v2304 = vld [vmem:[#allocation2 + $0x161] sm:$0xff]
        %v2305 = vld [vmem:[#allocation2 + $0x169] sm:$0xff]
        %s2306 = scalar_lea.vmem [#allocation3], 768
        %v2307 = vld [vmem:[%s2306] sm:$0xff]
        %v2308 = vld [vmem:[%s2306 + $0x8] sm:$0xff]
        %v2309 = vld [vmem:[%s2306 + $0x10] sm:$0xff]
        %v2310 = vld [vmem:[%s2306 + $0x18] sm:$0xff]
        %v2311 = vld [vmem:[%s2306 + $0x20] sm:$0xff]
        %v2312 = vld [vmem:[%s2306 + $0x28] sm:$0xff]
        %v2313 = vld [vmem:[%s2306 + $0x30] sm:$0xff]
        %v2314 = vld [vmem:[%s2306 + $0x38] sm:$0xff]
        %v2315 = vld [vmem:[%s2306 + $0x40] sm:$0xff]
        %v2316 = vld [vmem:[%s2306 + $0x48] sm:$0xff]
        %v2317 = vld [vmem:[%s2306 + $0x50] sm:$0xff]
        %v2318 = vld [vmem:[%s2306 + $0x58] sm:$0xff]
        %v2319 = vld [vmem:[%s2306 + $0x60] sm:$0xff]
        %v2320 = vld [vmem:[%s2306 + $0x68] sm:$0xff]
        %v2321 = vld [vmem:[%s2306 + $0x70] sm:$0xff]
        %v2322 = vld [vmem:[%s2306 + $0x78] sm:$0xff]
        %2323 = vmatpush.msra.mxu0 %v2322
        %2324 = vmatpush.msra.mxu0 %v2321
        %2325 = vmatpush.msra.mxu0 %v2320
        %2326 = vmatpush.msra.mxu0 %v2319
        %2327 = vmatpush.msra.mxu0 %v2318
        %2328 = vmatpush.msra.mxu0 %v2317
        %2329 = vmatpush.msra.mxu0 %v2316
        %2330 = vmatpush.msra.mxu0 %v2315
        %2331 = vmatpush.msra.mxu0 %v2314
        %2332 = vmatpush.msra.mxu0 %v2313
        %2333 = vmatpush.msra.mxu0 %v2312
        %2334 = vmatpush.msra.mxu0 %v2311
        %2335 = vmatpush.msra.mxu0 %v2310
        %2336 = vmatpush.msra.mxu0 %v2309
        %2337 = vmatpush.msra.mxu0 %v2308
        %2338 = vmatpush.msra.mxu0 %v2307
        %2339 = vmatmul.f32.gmra.mxu0 %v2265
        %v2340 = vpop.f32.mrf.mxu0
        %v2341 = vadd.f32 0.0, %v2340
        %2342 = vmatmul.f32.gmra.mxu0 %v2266
        %v2343 = vpop.f32.mrf.mxu0
        %v2344 = vadd.f32 0.0, %v2343
        %2345 = vmatmul.f32.gmra.mxu0 %v2267
        %v2346 = vpop.f32.mrf.mxu0
        %v2347 = vadd.f32 0.0, %v2346
        %2348 = vmatmul.f32.gmra.mxu0 %v2268
        %v2349 = vpop.f32.mrf.mxu0
        %v2350 = vadd.f32 0.0, %v2349
        %2351 = vmatmul.f32.gmra.mxu0 %v2269
        %v2352 = vpop.f32.mrf.mxu0
        %v2353 = vadd.f32 0.0, %v2352
        %2354 = vmatmul.f32.gmra.mxu0 %v2270
        %v2355 = vpop.f32.mrf.mxu0
        %v2356 = vadd.f32 0.0, %v2355
        %2357 = vmatmul.f32.gmra.mxu0 %v2271
        %v2358 = vpop.f32.mrf.mxu0
        %v2359 = vadd.f32 0.0, %v2358
        %2360 = vmatmul.f32.gmra.mxu0 %v2272
        %v2361 = vpop.f32.mrf.mxu0
        %v2362 = vadd.f32 0.0, %v2361
        %2363 = vmatmul.f32.gmra.mxu0 %v2273
        %v2364 = vpop.f32.mrf.mxu0
        %v2365 = vadd.f32 0.0, %v2364
        %2366 = vmatmul.f32.gmra.mxu0 %v2274
        %v2367 = vpop.f32.mrf.mxu0
        %v2368 = vadd.f32 0.0, %v2367
        %2369 = vmatmul.f32.gmra.mxu0 %v2275
        %v2370 = vpop.f32.mrf.mxu0
        %v2371 = vadd.f32 0.0, %v2370
        %2372 = vmatmul.f32.gmra.mxu0 %v2276
        %v2373 = vpop.f32.mrf.mxu0
        %v2374 = vadd.f32 0.0, %v2373
        %2375 = vmatmul.f32.gmra.mxu0 %v2277
        %v2376 = vpop.f32.mrf.mxu0
        %v2377 = vadd.f32 0.0, %v2376
        %2378 = vmatmul.f32.gmra.mxu0 %v2278
        %v2379 = vpop.f32.mrf.mxu0
        %v2380 = vadd.f32 0.0, %v2379
        %2381 = vmatmul.f32.gmra.mxu0 %v2279
        %v2382 = vpop.f32.mrf.mxu0
        %v2383 = vadd.f32 0.0, %v2382
        %2384 = vmatmul.f32.gmra.mxu0 %v2280
        %v2385 = vpop.f32.mrf.mxu0
        %v2386 = vadd.f32 0.0, %v2385
        %2387 = vmatmul.f32.gmra.mxu0 %v2281
        %v2388 = vpop.f32.mrf.mxu0
        %v2389 = vadd.f32 0.0, %v2388
        %2390 = vmatmul.f32.gmra.mxu0 %v2282
        %v2391 = vpop.f32.mrf.mxu0
        %v2392 = vadd.f32 0.0, %v2391
        %2393 = vmatmul.f32.gmra.mxu0 %v2283
        %v2394 = vpop.f32.mrf.mxu0
        %v2395 = vadd.f32 0.0, %v2394
        %2396 = vmatmul.f32.gmra.mxu0 %v2284
        %v2397 = vpop.f32.mrf.mxu0
        %v2398 = vadd.f32 0.0, %v2397
        %2399 = vmatmul.f32.gmra.mxu0 %v2285
        %v2400 = vpop.f32.mrf.mxu0
        %v2401 = vadd.f32 0.0, %v2400
        %2402 = vmatmul.f32.gmra.mxu0 %v2286
        %v2403 = vpop.f32.mrf.mxu0
        %v2404 = vadd.f32 0.0, %v2403
        %2405 = vmatmul.f32.gmra.mxu0 %v2287
        %v2406 = vpop.f32.mrf.mxu0
        %v2407 = vadd.f32 0.0, %v2406
        %2408 = vmatmul.f32.gmra.mxu0 %v2288
        %v2409 = vpop.f32.mrf.mxu0
        %v2410 = vadd.f32 0.0, %v2409
        %2411 = vmatmul.f32.gmra.mxu0 %v2289
        %v2412 = vpop.f32.mrf.mxu0
        %v2413 = vadd.f32 0.0, %v2412
        %2414 = vmatmul.f32.gmra.mxu0 %v2290
        %v2415 = vpop.f32.mrf.mxu0
        %v2416 = vadd.f32 0.0, %v2415
        %2417 = vmatmul.f32.gmra.mxu0 %v2291
        %v2418 = vpop.f32.mrf.mxu0
        %v2419 = vadd.f32 0.0, %v2418
        %2420 = vmatmul.f32.gmra.mxu0 %v2292
        %v2421 = vpop.f32.mrf.mxu0
        %v2422 = vadd.f32 0.0, %v2421
        %2423 = vmatmul.f32.gmra.mxu0 %v2293
        %v2424 = vpop.f32.mrf.mxu0
        %v2425 = vadd.f32 0.0, %v2424
        %2426 = vmatmul.f32.gmra.mxu0 %v2294
        %v2427 = vpop.f32.mrf.mxu0
        %v2428 = vadd.f32 0.0, %v2427
        %2429 = vmatmul.f32.gmra.mxu0 %v2295
        %v2430 = vpop.f32.mrf.mxu0
        %v2431 = vadd.f32 0.0, %v2430
        %2432 = vmatmul.f32.gmra.mxu0 %v2296
        %v2433 = vpop.f32.mrf.mxu0
        %v2434 = vadd.f32 0.0, %v2433
        %2435 = vmatmul.f32.gmra.mxu0 %v2297
        %v2436 = vpop.f32.mrf.mxu0
        %v2437 = vadd.f32 0.0, %v2436
        %2438 = vmatmul.f32.gmra.mxu0 %v2298
        %v2439 = vpop.f32.mrf.mxu0
        %v2440 = vadd.f32 0.0, %v2439
        %2441 = vmatmul.f32.gmra.mxu0 %v2299
        %v2442 = vpop.f32.mrf.mxu0
        %v2443 = vadd.f32 0.0, %v2442
        %2444 = vmatmul.f32.gmra.mxu0 %v2300
        %v2445 = vpop.f32.mrf.mxu0
        %v2446 = vadd.f32 0.0, %v2445
        %2447 = vmatmul.f32.gmra.mxu0 %v2301
        %v2448 = vpop.f32.mrf.mxu0
        %v2449 = vadd.f32 0.0, %v2448
        %2450 = vmatmul.f32.gmra.mxu0 %v2302
        %v2451 = vpop.f32.mrf.mxu0
        %v2452 = vadd.f32 0.0, %v2451
        %2453 = vmatmul.f32.gmra.mxu0 %v2303
        %v2454 = vpop.f32.mrf.mxu0
        %v2455 = vadd.f32 0.0, %v2454
        %2456 = vmatmul.f32.gmra.mxu0 %v2304
        %v2457 = vpop.f32.mrf.mxu0
        %v2458 = vadd.f32 0.0, %v2457
        %2459 = vmatmul.f32.gmra.mxu0 %v2305
        %v2460 = vpop.f32.mrf.mxu0
        %v2461 = vadd.f32 0.0, %v2460
        %2462 = vdwg.mxu0
        %v2463 = vadd.f32 %v2224, %v2341
        %v2464 = vadd.f32 %v2225, %v2344
        %v2465 = vadd.f32 %v2226, %v2347
        %v2466 = vadd.f32 %v2227, %v2350
        %v2467 = vadd.f32 %v2228, %v2353
        %v2468 = vadd.f32 %v2229, %v2356
        %v2469 = vadd.f32 %v2230, %v2359
        %v2470 = vadd.f32 %v2231, %v2362
        %v2471 = vadd.f32 %v2232, %v2365
        %v2472 = vadd.f32 %v2233, %v2368
        %v2473 = vadd.f32 %v2234, %v2371
        %v2474 = vadd.f32 %v2235, %v2374
        %v2475 = vadd.f32 %v2236, %v2377
        %v2476 = vadd.f32 %v2237, %v2380
        %v2477 = vadd.f32 %v2238, %v2383
        %v2478 = vadd.f32 %v2239, %v2386
        %v2479 = vadd.f32 %v2240, %v2389
        %v2480 = vadd.f32 %v2241, %v2392
        %v2481 = vadd.f32 %v2242, %v2395
        %v2482 = vadd.f32 %v2243, %v2398
        %v2483 = vadd.f32 %v2244, %v2401
        %v2484 = vadd.f32 %v2245, %v2404
        %v2485 = vadd.f32 %v2246, %v2407
        %v2486 = vadd.f32 %v2247, %v2410
        %v2487 = vadd.f32 %v2248, %v2413
        %v2488 = vadd.f32 %v2249, %v2416
        %v2489 = vadd.f32 %v2250, %v2419
        %v2490 = vadd.f32 %v2251, %v2422
        %v2491 = vadd.f32 %v2252, %v2425
        %v2492 = vadd.f32 %v2253, %v2428
        %v2493 = vadd.f32 %v2254, %v2431
        %v2494 = vadd.f32 %v2255, %v2434
        %v2495 = vadd.f32 %v2256, %v2437
        %v2496 = vadd.f32 %v2257, %v2440
        %v2497 = vadd.f32 %v2258, %v2443
        %v2498 = vadd.f32 %v2259, %v2446
        %v2499 = vadd.f32 %v2260, %v2449
        %v2500 = vadd.f32 %v2261, %v2452
        %v2501 = vadd.f32 %v2262, %v2455
        %v2502 = vadd.f32 %v2263, %v2458
        %v2503 = vadd.f32 %v2264, %v2461
        %v2504 = vld [vmem:[#allocation2 + $0x2a] sm:$0xff]
        %v2505 = vld [vmem:[#allocation2 + $0x32] sm:$0xff]
        %v2506 = vld [vmem:[#allocation2 + $0x3a] sm:$0xff]
        %v2507 = vld [vmem:[#allocation2 + $0x42] sm:$0xff]
        %v2508 = vld [vmem:[#allocation2 + $0x4a] sm:$0xff]
        %v2509 = vld [vmem:[#allocation2 + $0x52] sm:$0xff]
        %v2510 = vld [vmem:[#allocation2 + $0x5a] sm:$0xff]
        %v2511 = vld [vmem:[#allocation2 + $0x62] sm:$0xff]
        %v2512 = vld [vmem:[#allocation2 + $0x6a] sm:$0xff]
        %v2513 = vld [vmem:[#allocation2 + $0x72] sm:$0xff]
        %v2514 = vld [vmem:[#allocation2 + $0x7a] sm:$0xff]
        %v2515 = vld [vmem:[#allocation2 + $0x82] sm:$0xff]
        %v2516 = vld [vmem:[#allocation2 + $0x8a] sm:$0xff]
        %v2517 = vld [vmem:[#allocation2 + $0x92] sm:$0xff]
        %v2518 = vld [vmem:[#allocation2 + $0x9a] sm:$0xff]
        %v2519 = vld [vmem:[#allocation2 + $0xa2] sm:$0xff]
        %v2520 = vld [vmem:[#allocation2 + $0xaa] sm:$0xff]
        %v2521 = vld [vmem:[#allocation2 + $0xb2] sm:$0xff]
        %v2522 = vld [vmem:[#allocation2 + $0xba] sm:$0xff]
        %v2523 = vld [vmem:[#allocation2 + $0xc2] sm:$0xff]
        %v2524 = vld [vmem:[#allocation2 + $0xca] sm:$0xff]
        %v2525 = vld [vmem:[#allocation2 + $0xd2] sm:$0xff]
        %v2526 = vld [vmem:[#allocation2 + $0xda] sm:$0xff]
        %v2527 = vld [vmem:[#allocation2 + $0xe2] sm:$0xff]
        %v2528 = vld [vmem:[#allocation2 + $0xea] sm:$0xff]
        %v2529 = vld [vmem:[#allocation2 + $0xf2] sm:$0xff]
        %v2530 = vld [vmem:[#allocation2 + $0xfa] sm:$0xff]
        %v2531 = vld [vmem:[#allocation2 + $0x102] sm:$0xff]
        %v2532 = vld [vmem:[#allocation2 + $0x10a] sm:$0xff]
        %v2533 = vld [vmem:[#allocation2 + $0x112] sm:$0xff]
        %v2534 = vld [vmem:[#allocation2 + $0x11a] sm:$0xff]
        %v2535 = vld [vmem:[#allocation2 + $0x122] sm:$0xff]
        %v2536 = vld [vmem:[#allocation2 + $0x12a] sm:$0xff]
        %v2537 = vld [vmem:[#allocation2 + $0x132] sm:$0xff]
        %v2538 = vld [vmem:[#allocation2 + $0x13a] sm:$0xff]
        %v2539 = vld [vmem:[#allocation2 + $0x142] sm:$0xff]
        %v2540 = vld [vmem:[#allocation2 + $0x14a] sm:$0xff]
        %v2541 = vld [vmem:[#allocation2 + $0x152] sm:$0xff]
        %v2542 = vld [vmem:[#allocation2 + $0x15a] sm:$0xff]
        %v2543 = vld [vmem:[#allocation2 + $0x162] sm:$0xff]
        %v2544 = vld [vmem:[#allocation2 + $0x16a] sm:$0xff]
        %s2545 = scalar_lea.vmem [#allocation3], 896
        %v2546 = vld [vmem:[%s2545] sm:$0xff]
        %v2547 = vld [vmem:[%s2545 + $0x8] sm:$0xff]
        %v2548 = vld [vmem:[%s2545 + $0x10] sm:$0xff]
        %v2549 = vld [vmem:[%s2545 + $0x18] sm:$0xff]
        %v2550 = vld [vmem:[%s2545 + $0x20] sm:$0xff]
        %v2551 = vld [vmem:[%s2545 + $0x28] sm:$0xff]
        %v2552 = vld [vmem:[%s2545 + $0x30] sm:$0xff]
        %v2553 = vld [vmem:[%s2545 + $0x38] sm:$0xff]
        %v2554 = vld [vmem:[%s2545 + $0x40] sm:$0xff]
        %v2555 = vld [vmem:[%s2545 + $0x48] sm:$0xff]
        %v2556 = vld [vmem:[%s2545 + $0x50] sm:$0xff]
        %v2557 = vld [vmem:[%s2545 + $0x58] sm:$0xff]
        %v2558 = vld [vmem:[%s2545 + $0x60] sm:$0xff]
        %v2559 = vld [vmem:[%s2545 + $0x68] sm:$0xff]
        %v2560 = vld [vmem:[%s2545 + $0x70] sm:$0xff]
        %v2561 = vld [vmem:[%s2545 + $0x78] sm:$0xff]
        %2562 = vmatpush.msra.mxu0 %v2561
        %2563 = vmatpush.msra.mxu0 %v2560
        %2564 = vmatpush.msra.mxu0 %v2559
        %2565 = vmatpush.msra.mxu0 %v2558
        %2566 = vmatpush.msra.mxu0 %v2557
        %2567 = vmatpush.msra.mxu0 %v2556
        %2568 = vmatpush.msra.mxu0 %v2555
        %2569 = vmatpush.msra.mxu0 %v2554
        %2570 = vmatpush.msra.mxu0 %v2553
        %2571 = vmatpush.msra.mxu0 %v2552
        %2572 = vmatpush.msra.mxu0 %v2551
        %2573 = vmatpush.msra.mxu0 %v2550
        %2574 = vmatpush.msra.mxu0 %v2549
        %2575 = vmatpush.msra.mxu0 %v2548
        %2576 = vmatpush.msra.mxu0 %v2547
        %2577 = vmatpush.msra.mxu0 %v2546
        %2578 = vmatmul.f32.gmra.mxu0 %v2504
        %v2579 = vpop.f32.mrf.mxu0
        %v2580 = vadd.f32 0.0, %v2579
        %2581 = vmatmul.f32.gmra.mxu0 %v2505
        %v2582 = vpop.f32.mrf.mxu0
        %v2583 = vadd.f32 0.0, %v2582
        %2584 = vmatmul.f32.gmra.mxu0 %v2506
        %v2585 = vpop.f32.mrf.mxu0
        %v2586 = vadd.f32 0.0, %v2585
        %2587 = vmatmul.f32.gmra.mxu0 %v2507
        %v2588 = vpop.f32.mrf.mxu0
        %v2589 = vadd.f32 0.0, %v2588
        %2590 = vmatmul.f32.gmra.mxu0 %v2508
        %v2591 = vpop.f32.mrf.mxu0
        %v2592 = vadd.f32 0.0, %v2591
        %2593 = vmatmul.f32.gmra.mxu0 %v2509
        %v2594 = vpop.f32.mrf.mxu0
        %v2595 = vadd.f32 0.0, %v2594
        %2596 = vmatmul.f32.gmra.mxu0 %v2510
        %v2597 = vpop.f32.mrf.mxu0
        %v2598 = vadd.f32 0.0, %v2597
        %2599 = vmatmul.f32.gmra.mxu0 %v2511
        %v2600 = vpop.f32.mrf.mxu0
        %v2601 = vadd.f32 0.0, %v2600
        %2602 = vmatmul.f32.gmra.mxu0 %v2512
        %v2603 = vpop.f32.mrf.mxu0
        %v2604 = vadd.f32 0.0, %v2603
        %2605 = vmatmul.f32.gmra.mxu0 %v2513
        %v2606 = vpop.f32.mrf.mxu0
        %v2607 = vadd.f32 0.0, %v2606
        %2608 = vmatmul.f32.gmra.mxu0 %v2514
        %v2609 = vpop.f32.mrf.mxu0
        %v2610 = vadd.f32 0.0, %v2609
        %2611 = vmatmul.f32.gmra.mxu0 %v2515
        %v2612 = vpop.f32.mrf.mxu0
        %v2613 = vadd.f32 0.0, %v2612
        %2614 = vmatmul.f32.gmra.mxu0 %v2516
        %v2615 = vpop.f32.mrf.mxu0
        %v2616 = vadd.f32 0.0, %v2615
        %2617 = vmatmul.f32.gmra.mxu0 %v2517
        %v2618 = vpop.f32.mrf.mxu0
        %v2619 = vadd.f32 0.0, %v2618
        %2620 = vmatmul.f32.gmra.mxu0 %v2518
        %v2621 = vpop.f32.mrf.mxu0
        %v2622 = vadd.f32 0.0, %v2621
        %2623 = vmatmul.f32.gmra.mxu0 %v2519
        %v2624 = vpop.f32.mrf.mxu0
        %v2625 = vadd.f32 0.0, %v2624
        %2626 = vmatmul.f32.gmra.mxu0 %v2520
        %v2627 = vpop.f32.mrf.mxu0
        %v2628 = vadd.f32 0.0, %v2627
        %2629 = vmatmul.f32.gmra.mxu0 %v2521
        %v2630 = vpop.f32.mrf.mxu0
        %v2631 = vadd.f32 0.0, %v2630
        %2632 = vmatmul.f32.gmra.mxu0 %v2522
        %v2633 = vpop.f32.mrf.mxu0
        %v2634 = vadd.f32 0.0, %v2633
        %2635 = vmatmul.f32.gmra.mxu0 %v2523
        %v2636 = vpop.f32.mrf.mxu0
        %v2637 = vadd.f32 0.0, %v2636
        %2638 = vmatmul.f32.gmra.mxu0 %v2524
        %v2639 = vpop.f32.mrf.mxu0
        %v2640 = vadd.f32 0.0, %v2639
        %2641 = vmatmul.f32.gmra.mxu0 %v2525
        %v2642 = vpop.f32.mrf.mxu0
        %v2643 = vadd.f32 0.0, %v2642
        %2644 = vmatmul.f32.gmra.mxu0 %v2526
        %v2645 = vpop.f32.mrf.mxu0
        %v2646 = vadd.f32 0.0, %v2645
        %2647 = vmatmul.f32.gmra.mxu0 %v2527
        %v2648 = vpop.f32.mrf.mxu0
        %v2649 = vadd.f32 0.0, %v2648
        %2650 = vmatmul.f32.gmra.mxu0 %v2528
        %v2651 = vpop.f32.mrf.mxu0
        %v2652 = vadd.f32 0.0, %v2651
        %2653 = vmatmul.f32.gmra.mxu0 %v2529
        %v2654 = vpop.f32.mrf.mxu0
        %v2655 = vadd.f32 0.0, %v2654
        %2656 = vmatmul.f32.gmra.mxu0 %v2530
        %v2657 = vpop.f32.mrf.mxu0
        %v2658 = vadd.f32 0.0, %v2657
        %2659 = vmatmul.f32.gmra.mxu0 %v2531
        %v2660 = vpop.f32.mrf.mxu0
        %v2661 = vadd.f32 0.0, %v2660
        %2662 = vmatmul.f32.gmra.mxu0 %v2532
        %v2663 = vpop.f32.mrf.mxu0
        %v2664 = vadd.f32 0.0, %v2663
        %2665 = vmatmul.f32.gmra.mxu0 %v2533
        %v2666 = vpop.f32.mrf.mxu0
        %v2667 = vadd.f32 0.0, %v2666
        %2668 = vmatmul.f32.gmra.mxu0 %v2534
        %v2669 = vpop.f32.mrf.mxu0
        %v2670 = vadd.f32 0.0, %v2669
        %2671 = vmatmul.f32.gmra.mxu0 %v2535
        %v2672 = vpop.f32.mrf.mxu0
        %v2673 = vadd.f32 0.0, %v2672
        %2674 = vmatmul.f32.gmra.mxu0 %v2536
        %v2675 = vpop.f32.mrf.mxu0
        %v2676 = vadd.f32 0.0, %v2675
        %2677 = vmatmul.f32.gmra.mxu0 %v2537
        %v2678 = vpop.f32.mrf.mxu0
        %v2679 = vadd.f32 0.0, %v2678
        %2680 = vmatmul.f32.gmra.mxu0 %v2538
        %v2681 = vpop.f32.mrf.mxu0
        %v2682 = vadd.f32 0.0, %v2681
        %2683 = vmatmul.f32.gmra.mxu0 %v2539
        %v2684 = vpop.f32.mrf.mxu0
        %v2685 = vadd.f32 0.0, %v2684
        %2686 = vmatmul.f32.gmra.mxu0 %v2540
        %v2687 = vpop.f32.mrf.mxu0
        %v2688 = vadd.f32 0.0, %v2687
        %2689 = vmatmul.f32.gmra.mxu0 %v2541
        %v2690 = vpop.f32.mrf.mxu0
        %v2691 = vadd.f32 0.0, %v2690
        %2692 = vmatmul.f32.gmra.mxu0 %v2542
        %v2693 = vpop.f32.mrf.mxu0
        %v2694 = vadd.f32 0.0, %v2693
        %2695 = vmatmul.f32.gmra.mxu0 %v2543
        %v2696 = vpop.f32.mrf.mxu0
        %v2697 = vadd.f32 0.0, %v2696
        %2698 = vmatmul.f32.gmra.mxu0 %v2544
        %v2699 = vpop.f32.mrf.mxu0
        %v2700 = vadd.f32 0.0, %v2699
        %2701 = vdwg.mxu0
        %v2702 = vadd.f32 %v2463, %v2580
        %v2703 = vadd.f32 %v2464, %v2583
        %v2704 = vadd.f32 %v2465, %v2586
        %v2705 = vadd.f32 %v2466, %v2589
        %v2706 = vadd.f32 %v2467, %v2592
        %v2707 = vadd.f32 %v2468, %v2595
        %v2708 = vadd.f32 %v2469, %v2598
        %v2709 = vadd.f32 %v2470, %v2601
        %v2710 = vadd.f32 %v2471, %v2604
        %v2711 = vadd.f32 %v2472, %v2607
        %v2712 = vadd.f32 %v2473, %v2610
        %v2713 = vadd.f32 %v2474, %v2613
        %v2714 = vadd.f32 %v2475, %v2616
        %v2715 = vadd.f32 %v2476, %v2619
        %v2716 = vadd.f32 %v2477, %v2622
        %v2717 = vadd.f32 %v2478, %v2625
        %v2718 = vadd.f32 %v2479, %v2628
        %v2719 = vadd.f32 %v2480, %v2631
        %v2720 = vadd.f32 %v2481, %v2634
        %v2721 = vadd.f32 %v2482, %v2637
        %v2722 = vadd.f32 %v2483, %v2640
        %v2723 = vadd.f32 %v2484, %v2643
        %v2724 = vadd.f32 %v2485, %v2646
        %v2725 = vadd.f32 %v2486, %v2649
        %v2726 = vadd.f32 %v2487, %v2652
        %v2727 = vadd.f32 %v2488, %v2655
        %v2728 = vadd.f32 %v2489, %v2658
        %v2729 = vadd.f32 %v2490, %v2661
        %v2730 = vadd.f32 %v2491, %v2664
        %v2731 = vadd.f32 %v2492, %v2667
        %v2732 = vadd.f32 %v2493, %v2670
        %v2733 = vadd.f32 %v2494, %v2673
        %v2734 = vadd.f32 %v2495, %v2676
        %v2735 = vadd.f32 %v2496, %v2679
        %v2736 = vadd.f32 %v2497, %v2682
        %v2737 = vadd.f32 %v2498, %v2685
        %v2738 = vadd.f32 %v2499, %v2688
        %v2739 = vadd.f32 %v2500, %v2691
        %v2740 = vadd.f32 %v2501, %v2694
        %v2741 = vadd.f32 %v2502, %v2697
        %v2742 = vadd.f32 %v2503, %v2700
        %v2743 = vld [vmem:[#allocation2 + $0x2b] sm:$0xff]
        %v2744 = vld [vmem:[#allocation2 + $0x33] sm:$0xff]
        %v2745 = vld [vmem:[#allocation2 + $0x3b] sm:$0xff]
        %v2746 = vld [vmem:[#allocation2 + $0x43] sm:$0xff]
        %v2747 = vld [vmem:[#allocation2 + $0x4b] sm:$0xff]
        %v2748 = vld [vmem:[#allocation2 + $0x53] sm:$0xff]
        %v2749 = vld [vmem:[#allocation2 + $0x5b] sm:$0xff]
        %v2750 = vld [vmem:[#allocation2 + $0x63] sm:$0xff]
        %v2751 = vld [vmem:[#allocation2 + $0x6b] sm:$0xff]
        %v2752 = vld [vmem:[#allocation2 + $0x73] sm:$0xff]
        %v2753 = vld [vmem:[#allocation2 + $0x7b] sm:$0xff]
        %v2754 = vld [vmem:[#allocation2 + $0x83] sm:$0xff]
        %v2755 = vld [vmem:[#allocation2 + $0x8b] sm:$0xff]
        %v2756 = vld [vmem:[#allocation2 + $0x93] sm:$0xff]
        %v2757 = vld [vmem:[#allocation2 + $0x9b] sm:$0xff]
        %v2758 = vld [vmem:[#allocation2 + $0xa3] sm:$0xff]
        %v2759 = vld [vmem:[#allocation2 + $0xab] sm:$0xff]
        %v2760 = vld [vmem:[#allocation2 + $0xb3] sm:$0xff]
        %v2761 = vld [vmem:[#allocation2 + $0xbb] sm:$0xff]
        %v2762 = vld [vmem:[#allocation2 + $0xc3] sm:$0xff]
        %v2763 = vld [vmem:[#allocation2 + $0xcb] sm:$0xff]
        %v2764 = vld [vmem:[#allocation2 + $0xd3] sm:$0xff]
        %v2765 = vld [vmem:[#allocation2 + $0xdb] sm:$0xff]
        %v2766 = vld [vmem:[#allocation2 + $0xe3] sm:$0xff]
        %v2767 = vld [vmem:[#allocation2 + $0xeb] sm:$0xff]
        %v2768 = vld [vmem:[#allocation2 + $0xf3] sm:$0xff]
        %v2769 = vld [vmem:[#allocation2 + $0xfb] sm:$0xff]
        %v2770 = vld [vmem:[#allocation2 + $0x103] sm:$0xff]
        %v2771 = vld [vmem:[#allocation2 + $0x10b] sm:$0xff]
        %v2772 = vld [vmem:[#allocation2 + $0x113] sm:$0xff]
        %v2773 = vld [vmem:[#allocation2 + $0x11b] sm:$0xff]
        %v2774 = vld [vmem:[#allocation2 + $0x123] sm:$0xff]
        %v2775 = vld [vmem:[#allocation2 + $0x12b] sm:$0xff]
        %v2776 = vld [vmem:[#allocation2 + $0x133] sm:$0xff]
        %v2777 = vld [vmem:[#allocation2 + $0x13b] sm:$0xff]
        %v2778 = vld [vmem:[#allocation2 + $0x143] sm:$0xff]
        %v2779 = vld [vmem:[#allocation2 + $0x14b] sm:$0xff]
        %v2780 = vld [vmem:[#allocation2 + $0x153] sm:$0xff]
        %v2781 = vld [vmem:[#allocation2 + $0x15b] sm:$0xff]
        %v2782 = vld [vmem:[#allocation2 + $0x163] sm:$0xff]
        %v2783 = vld [vmem:[#allocation2 + $0x16b] sm:$0xff]
        %s2784 = scalar_lea.vmem [#allocation3], 1024
        %v2785 = vld [vmem:[%s2784] sm:$0xff]
        %v2786 = vld [vmem:[%s2784 + $0x8] sm:$0xff]
        %v2787 = vld [vmem:[%s2784 + $0x10] sm:$0xff]
        %v2788 = vld [vmem:[%s2784 + $0x18] sm:$0xff]
        %v2789 = vld [vmem:[%s2784 + $0x20] sm:$0xff]
        %v2790 = vld [vmem:[%s2784 + $0x28] sm:$0xff]
        %v2791 = vld [vmem:[%s2784 + $0x30] sm:$0xff]
        %v2792 = vld [vmem:[%s2784 + $0x38] sm:$0xff]
        %v2793 = vld [vmem:[%s2784 + $0x40] sm:$0xff]
        %v2794 = vld [vmem:[%s2784 + $0x48] sm:$0xff]
        %v2795 = vld [vmem:[%s2784 + $0x50] sm:$0xff]
        %v2796 = vld [vmem:[%s2784 + $0x58] sm:$0xff]
        %v2797 = vld [vmem:[%s2784 + $0x60] sm:$0xff]
        %v2798 = vld [vmem:[%s2784 + $0x68] sm:$0xff]
        %v2799 = vld [vmem:[%s2784 + $0x70] sm:$0xff]
        %v2800 = vld [vmem:[%s2784 + $0x78] sm:$0xff]
        %2801 = vmatpush.msra.mxu0 %v2800
        %2802 = vmatpush.msra.mxu0 %v2799
        %2803 = vmatpush.msra.mxu0 %v2798
        %2804 = vmatpush.msra.mxu0 %v2797
        %2805 = vmatpush.msra.mxu0 %v2796
        %2806 = vmatpush.msra.mxu0 %v2795
        %2807 = vmatpush.msra.mxu0 %v2794
        %2808 = vmatpush.msra.mxu0 %v2793
        %2809 = vmatpush.msra.mxu0 %v2792
        %2810 = vmatpush.msra.mxu0 %v2791
        %2811 = vmatpush.msra.mxu0 %v2790
        %2812 = vmatpush.msra.mxu0 %v2789
        %2813 = vmatpush.msra.mxu0 %v2788
        %2814 = vmatpush.msra.mxu0 %v2787
        %2815 = vmatpush.msra.mxu0 %v2786
        %2816 = vmatpush.msra.mxu0 %v2785
        %2817 = vmatmul.f32.gmra.mxu0 %v2743
        %v2818 = vpop.f32.mrf.mxu0
        %v2819 = vadd.f32 0.0, %v2818
        %2820 = vmatmul.f32.gmra.mxu0 %v2744
        %v2821 = vpop.f32.mrf.mxu0
        %v2822 = vadd.f32 0.0, %v2821
        %2823 = vmatmul.f32.gmra.mxu0 %v2745
        %v2824 = vpop.f32.mrf.mxu0
        %v2825 = vadd.f32 0.0, %v2824
        %2826 = vmatmul.f32.gmra.mxu0 %v2746
        %v2827 = vpop.f32.mrf.mxu0
        %v2828 = vadd.f32 0.0, %v2827
        %2829 = vmatmul.f32.gmra.mxu0 %v2747
        %v2830 = vpop.f32.mrf.mxu0
        %v2831 = vadd.f32 0.0, %v2830
        %2832 = vmatmul.f32.gmra.mxu0 %v2748
        %v2833 = vpop.f32.mrf.mxu0
        %v2834 = vadd.f32 0.0, %v2833
        %2835 = vmatmul.f32.gmra.mxu0 %v2749
        %v2836 = vpop.f32.mrf.mxu0
        %v2837 = vadd.f32 0.0, %v2836
        %2838 = vmatmul.f32.gmra.mxu0 %v2750
        %v2839 = vpop.f32.mrf.mxu0
        %v2840 = vadd.f32 0.0, %v2839
        %2841 = vmatmul.f32.gmra.mxu0 %v2751
        %v2842 = vpop.f32.mrf.mxu0
        %v2843 = vadd.f32 0.0, %v2842
        %2844 = vmatmul.f32.gmra.mxu0 %v2752
        %v2845 = vpop.f32.mrf.mxu0
        %v2846 = vadd.f32 0.0, %v2845
        %2847 = vmatmul.f32.gmra.mxu0 %v2753
        %v2848 = vpop.f32.mrf.mxu0
        %v2849 = vadd.f32 0.0, %v2848
        %2850 = vmatmul.f32.gmra.mxu0 %v2754
        %v2851 = vpop.f32.mrf.mxu0
        %v2852 = vadd.f32 0.0, %v2851
        %2853 = vmatmul.f32.gmra.mxu0 %v2755
        %v2854 = vpop.f32.mrf.mxu0
        %v2855 = vadd.f32 0.0, %v2854
        %2856 = vmatmul.f32.gmra.mxu0 %v2756
        %v2857 = vpop.f32.mrf.mxu0
        %v2858 = vadd.f32 0.0, %v2857
        %2859 = vmatmul.f32.gmra.mxu0 %v2757
        %v2860 = vpop.f32.mrf.mxu0
        %v2861 = vadd.f32 0.0, %v2860
        %2862 = vmatmul.f32.gmra.mxu0 %v2758
        %v2863 = vpop.f32.mrf.mxu0
        %v2864 = vadd.f32 0.0, %v2863
        %2865 = vmatmul.f32.gmra.mxu0 %v2759
        %v2866 = vpop.f32.mrf.mxu0
        %v2867 = vadd.f32 0.0, %v2866
        %2868 = vmatmul.f32.gmra.mxu0 %v2760
        %v2869 = vpop.f32.mrf.mxu0
        %v2870 = vadd.f32 0.0, %v2869
        %2871 = vmatmul.f32.gmra.mxu0 %v2761
        %v2872 = vpop.f32.mrf.mxu0
        %v2873 = vadd.f32 0.0, %v2872
        %2874 = vmatmul.f32.gmra.mxu0 %v2762
        %v2875 = vpop.f32.mrf.mxu0
        %v2876 = vadd.f32 0.0, %v2875
        %2877 = vmatmul.f32.gmra.mxu0 %v2763
        %v2878 = vpop.f32.mrf.mxu0
        %v2879 = vadd.f32 0.0, %v2878
        %2880 = vmatmul.f32.gmra.mxu0 %v2764
        %v2881 = vpop.f32.mrf.mxu0
        %v2882 = vadd.f32 0.0, %v2881
        %2883 = vmatmul.f32.gmra.mxu0 %v2765
        %v2884 = vpop.f32.mrf.mxu0
        %v2885 = vadd.f32 0.0, %v2884
        %2886 = vmatmul.f32.gmra.mxu0 %v2766
        %v2887 = vpop.f32.mrf.mxu0
        %v2888 = vadd.f32 0.0, %v2887
        %2889 = vmatmul.f32.gmra.mxu0 %v2767
        %v2890 = vpop.f32.mrf.mxu0
        %v2891 = vadd.f32 0.0, %v2890
        %2892 = vmatmul.f32.gmra.mxu0 %v2768
        %v2893 = vpop.f32.mrf.mxu0
        %v2894 = vadd.f32 0.0, %v2893
        %2895 = vmatmul.f32.gmra.mxu0 %v2769
        %v2896 = vpop.f32.mrf.mxu0
        %v2897 = vadd.f32 0.0, %v2896
        %2898 = vmatmul.f32.gmra.mxu0 %v2770
        %v2899 = vpop.f32.mrf.mxu0
        %v2900 = vadd.f32 0.0, %v2899
        %2901 = vmatmul.f32.gmra.mxu0 %v2771
        %v2902 = vpop.f32.mrf.mxu0
        %v2903 = vadd.f32 0.0, %v2902
        %2904 = vmatmul.f32.gmra.mxu0 %v2772
        %v2905 = vpop.f32.mrf.mxu0
        %v2906 = vadd.f32 0.0, %v2905
        %2907 = vmatmul.f32.gmra.mxu0 %v2773
        %v2908 = vpop.f32.mrf.mxu0
        %v2909 = vadd.f32 0.0, %v2908
        %2910 = vmatmul.f32.gmra.mxu0 %v2774
        %v2911 = vpop.f32.mrf.mxu0
        %v2912 = vadd.f32 0.0, %v2911
        %2913 = vmatmul.f32.gmra.mxu0 %v2775
        %v2914 = vpop.f32.mrf.mxu0
        %v2915 = vadd.f32 0.0, %v2914
        %2916 = vmatmul.f32.gmra.mxu0 %v2776
        %v2917 = vpop.f32.mrf.mxu0
        %v2918 = vadd.f32 0.0, %v2917
        %2919 = vmatmul.f32.gmra.mxu0 %v2777
        %v2920 = vpop.f32.mrf.mxu0
        %v2921 = vadd.f32 0.0, %v2920
        %2922 = vmatmul.f32.gmra.mxu0 %v2778
        %v2923 = vpop.f32.mrf.mxu0
        %v2924 = vadd.f32 0.0, %v2923
        %2925 = vmatmul.f32.gmra.mxu0 %v2779
        %v2926 = vpop.f32.mrf.mxu0
        %v2927 = vadd.f32 0.0, %v2926
        %2928 = vmatmul.f32.gmra.mxu0 %v2780
        %v2929 = vpop.f32.mrf.mxu0
        %v2930 = vadd.f32 0.0, %v2929
        %2931 = vmatmul.f32.gmra.mxu0 %v2781
        %v2932 = vpop.f32.mrf.mxu0
        %v2933 = vadd.f32 0.0, %v2932
        %2934 = vmatmul.f32.gmra.mxu0 %v2782
        %v2935 = vpop.f32.mrf.mxu0
        %v2936 = vadd.f32 0.0, %v2935
        %2937 = vmatmul.f32.gmra.mxu0 %v2783
        %v2938 = vpop.f32.mrf.mxu0
        %v2939 = vadd.f32 0.0, %v2938
        %2940 = vdwg.mxu0
        %v2941 = vadd.f32 %v2702, %v2819
        %v2942 = vadd.f32 %v2703, %v2822
        %v2943 = vadd.f32 %v2704, %v2825
        %v2944 = vadd.f32 %v2705, %v2828
        %v2945 = vadd.f32 %v2706, %v2831
        %v2946 = vadd.f32 %v2707, %v2834
        %v2947 = vadd.f32 %v2708, %v2837
        %v2948 = vadd.f32 %v2709, %v2840
        %v2949 = vadd.f32 %v2710, %v2843
        %v2950 = vadd.f32 %v2711, %v2846
        %v2951 = vadd.f32 %v2712, %v2849
        %v2952 = vadd.f32 %v2713, %v2852
        %v2953 = vadd.f32 %v2714, %v2855
        %v2954 = vadd.f32 %v2715, %v2858
        %v2955 = vadd.f32 %v2716, %v2861
        %v2956 = vadd.f32 %v2717, %v2864
        %v2957 = vadd.f32 %v2718, %v2867
        %v2958 = vadd.f32 %v2719, %v2870
        %v2959 = vadd.f32 %v2720, %v2873
        %v2960 = vadd.f32 %v2721, %v2876
        %v2961 = vadd.f32 %v2722, %v2879
        %v2962 = vadd.f32 %v2723, %v2882
        %v2963 = vadd.f32 %v2724, %v2885
        %v2964 = vadd.f32 %v2725, %v2888
        %v2965 = vadd.f32 %v2726, %v2891
        %v2966 = vadd.f32 %v2727, %v2894
        %v2967 = vadd.f32 %v2728, %v2897
        %v2968 = vadd.f32 %v2729, %v2900
        %v2969 = vadd.f32 %v2730, %v2903
        %v2970 = vadd.f32 %v2731, %v2906
        %v2971 = vadd.f32 %v2732, %v2909
        %v2972 = vadd.f32 %v2733, %v2912
        %v2973 = vadd.f32 %v2734, %v2915
        %v2974 = vadd.f32 %v2735, %v2918
        %v2975 = vadd.f32 %v2736, %v2921
        %v2976 = vadd.f32 %v2737, %v2924
        %v2977 = vadd.f32 %v2738, %v2927
        %v2978 = vadd.f32 %v2739, %v2930
        %v2979 = vadd.f32 %v2740, %v2933
        %v2980 = vadd.f32 %v2741, %v2936
        %v2981 = vadd.f32 %v2742, %v2939
        %v2982 = vld [vmem:[%s4] sm:$0x1]
        %v2984 = vperm.slane %v2982, 0
        %v2986 = vadd.f32 %v2941, %v2984
        %v2987 = vadd.f32 %v2942, %v2984
        %v2988 = vadd.f32 %v2943, %v2984
        %v2989 = vadd.f32 %v2944, %v2984
        %v2990 = vadd.f32 %v2945, %v2984
        %v2991 = vadd.f32 %v2946, %v2984
        %v2992 = vadd.f32 %v2947, %v2984
        %v2993 = vadd.f32 %v2948, %v2984
        %v2994 = vadd.f32 %v2949, %v2984
        %v2995 = vadd.f32 %v2950, %v2984
        %v2996 = vadd.f32 %v2951, %v2984
        %v2997 = vadd.f32 %v2952, %v2984
        %v2998 = vadd.f32 %v2953, %v2984
        %v2999 = vadd.f32 %v2954, %v2984
        %v3000 = vadd.f32 %v2955, %v2984
        %v3001 = vadd.f32 %v2956, %v2984
        %v3002 = vadd.f32 %v2957, %v2984
        %v3003 = vadd.f32 %v2958, %v2984
        %v3004 = vadd.f32 %v2959, %v2984
        %v3005 = vadd.f32 %v2960, %v2984
        %v3006 = vadd.f32 %v2961, %v2984
        %v3007 = vadd.f32 %v2962, %v2984
        %v3008 = vadd.f32 %v2963, %v2984
        %v3009 = vadd.f32 %v2964, %v2984
        %v3010 = vadd.f32 %v2965, %v2984
        %v3011 = vadd.f32 %v2966, %v2984
        %v3012 = vadd.f32 %v2967, %v2984
        %v3013 = vadd.f32 %v2968, %v2984
        %v3014 = vadd.f32 %v2969, %v2984
        %v3015 = vadd.f32 %v2970, %v2984
        %v3016 = vadd.f32 %v2971, %v2984
        %v3017 = vadd.f32 %v2972, %v2984
        %v3018 = vadd.f32 %v2973, %v2984
        %v3019 = vadd.f32 %v2974, %v2984
        %v3020 = vadd.f32 %v2975, %v2984
        %v3021 = vadd.f32 %v2976, %v2984
        %v3022 = vadd.f32 %v2977, %v2984
        %v3023 = vadd.f32 %v2978, %v2984
        %v3024 = vadd.f32 %v2979, %v2984
        %v3025 = vadd.f32 %v2980, %v2984
        %v3026 = vadd.f32 %v2981, %v2984
        %3027 = vst [vmem:[%s261] sm:$0xff] %v2986
        %3028 = vst [vmem:[%s261 + $0x8] sm:$0xff] %v2987
        %3029 = vst [vmem:[%s261 + $0x10] sm:$0xff] %v2988
        %3030 = vst [vmem:[%s261 + $0x18] sm:$0xff] %v2989
        %3031 = vst [vmem:[%s261 + $0x20] sm:$0xff] %v2990
        %3032 = vst [vmem:[%s261 + $0x28] sm:$0xff] %v2991
        %3033 = vst [vmem:[%s261 + $0x30] sm:$0xff] %v2992
        %3034 = vst [vmem:[%s261 + $0x38] sm:$0xff] %v2993
        %3035 = vst [vmem:[%s261 + $0x40] sm:$0xff] %v2994
        %3036 = vst [vmem:[%s261 + $0x48] sm:$0xff] %v2995
        %3037 = vst [vmem:[%s261 + $0x50] sm:$0xff] %v2996
        %3038 = vst [vmem:[%s261 + $0x58] sm:$0xff] %v2997
        %3039 = vst [vmem:[%s261 + $0x60] sm:$0xff] %v2998
        %3040 = vst [vmem:[%s261 + $0x68] sm:$0xff] %v2999
        %3041 = vst [vmem:[%s261 + $0x70] sm:$0xff] %v3000
        %3042 = vst [vmem:[%s261 + $0x78] sm:$0xff] %v3001
        %3043 = vst [vmem:[%s261 + $0x80] sm:$0xff] %v3002
        %3044 = vst [vmem:[%s261 + $0x88] sm:$0xff] %v3003
        %3045 = vst [vmem:[%s261 + $0x90] sm:$0xff] %v3004
        %3046 = vst [vmem:[%s261 + $0x98] sm:$0xff] %v3005
        %3047 = vst [vmem:[%s261 + $0xa0] sm:$0xff] %v3006
        %3048 = vst [vmem:[%s261 + $0xa8] sm:$0xff] %v3007
        %3049 = vst [vmem:[%s261 + $0xb0] sm:$0xff] %v3008
        %3050 = vst [vmem:[%s261 + $0xb8] sm:$0xff] %v3009
        %3051 = vst [vmem:[%s261 + $0xc0] sm:$0xff] %v3010
        %3052 = vst [vmem:[%s261 + $0xc8] sm:$0xff] %v3011
        %3053 = vst [vmem:[%s261 + $0xd0] sm:$0xff] %v3012
        %3054 = vst [vmem:[%s261 + $0xd8] sm:$0xff] %v3013
        %3055 = vst [vmem:[%s261 + $0xe0] sm:$0xff] %v3014
        %3056 = vst [vmem:[%s261 + $0xe8] sm:$0xff] %v3015
        %3057 = vst [vmem:[%s261 + $0xf0] sm:$0xff] %v3016
        %3058 = vst [vmem:[%s261 + $0xf8] sm:$0xff] %v3017
        %3059 = vst [vmem:[%s261 + $0x100] sm:$0xff] %v3018
        %3060 = vst [vmem:[%s261 + $0x108] sm:$0xff] %v3019
        %3061 = vst [vmem:[%s261 + $0x110] sm:$0xff] %v3020
        %3062 = vst [vmem:[%s261 + $0x118] sm:$0xff] %v3021
        %3063 = vst [vmem:[%s261 + $0x120] sm:$0xff] %v3022
        %3064 = vst [vmem:[%s261 + $0x128] sm:$0xff] %v3023
        %3065 = vst [vmem:[%s261 + $0x130] sm:$0xff] %v3024
        %3066 = vst [vmem:[%s261 + $0x138] sm:$0xff] %v3025
        %3067 = vst [vmem:[%s261 + $0x140] sm:$0xff] %v3026
        %s3068 = sand.u32 %s160, 1
        %s3069 = scalar_lea.sflag [#allocation5], %s3068
        %s3070 = sand.u32 %s160, 1
        %s3071 = smul.addr %s3070, 328
        %s3072 = scalar_lea.vmem [#allocation6], %s3071
        // Predicated region
        $region49: #{tpu_custom_call.1} parent=43 // pred_check
          %p3073 = pneg %p170
        $region50: #{tpu_custom_call.1} parent=43 // pred_check_branch
          %3075 = sbr.rel (%p3073) target = $region52
        $region51: #{tpu_custom_call.1} parent=43 // pred_region
          %3077 = vsyncadd %s3069, 0
          %s3078 = smul.addr %s21, 41
          %s3079 = smul.addr %s3078, 8
          %s3080 = scalar_lea.hbm %s6, %s3079
          %s3081 = sshll.u32 %s3072, 4
          %s3082 = int_to_ptr.vmem [resolvable:$true] %s3081
          %s3083 = sshll.u32 %s3080, 4
          %s3084 = int_to_ptr.hbm [resolvable:$true] %s3083
          %3089 = dma.vmem_to_hbm [thread:$0]  %s3082, 5248, %s3084, %s3069, 128, 128, 8
        $region52: #{tpu_custom_call.1} parent=43 // pred_fallthru
          _
      $region44: #{tpu_custom_call.1} parent=5 // pred_fallthru
        _
      %p3090 = scmp.le.s32.totalorder 2, %s16
      // Predicated region
      $region53: #{tpu_custom_call.1} parent=5 // pred_check
        %p3091 = pneg %p3090
      $region54: #{tpu_custom_call.1} parent=5 // pred_check_branch
        %3093 = sbr.rel (%p3091) target = $region56
      $region55: #{tpu_custom_call.1} parent=5 // pred_region
        %s3094 = ssub.s32 %s16, 2
        // Predicated region
        $region57: #{tpu_custom_call.1} parent=55 // pred_check
          %p3095 = pneg %p176
        $region58: #{tpu_custom_call.1} parent=55 // pred_check_branch
          %3097 = sbr.rel (%p3095) target = $region60
        $region59: #{tpu_custom_call.1} parent=55 // pred_region
          %s3098 = sand.u32 %s161, 1
          %s3099 = scalar_lea.sflag [#allocation5], %s3098
          %s3100 = sand.u32 %s161, 1
          %s3101 = smul.addr %s3100, 328
          %s3102 = scalar_lea.vmem [#allocation6], %s3101
          %3104 = dma.done %s3099, 5248
        $region60: #{tpu_custom_call.1} parent=55 // pred_fallthru
          _
      $region56: #{tpu_custom_call.1} parent=5 // pred_fallthru
        _
    $region6: #{tpu_custom_call.1} parent=1 // loop_footer
      %s20 = sadd.s32 1, %s16
    $region7: #{tpu_custom_call.1} parent=1 // loop_footer_branch
      %15 = sbr.rel target = $region3
    $region8: #{tpu_custom_call.1} parent=1 // loop_exit
      _
    %3105 = vsyncpa [#allocation4], 1
    %s3106 = scalar_lea.sflag [#allocation4], 1
    %3107 = vsyncpa %s3106, 1
    %3108 = vsyncpa [#allocation5], 1
    %s3109 = scalar_lea.sflag [#allocation5], 1
    %3110 = vsyncpa %s3109, 1

</llo_original>
